<compile_context>
chip_gen: v7x
topology: tpu7x:2x2x1
jax: 0.10.0
libtpu: 0.0.40
codegen_flags: <defaults>
</compile_context>

<pallas_src>
import math
import functools

import jax
import jax.numpy as jnp
from jax.experimental import pallas as pl
from jax.experimental.pallas import tpu as pltpu

EPS = 1e-5


def _layernorm(x, gamma, beta):
    mu = jnp.mean(x, axis=-1, keepdims=True)
    var = jnp.mean((x - mu) ** 2, axis=-1, keepdims=True)
    return (x - mu) * jax.lax.rsqrt(var + EPS) * gamma + beta


# ---------------------------------------------------------------------------
# Fused kernel: MHAtt(y, y, x) + residual + LN  ->  multi-scale conv + gates
#               + ReLU + LN.   One grid step per batch element.
# ---------------------------------------------------------------------------
def msbf_kernel(x_ref, y_ref,
                wq_ref, bq_ref, wk_ref, bk_ref, wv_ref, bv_ref, wm_ref, bm_ref,
                ln_g_ref, ln_b_ref,
                w1_ref, b1_ref, w2_ref, b2_ref, w3_ref, b3_ref,
                g1wa_ref, g1wb_ref, g1b_ref, g2w_ref, g2b_ref,
                o_ref, pad_ref, *, n_heads):
    x = x_ref[0]                      # (Lq, H) f32
    y = y_ref[0]                      # (Lk, H) f32
    Lq, H = x.shape
    dh = H // n_heads
    scale = 1.0 / math.sqrt(dh)

    # ---------------- attention: MHAtt(v=y, k=y, q=x) ----------------
    xb = x.astype(jnp.bfloat16)
    yb = y.astype(jnp.bfloat16)
    q = jnp.dot(xb, wq_ref[...], preferred_element_type=jnp.float32) + bq_ref[...]
    k = jnp.dot(yb, wk_ref[...], preferred_element_type=jnp.float32) + bk_ref[...]
    v = jnp.dot(yb, wv_ref[...], preferred_element_type=jnp.float32) + bv_ref[...]

    heads = []
    for h in range(n_heads):
        sl = slice(h * dh, (h + 1) * dh)
        qh = q[:, sl].astype(jnp.bfloat16)
        kh = k[:, sl].astype(jnp.bfloat16)
        vh = v[:, sl].astype(jnp.bfloat16)
        s = jnp.dot(qh, kh.T, preferred_element_type=jnp.float32) * scale
        s = s - jnp.max(s, axis=-1, keepdims=True)
        p = jnp.exp(s)
        p = p * pl.reciprocal(jnp.sum(p, axis=-1, keepdims=True), approx=True)
        heads.append(jnp.dot(p.astype(jnp.bfloat16), vh,
                             preferred_element_type=jnp.float32))
    att = jnp.concatenate(heads, axis=-1)          # lane-dense (Lq, H) in regs

    merged = jnp.dot(att.astype(jnp.bfloat16), wm_ref[...],
                     preferred_element_type=jnp.float32) + bm_ref[...]
    xn = _layernorm(x + merged, ln_g_ref[...], ln_b_ref[...])   # (Lq, H) f32

    # ---------------- multi-scale conv (k = 1 / 3 / 5) ----------------
    # Zero-padded copy of xn for sequence shifts (conv "same" padding):
    # rows [2, 2+Lq) hold xn, two zero rows on each side.
    pad_ref[...] = jnp.zeros_like(pad_ref)
    pad_ref[pl.ds(2, Lq), :] = xn
    xnb = xn.astype(jnp.bfloat16)

    def shifted(off):                 # shifted(off)[t] = xn[t + off], 0 out of range
        if off == 0:
            return xnb
        return pad_ref[pl.ds(2 + off, Lq), :].astype(jnp.bfloat16)

    x1 = jnp.dot(xnb, w1_ref[...], preferred_element_type=jnp.float32) + b1_ref[...]
    # kernel_size=3, padding=1: tap kk <-> offset kk - 1
    x2 = b2_ref[...] + sum(
        jnp.dot(shifted(kk - 1), w2_ref[kk], preferred_element_type=jnp.float32)
        for kk in range(3))
    # kernel_size=5, padding=2: tap kk <-> offset kk - 2
    x3 = b3_ref[...] + sum(
        jnp.dot(shifted(kk - 2), w3_ref[kk], preferred_element_type=jnp.float32)
        for kk in range(5))

    # ---------------- DynamicGate (shared params, applied twice) ----------------
    def gate(a, b):
        # Linear(2H->H) on concat([a,b]) == a @ Wa + b @ Wb
        h = (jnp.dot(a.astype(jnp.bfloat16), g1wa_ref[...],
                     preferred_element_type=jnp.float32)
             + jnp.dot(b.astype(jnp.bfloat16), g1wb_ref[...],
                       preferred_element_type=jnp.float32)
             + g1b_ref[...])
        h = h * jax.nn.sigmoid(h)                       # SiLU
        # Linear(H->1) as VPU multiply + lane reduction (avoid N=1 MXU matmul)
        g = jax.nn.sigmoid(jnp.sum(h * g2w_ref[...], axis=-1, keepdims=True)
                           + g2b_ref[0])
        return g * a + (1.0 - g) * b

    out = jnp.maximum(gate(gate(x1, x2), x3), 0.0)      # ReLU
    o_ref[0] = _layernorm(out, ln_g_ref[...], ln_b_ref[...])


# ---------------------------------------------------------------------------
# Wrapper
# ---------------------------------------------------------------------------
def msbf_forward(x, y, params, *, n_heads):
    B, Lq, H = x.shape
    Lk = y.shape[1]

    def rep(shape):                   # replicated (weight) block spec
        nd = len(shape)
        return pl.BlockSpec(shape, lambda b, _nd=nd: (0,) * _nd)

    xspec = pl.BlockSpec((1, Lq, H), lambda b: (b, 0, 0))
    yspec = pl.BlockSpec((1, Lk, H), lambda b: (b, 0, 0))
    smem_spec = pl.BlockSpec(memory_space=pltpu.MemorySpace.SMEM)

    bf16 = lambda a: a.astype(jnp.bfloat16)

    return pl.pallas_call(
        functools.partial(msbf_kernel, n_heads=n_heads),
        out_shape=jax.ShapeDtypeStruct((B, Lq, H), jnp.float32),
        grid=(B,),
        in_specs=[
            xspec, yspec,
            rep((H, H)), rep((1, H)),        # wq, bq
            rep((H, H)), rep((1, H)),        # wk, bk
            rep((H, H)), rep((1, H)),        # wv, bv
            rep((H, H)), rep((1, H)),        # wm, bm
            rep((1, H)), rep((1, H)),        # ln_g, ln_b
            rep((H, H)), rep((1, H)),        # w1, b1
            rep((3, H, H)), rep((1, H)),     # w2, b2
            rep((5, H, H)), rep((1, H)),     # w3, b3
            rep((H, H)), rep((H, H)), rep((1, H)),   # g1wa, g1wb, g1b
            rep((1, H)),                     # g2w (row vector)
            smem_spec,                       # g2b scalar in SMEM
        ],
        out_specs=xspec,
        scratch_shapes=[pltpu.VMEM((Lq + 4, H), jnp.float32)],
        compiler_params=pltpu.CompilerParams(
            dimension_semantics=("parallel",),
            vmem_limit_bytes=32 * 1024 * 1024,
        ),
    )(x, y,
      bf16(params["wq"]), params["bq"], bf16(params["wk"]), params["bk"],
      bf16(params["wv"]), params["bv"], bf16(params["wm"]), params["bm"],
      params["ln_g"], params["ln_b"],
      bf16(params["w1"]), params["b1"], bf16(params["w2"]), params["b2"],
      bf16(params["w3"]), params["b3"],
      bf16(params["g1wa"]), bf16(params["g1wb"]), params["g1b"],
      params["g2w"], params["g2b"])


# ---------------------------------------------------------------------------
# Deterministic parameter init (weights stored pre-transposed: (in, out))
# ---------------------------------------------------------------------------
def init_params(key, H):
    keys = iter(jax.random.split(key, 24))

    def w(shape, scale):
        return jax.random.normal(next(keys), shape, jnp.float32) * scale

    s = 1.0 / math.sqrt(H)
    return dict(
        wq=w((H, H), s), bq=w((1, H), s),
        wk=w((H, H), s), bk=w((1, H), s),
        wv=w((H, H), s), bv=w((1, H), s),
        wm=w((H, H), s), bm=w((1, H), s),
        ln_g=1.0 + w((1, H), 0.1), ln_b=w((1, H), 0.1),
        w1=w((H, H), s), b1=w((1, H), s),
        w2=w((3, H, H), s / math.sqrt(3.0)), b2=w((1, H), s),
        w3=w((5, H, H), s / math.sqrt(5.0)), b3=w((1, H), s),
        g1wa=w((H, H), 1.0 / math.sqrt(2.0 * H)),
        g1wb=w((H, H), 1.0 / math.sqrt(2.0 * H)),
        g1b=w((1, H), s),
        g2w=w((1, H), s), g2b=w((1,), s),
    )


# ---------------------------------------------------------------------------
# Pure-JAX f32 reference (mirrors PyTorch semantics) for a correctness check
# ---------------------------------------------------------------------------
def reference(x, y, params, n_heads):
    B, Lq, H = x.shape
    dh = H // n_heads

    q = x @ params["wq"] + params["bq"]
    k = y @ params["wk"] + params["bk"]
    v = y @ params["wv"] + params["bv"]

    def split(a):
        b_, l_, _ = a.shape
        return a.reshape(b_, l_, n_heads, dh).transpose(0, 2, 1, 3)

    qh, kh, vh = split(q), split(k), split(v)
    sc = jnp.einsum('bhqd,bhkd->bhqk', qh, kh) / math.sqrt(dh)
    p = jax.nn.softmax(sc, axis=-1)
    o = jnp.einsum('bhqk,bhkd->bhqd', p, vh).transpose(0, 2, 1, 3).reshape(B, Lq, H)
    o = o @ params["wm"] + params["bm"]
    xn = _layernorm(x + o, params["ln_g"], params["ln_b"])

    def conv(xin, taps, bias, pad):
        K = taps.shape[0]
        xp = jnp.pad(xin, ((0, 0), (pad, pad), (0, 0)))
        acc = bias
        for kk in range(K):
            acc = acc + jnp.einsum('blh,ho->blo', xp[:, kk:kk + Lq, :], taps[kk])
        return acc

    x1 = xn @ params["w1"] + params["b1"]
    x2 = conv(xn, params["w2"], params["b2"], 1)
    x3 = conv(xn, params["w3"], params["b3"], 2)

    def gate(a, b):
        h = a @ params["g1wa"] + b @ params["g1wb"] + params["g1b"]
        h = h * jax.nn.sigmoid(h)
        g = jax.nn.sigmoid(jnp.sum(h * params["g2w"], axis=-1, keepdims=True)
                           + params["g2b"])
        return g * a + (1.0 - g) * b

    out = jnp.maximum(gate(gate(x1, x2), x3), 0.0)
    return _layernorm(out, params["ln_g"], params["ln_b"])


if __name__ == "__main__":
    B, Lq, Lk, H, n_heads = 2, 8, 8, 32, 4
    key = jax.random.PRNGKey(0)
    kx, ky, kp = jax.random.split(key, 3)
    x = jax.random.normal(kx, (B, Lq, H), jnp.float32)
    y = jax.random.normal(ky, (B, Lk, H), jnp.float32)
    params = init_params(kp, H)

    out = jax.block_until_ready(msbf_forward(x, y, params, n_heads=n_heads))
    ref = reference(x, y, params, n_heads)
    assert out.shape == (B, Lq, H)
    err = float(jnp.max(jnp.abs(out - ref)))
    # bf16 MXU operands (f32 accumulation) vs f32 reference -> loosened tolerance
    assert jnp.allclose(out, ref, atol=7.5e-2, rtol=7.5e-2), f"max abs err {err}"
    print("KERNEL_OK")
</pallas_src>

<mosaic_0001>
module attributes {stable_mosaic.version = 11 : i64} {
  func.func @msbf_kernel(%arg0: i32, %arg1: memref<1x8x32xf32, #tpu.memory_space<vmem>>, %arg2: memref<1x8x32xf32, #tpu.memory_space<vmem>>, %arg3: memref<32x32xbf16, #tpu.memory_space<vmem>>, %arg4: memref<1x32xf32, #tpu.memory_space<vmem>>, %arg5: memref<32x32xbf16, #tpu.memory_space<vmem>>, %arg6: memref<1x32xf32, #tpu.memory_space<vmem>>, %arg7: memref<32x32xbf16, #tpu.memory_space<vmem>>, %arg8: memref<1x32xf32, #tpu.memory_space<vmem>>, %arg9: memref<32x32xbf16, #tpu.memory_space<vmem>>, %arg10: memref<1x32xf32, #tpu.memory_space<vmem>>, %arg11: memref<1x32xf32, #tpu.memory_space<vmem>>, %arg12: memref<1x32xf32, #tpu.memory_space<vmem>>, %arg13: memref<32x32xbf16, #tpu.memory_space<vmem>>, %arg14: memref<1x32xf32, #tpu.memory_space<vmem>>, %arg15: memref<3x32x32xbf16, #tpu.memory_space<vmem>>, %arg16: memref<1x32xf32, #tpu.memory_space<vmem>>, %arg17: memref<5x32x32xbf16, #tpu.memory_space<vmem>>, %arg18: memref<1x32xf32, #tpu.memory_space<vmem>>, %arg19: memref<32x32xbf16, #tpu.memory_space<vmem>>, %arg20: memref<32x32xbf16, #tpu.memory_space<vmem>>, %arg21: memref<1x32xf32, #tpu.memory_space<vmem>>, %arg22: memref<1x32xf32, #tpu.memory_space<vmem>>, %arg23: memref<1xf32, #tpu.memory_space<smem>>, %arg24: memref<1x8x32xf32, #tpu.memory_space<vmem>>, %arg25: memref<12x32xf32, #tpu.memory_space<vmem>>) attributes {dimension_semantics = [#tpu.dimension_semantics<parallel>], iteration_bounds = array<i64: 2>, scalar_prefetch = 0 : i64, scratch_operands = 1 : i64, tpu.core_type = #tpu.core_type<tc>, window_params = [{transform_indices = @transform_0, window_bounds = array<i64: 1, 8, 32>}, {transform_indices = @transform_1, window_bounds = array<i64: 1, 8, 32>}, {pipeline_mode = #tpu.pipeline_mode<synchronous>, transform_indices = @transform_2, window_bounds = array<i64: 32, 32>}, {pipeline_mode = #tpu.pipeline_mode<synchronous>, transform_indices = @transform_3, window_bounds = array<i64: 1, 32>}, {pipeline_mode = #tpu.pipeline_mode<synchronous>, transform_indices = @transform_4, window_bounds = array<i64: 32, 32>}, {pipeline_mode = #tpu.pipeline_mode<synchronous>, transform_indices = @transform_5, window_bounds = array<i64: 1, 32>}, {pipeline_mode = #tpu.pipeline_mode<synchronous>, transform_indices = @transform_6, window_bounds = array<i64: 32, 32>}, {pipeline_mode = #tpu.pipeline_mode<synchronous>, transform_indices = @transform_7, window_bounds = array<i64: 1, 32>}, {pipeline_mode = #tpu.pipeline_mode<synchronous>, transform_indices = @transform_8, window_bounds = array<i64: 32, 32>}, {pipeline_mode = #tpu.pipeline_mode<synchronous>, transform_indices = @transform_9, window_bounds = array<i64: 1, 32>}, {pipeline_mode = #tpu.pipeline_mode<synchronous>, transform_indices = @transform_10, window_bounds = array<i64: 1, 32>}, {pipeline_mode = #tpu.pipeline_mode<synchronous>, transform_indices = @transform_11, window_bounds = array<i64: 1, 32>}, {pipeline_mode = #tpu.pipeline_mode<synchronous>, transform_indices = @transform_12, window_bounds = array<i64: 32, 32>}, {pipeline_mode = #tpu.pipeline_mode<synchronous>, transform_indices = @transform_13, window_bounds = array<i64: 1, 32>}, {pipeline_mode = #tpu.pipeline_mode<synchronous>, transform_indices = @transform_14, window_bounds = array<i64: 3, 32, 32>}, {pipeline_mode = #tpu.pipeline_mode<synchronous>, transform_indices = @transform_15, window_bounds = array<i64: 1, 32>}, {pipeline_mode = #tpu.pipeline_mode<synchronous>, transform_indices = @transform_16, window_bounds = array<i64: 5, 32, 32>}, {pipeline_mode = #tpu.pipeline_mode<synchronous>, transform_indices = @transform_17, window_bounds = array<i64: 1, 32>}, {pipeline_mode = #tpu.pipeline_mode<synchronous>, transform_indices = @transform_18, window_bounds = array<i64: 32, 32>}, {pipeline_mode = #tpu.pipeline_mode<synchronous>, transform_indices = @transform_19, window_bounds = array<i64: 32, 32>}, {pipeline_mode = #tpu.pipeline_mode<synchronous>, transform_indices = @transform_20, window_bounds = array<i64: 1, 32>}, {pipeline_mode = #tpu.pipeline_mode<synchronous>, transform_indices = @transform_21, window_bounds = array<i64: 1, 32>}, {transform_indices = @transform_22, window_bounds = array<i64: 1>}, {transform_indices = @transform_23, window_bounds = array<i64: 1, 8, 32>}]} {
    %c0 = arith.constant 0 : index
    %c0_0 = arith.constant 0 : index
    %c0_1 = arith.constant 0 : index
    %0 = vector.load %arg1[%c0, %c0_0, %c0_1] : memref<1x8x32xf32, #tpu.memory_space<vmem>>, vector<1x8x32xf32>
    %1 = vector.shape_cast %0 : vector<1x8x32xf32> to vector<8x32xf32>
    %c0_2 = arith.constant 0 : index
    %c0_3 = arith.constant 0 : index
    %c0_4 = arith.constant 0 : index
    %2 = vector.load %arg2[%c0_2, %c0_3, %c0_4] : memref<1x8x32xf32, #tpu.memory_space<vmem>>, vector<1x8x32xf32>
    %3 = vector.shape_cast %2 : vector<1x8x32xf32> to vector<8x32xf32>
    %4 = arith.truncf %1 : vector<8x32xf32> to vector<8x32xbf16>
    %5 = arith.truncf %3 : vector<8x32xf32> to vector<8x32xbf16>
    %c0_5 = arith.constant 0 : index
    %c0_6 = arith.constant 0 : index
    %6 = vector.load %arg3[%c0_5, %c0_6] : memref<32x32xbf16, #tpu.memory_space<vmem>>, vector<32x32xbf16>
    %cst = arith.constant dense<0.000000e+00> : vector<8x32xf32>
    %7 = tpu.matmul %4, %6, %cst {dimension_numbers = #tpu.dot_dimension_numbers<[1], [0], [0], [1], [0, 0, 1, 1], [], []>} : vector<8x32xbf16>, vector<32x32xbf16>, vector<8x32xf32> -> vector<8x32xf32>
    %c0_7 = arith.constant 0 : index
    %c0_8 = arith.constant 0 : index
    %8 = vector.load %arg4[%c0_7, %c0_8] : memref<1x32xf32, #tpu.memory_space<vmem>>, vector<1x32xf32>
    %9 = vector.broadcast %8 : vector<1x32xf32> to vector<8x32xf32>
    %10 = arith.addf %7, %9 : vector<8x32xf32>
    %c0_9 = arith.constant 0 : index
    %c0_10 = arith.constant 0 : index
    %11 = vector.load %arg5[%c0_9, %c0_10] : memref<32x32xbf16, #tpu.memory_space<vmem>>, vector<32x32xbf16>
    %cst_11 = arith.constant dense<0.000000e+00> : vector<8x32xf32>
    %12 = tpu.matmul %5, %11, %cst_11 {dimension_numbers = #tpu.dot_dimension_numbers<[1], [0], [0], [1], [0, 0, 1, 1], [], []>} : vector<8x32xbf16>, vector<32x32xbf16>, vector<8x32xf32> -> vector<8x32xf32>
    %c0_12 = arith.constant 0 : index
    %c0_13 = arith.constant 0 : index
    %13 = vector.load %arg6[%c0_12, %c0_13] : memref<1x32xf32, #tpu.memory_space<vmem>>, vector<1x32xf32>
    %14 = vector.broadcast %13 : vector<1x32xf32> to vector<8x32xf32>
    %15 = arith.addf %12, %14 : vector<8x32xf32>
    %c0_14 = arith.constant 0 : index
    %c0_15 = arith.constant 0 : index
    %16 = vector.load %arg7[%c0_14, %c0_15] : memref<32x32xbf16, #tpu.memory_space<vmem>>, vector<32x32xbf16>
    %cst_16 = arith.constant dense<0.000000e+00> : vector<8x32xf32>
    %17 = tpu.matmul %5, %16, %cst_16 {dimension_numbers = #tpu.dot_dimension_numbers<[1], [0], [0], [1], [0, 0, 1, 1], [], []>} : vector<8x32xbf16>, vector<32x32xbf16>, vector<8x32xf32> -> vector<8x32xf32>
    %c0_17 = arith.constant 0 : index
    %c0_18 = arith.constant 0 : index
    %18 = vector.load %arg8[%c0_17, %c0_18] : memref<1x32xf32, #tpu.memory_space<vmem>>, vector<1x32xf32>
    %19 = vector.broadcast %18 : vector<1x32xf32> to vector<8x32xf32>
    %20 = arith.addf %17, %19 : vector<8x32xf32>
    %21 = vector.extract_strided_slice %10 {offsets = [0, 0], sizes = [8, 8], strides = [1, 1]} : vector<8x32xf32> to vector<8x8xf32>
    %22 = arith.truncf %21 : vector<8x8xf32> to vector<8x8xbf16>
    %23 = vector.extract_strided_slice %15 {offsets = [0, 0], sizes = [8, 8], strides = [1, 1]} : vector<8x32xf32> to vector<8x8xf32>
    %24 = arith.truncf %23 : vector<8x8xf32> to vector<8x8xbf16>
    %25 = vector.extract_strided_slice %20 {offsets = [0, 0], sizes = [8, 8], strides = [1, 1]} : vector<8x32xf32> to vector<8x8xf32>
    %26 = arith.truncf %25 : vector<8x8xf32> to vector<8x8xbf16>
    %27 = tpu.transpose %24, [1, 0] : vector<8x8xbf16> -> vector<8x8xbf16>
    %cst_19 = arith.constant dense<0.000000e+00> : vector<8x8xf32>
    %28 = tpu.matmul %22, %27, %cst_19 {dimension_numbers = #tpu.dot_dimension_numbers<[1], [0], [0], [1], [0, 0, 1, 1], [], []>} : vector<8x8xbf16>, vector<8x8xbf16>, vector<8x8xf32> -> vector<8x8xf32>
    %cst_20 = arith.constant 0.353553385 : f32
    %29 = vector.broadcast %cst_20 : f32 to vector<8x8xf32>
    %30 = arith.mulf %28, %29 : vector<8x8xf32>
    %cst_21 = arith.constant dense<0xFF800000> : vector<8xf32>
    %31 = vector.multi_reduction <maximumf>, %30, %cst_21 [1] : vector<8x8xf32> to vector<8xf32>
    %32 = vector.shape_cast %31 : vector<8xf32> to vector<8x1xf32>
    %33 = vector.broadcast %32 : vector<8x1xf32> to vector<8x8xf32>
    %34 = arith.subf %30, %33 : vector<8x8xf32>
    %35 = math.exp %34 : vector<8x8xf32>
    %cst_22 = arith.constant dense<0.000000e+00> : vector<8xf32>
    %36 = vector.multi_reduction <add>, %35, %cst_22 [1] : vector<8x8xf32> to vector<8xf32>
    %37 = vector.shape_cast %36 : vector<8xf32> to vector<8x1xf32>
    %38 = tpu.reciprocal %37 {approx = true} : vector<8x1xf32> -> vector<8x1xf32>
    %39 = vector.broadcast %38 : vector<8x1xf32> to vector<8x8xf32>
    %40 = arith.mulf %35, %39 : vector<8x8xf32>
    %41 = arith.truncf %40 : vector<8x8xf32> to vector<8x8xbf16>
    %cst_23 = arith.constant dense<0.000000e+00> : vector<8x8xf32>
    %42 = tpu.matmul %41, %26, %cst_23 {dimension_numbers = #tpu.dot_dimension_numbers<[1], [0], [0], [1], [0, 0, 1, 1], [], []>} : vector<8x8xbf16>, vector<8x8xbf16>, vector<8x8xf32> -> vector<8x8xf32>
    %43 = vector.extract_strided_slice %10 {offsets = [0, 8], sizes = [8, 8], strides = [1, 1]} : vector<8x32xf32> to vector<8x8xf32>
    %44 = arith.truncf %43 : vector<8x8xf32> to vector<8x8xbf16>
    %45 = vector.extract_strided_slice %15 {offsets = [0, 8], sizes = [8, 8], strides = [1, 1]} : vector<8x32xf32> to vector<8x8xf32>
    %46 = arith.truncf %45 : vector<8x8xf32> to vector<8x8xbf16>
    %47 = vector.extract_strided_slice %20 {offsets = [0, 8], sizes = [8, 8], strides = [1, 1]} : vector<8x32xf32> to vector<8x8xf32>
    %48 = arith.truncf %47 : vector<8x8xf32> to vector<8x8xbf16>
    %49 = tpu.transpose %46, [1, 0] : vector<8x8xbf16> -> vector<8x8xbf16>
    %cst_24 = arith.constant dense<0.000000e+00> : vector<8x8xf32>
    %50 = tpu.matmul %44, %49, %cst_24 {dimension_numbers = #tpu.dot_dimension_numbers<[1], [0], [0], [1], [0, 0, 1, 1], [], []>} : vector<8x8xbf16>, vector<8x8xbf16>, vector<8x8xf32> -> vector<8x8xf32>
    %cst_25 = arith.constant 0.353553385 : f32
    %51 = vector.broadcast %cst_25 : f32 to vector<8x8xf32>
    %52 = arith.mulf %50, %51 : vector<8x8xf32>
    %cst_26 = arith.constant dense<0xFF800000> : vector<8xf32>
    %53 = vector.multi_reduction <maximumf>, %52, %cst_26 [1] : vector<8x8xf32> to vector<8xf32>
    %54 = vector.shape_cast %53 : vector<8xf32> to vector<8x1xf32>
    %55 = vector.broadcast %54 : vector<8x1xf32> to vector<8x8xf32>
    %56 = arith.subf %52, %55 : vector<8x8xf32>
    %57 = math.exp %56 : vector<8x8xf32>
    %cst_27 = arith.constant dense<0.000000e+00> : vector<8xf32>
    %58 = vector.multi_reduction <add>, %57, %cst_27 [1] : vector<8x8xf32> to vector<8xf32>
    %59 = vector.shape_cast %58 : vector<8xf32> to vector<8x1xf32>
    %60 = tpu.reciprocal %59 {approx = true} : vector<8x1xf32> -> vector<8x1xf32>
    %61 = vector.broadcast %60 : vector<8x1xf32> to vector<8x8xf32>
    %62 = arith.mulf %57, %61 : vector<8x8xf32>
    %63 = arith.truncf %62 : vector<8x8xf32> to vector<8x8xbf16>
    %cst_28 = arith.constant dense<0.000000e+00> : vector<8x8xf32>
    %64 = tpu.matmul %63, %48, %cst_28 {dimension_numbers = #tpu.dot_dimension_numbers<[1], [0], [0], [1], [0, 0, 1, 1], [], []>} : vector<8x8xbf16>, vector<8x8xbf16>, vector<8x8xf32> -> vector<8x8xf32>
    %65 = vector.extract_strided_slice %10 {offsets = [0, 16], sizes = [8, 8], strides = [1, 1]} : vector<8x32xf32> to vector<8x8xf32>
    %66 = arith.truncf %65 : vector<8x8xf32> to vector<8x8xbf16>
    %67 = vector.extract_strided_slice %15 {offsets = [0, 16], sizes = [8, 8], strides = [1, 1]} : vector<8x32xf32> to vector<8x8xf32>
    %68 = arith.truncf %67 : vector<8x8xf32> to vector<8x8xbf16>
    %69 = vector.extract_strided_slice %20 {offsets = [0, 16], sizes = [8, 8], strides = [1, 1]} : vector<8x32xf32> to vector<8x8xf32>
    %70 = arith.truncf %69 : vector<8x8xf32> to vector<8x8xbf16>
    %71 = tpu.transpose %68, [1, 0] : vector<8x8xbf16> -> vector<8x8xbf16>
    %cst_29 = arith.constant dense<0.000000e+00> : vector<8x8xf32>
    %72 = tpu.matmul %66, %71, %cst_29 {dimension_numbers = #tpu.dot_dimension_numbers<[1], [0], [0], [1], [0, 0, 1, 1], [], []>} : vector<8x8xbf16>, vector<8x8xbf16>, vector<8x8xf32> -> vector<8x8xf32>
    %cst_30 = arith.constant 0.353553385 : f32
    %73 = vector.broadcast %cst_30 : f32 to vector<8x8xf32>
    %74 = arith.mulf %72, %73 : vector<8x8xf32>
    %cst_31 = arith.constant dense<0xFF800000> : vector<8xf32>
    %75 = vector.multi_reduction <maximumf>, %74, %cst_31 [1] : vector<8x8xf32> to vector<8xf32>
    %76 = vector.shape_cast %75 : vector<8xf32> to vector<8x1xf32>
    %77 = vector.broadcast %76 : vector<8x1xf32> to vector<8x8xf32>
    %78 = arith.subf %74, %77 : vector<8x8xf32>
    %79 = math.exp %78 : vector<8x8xf32>
    %cst_32 = arith.constant dense<0.000000e+00> : vector<8xf32>
    %80 = vector.multi_reduction <add>, %79, %cst_32 [1] : vector<8x8xf32> to vector<8xf32>
    %81 = vector.shape_cast %80 : vector<8xf32> to vector<8x1xf32>
    %82 = tpu.reciprocal %81 {approx = true} : vector<8x1xf32> -> vector<8x1xf32>
    %83 = vector.broadcast %82 : vector<8x1xf32> to vector<8x8xf32>
    %84 = arith.mulf %79, %83 : vector<8x8xf32>
    %85 = arith.truncf %84 : vector<8x8xf32> to vector<8x8xbf16>
    %cst_33 = arith.constant dense<0.000000e+00> : vector<8x8xf32>
    %86 = tpu.matmul %85, %70, %cst_33 {dimension_numbers = #tpu.dot_dimension_numbers<[1], [0], [0], [1], [0, 0, 1, 1], [], []>} : vector<8x8xbf16>, vector<8x8xbf16>, vector<8x8xf32> -> vector<8x8xf32>
    %87 = vector.extract_strided_slice %10 {offsets = [0, 24], sizes = [8, 8], strides = [1, 1]} : vector<8x32xf32> to vector<8x8xf32>
    %88 = arith.truncf %87 : vector<8x8xf32> to vector<8x8xbf16>
    %89 = vector.extract_strided_slice %15 {offsets = [0, 24], sizes = [8, 8], strides = [1, 1]} : vector<8x32xf32> to vector<8x8xf32>
    %90 = arith.truncf %89 : vector<8x8xf32> to vector<8x8xbf16>
    %91 = vector.extract_strided_slice %20 {offsets = [0, 24], sizes = [8, 8], strides = [1, 1]} : vector<8x32xf32> to vector<8x8xf32>
    %92 = arith.truncf %91 : vector<8x8xf32> to vector<8x8xbf16>
    %93 = tpu.transpose %90, [1, 0] : vector<8x8xbf16> -> vector<8x8xbf16>
    %cst_34 = arith.constant dense<0.000000e+00> : vector<8x8xf32>
    %94 = tpu.matmul %88, %93, %cst_34 {dimension_numbers = #tpu.dot_dimension_numbers<[1], [0], [0], [1], [0, 0, 1, 1], [], []>} : vector<8x8xbf16>, vector<8x8xbf16>, vector<8x8xf32> -> vector<8x8xf32>
    %cst_35 = arith.constant 0.353553385 : f32
    %95 = vector.broadcast %cst_35 : f32 to vector<8x8xf32>
    %96 = arith.mulf %94, %95 : vector<8x8xf32>
    %cst_36 = arith.constant dense<0xFF800000> : vector<8xf32>
    %97 = vector.multi_reduction <maximumf>, %96, %cst_36 [1] : vector<8x8xf32> to vector<8xf32>
    %98 = vector.shape_cast %97 : vector<8xf32> to vector<8x1xf32>
    %99 = vector.broadcast %98 : vector<8x1xf32> to vector<8x8xf32>
    %100 = arith.subf %96, %99 : vector<8x8xf32>
    %101 = math.exp %100 : vector<8x8xf32>
    %cst_37 = arith.constant dense<0.000000e+00> : vector<8xf32>
    %102 = vector.multi_reduction <add>, %101, %cst_37 [1] : vector<8x8xf32> to vector<8xf32>
    %103 = vector.shape_cast %102 : vector<8xf32> to vector<8x1xf32>
    %104 = tpu.reciprocal %103 {approx = true} : vector<8x1xf32> -> vector<8x1xf32>
    %105 = vector.broadcast %104 : vector<8x1xf32> to vector<8x8xf32>
    %106 = arith.mulf %101, %105 : vector<8x8xf32>
    %107 = arith.truncf %106 : vector<8x8xf32> to vector<8x8xbf16>
    %cst_38 = arith.constant dense<0.000000e+00> : vector<8x8xf32>
    %108 = tpu.matmul %107, %92, %cst_38 {dimension_numbers = #tpu.dot_dimension_numbers<[1], [0], [0], [1], [0, 0, 1, 1], [], []>} : vector<8x8xbf16>, vector<8x8xbf16>, vector<8x8xf32> -> vector<8x8xf32>
    %109 = tpu.concatenate %42, %64, %86, %108 in 1 : vector<8x8xf32>, vector<8x8xf32>, vector<8x8xf32>, vector<8x8xf32> -> vector<8x32xf32>
    %110 = arith.truncf %109 : vector<8x32xf32> to vector<8x32xbf16>
    %c0_39 = arith.constant 0 : index
    %c0_40 = arith.constant 0 : index
    %111 = vector.load %arg9[%c0_39, %c0_40] : memref<32x32xbf16, #tpu.memory_space<vmem>>, vector<32x32xbf16>
    %cst_41 = arith.constant dense<0.000000e+00> : vector<8x32xf32>
    %112 = tpu.matmul %110, %111, %cst_41 {dimension_numbers = #tpu.dot_dimension_numbers<[1], [0], [0], [1], [0, 0, 1, 1], [], []>} : vector<8x32xbf16>, vector<32x32xbf16>, vector<8x32xf32> -> vector<8x32xf32>
    %c0_42 = arith.constant 0 : index
    %c0_43 = arith.constant 0 : index
    %113 = vector.load %arg10[%c0_42, %c0_43] : memref<1x32xf32, #tpu.memory_space<vmem>>, vector<1x32xf32>
    %114 = vector.broadcast %113 : vector<1x32xf32> to vector<8x32xf32>
    %115 = arith.addf %112, %114 : vector<8x32xf32>
    %116 = arith.addf %1, %115 : vector<8x32xf32>
    %c0_44 = arith.constant 0 : index
    %c0_45 = arith.constant 0 : index
    %117 = vector.load %arg11[%c0_44, %c0_45] : memref<1x32xf32, #tpu.memory_space<vmem>>, vector<1x32xf32>
    %c0_46 = arith.constant 0 : index
    %c0_47 = arith.constant 0 : index
    %118 = vector.load %arg12[%c0_46, %c0_47] : memref<1x32xf32, #tpu.memory_space<vmem>>, vector<1x32xf32>
    %cst_48 = arith.constant dense<0.000000e+00> : vector<8xf32>
    %119 = vector.multi_reduction <add>, %116, %cst_48 [1] : vector<8x32xf32> to vector<8xf32>
    %120 = vector.shape_cast %119 : vector<8xf32> to vector<8x1xf32>
    %cst_49 = arith.constant 3.200000e+01 : f32
    %121 = vector.broadcast %cst_49 : f32 to vector<8x1xf32>
    %122 = arith.divf %120, %121 : vector<8x1xf32>
    %123 = vector.broadcast %122 : vector<8x1xf32> to vector<8x32xf32>
    %124 = arith.subf %116, %123 : vector<8x32xf32>
    %125 = arith.mulf %124, %124 : vector<8x32xf32>
    %cst_50 = arith.constant dense<0.000000e+00> : vector<8xf32>
    %126 = vector.multi_reduction <add>, %125, %cst_50 [1] : vector<8x32xf32> to vector<8xf32>
    %127 = vector.shape_cast %126 : vector<8xf32> to vector<8x1xf32>
    %cst_51 = arith.constant 3.200000e+01 : f32
    %128 = vector.broadcast %cst_51 : f32 to vector<8x1xf32>
    %129 = arith.divf %127, %128 : vector<8x1xf32>
    %130 = vector.broadcast %122 : vector<8x1xf32> to vector<8x32xf32>
    %131 = arith.subf %116, %130 : vector<8x32xf32>
    %cst_52 = arith.constant 9.99999974E-6 : f32
    %132 = vector.broadcast %cst_52 : f32 to vector<8x1xf32>
    %133 = arith.addf %129, %132 : vector<8x1xf32>
    %134 = math.rsqrt %133 : vector<8x1xf32>
    %135 = vector.broadcast %134 : vector<8x1xf32> to vector<8x32xf32>
    %136 = arith.mulf %131, %135 : vector<8x32xf32>
    %137 = vector.broadcast %117 : vector<1x32xf32> to vector<8x32xf32>
    %138 = arith.mulf %136, %137 : vector<8x32xf32>
    %139 = vector.broadcast %118 : vector<1x32xf32> to vector<8x32xf32>
    %140 = arith.addf %138, %139 : vector<8x32xf32>
    %cst_53 = arith.constant 0.000000e+00 : f32
    %141 = vector.broadcast %cst_53 : f32 to vector<12x32xf32>
    %c0_54 = arith.constant 0 : index
    %c0_55 = arith.constant 0 : index
    %142 = vector.load %arg25[%c0_54, %c0_55] : memref<12x32xf32, #tpu.memory_space<vmem>>, vector<12x32xf32>
    tpu.vector_store %arg25[%c0_54, %c0_55], %141 {strides = array<i32>} : memref<12x32xf32, #tpu.memory_space<vmem>>, vector<12x32xf32>,
    %c2 = arith.constant 2 : index
    %c0_56 = arith.constant 0 : index
    %143 = vector.load %arg25[%c2, %c0_56] : memref<12x32xf32, #tpu.memory_space<vmem>>, vector<8x32xf32>
    tpu.vector_store %arg25[%c2, %c0_56], %140 {strides = array<i32>} : memref<12x32xf32, #tpu.memory_space<vmem>>, vector<8x32xf32>,
    %144 = arith.truncf %140 : vector<8x32xf32> to vector<8x32xbf16>
    %c0_57 = arith.constant 0 : index
    %c0_58 = arith.constant 0 : index
    %145 = vector.load %arg13[%c0_57, %c0_58] : memref<32x32xbf16, #tpu.memory_space<vmem>>, vector<32x32xbf16>
    %cst_59 = arith.constant dense<0.000000e+00> : vector<8x32xf32>
    %146 = tpu.matmul %144, %145, %cst_59 {dimension_numbers = #tpu.dot_dimension_numbers<[1], [0], [0], [1], [0, 0, 1, 1], [], []>} : vector<8x32xbf16>, vector<32x32xbf16>, vector<8x32xf32> -> vector<8x32xf32>
    %c0_60 = arith.constant 0 : index
    %c0_61 = arith.constant 0 : index
    %147 = vector.load %arg14[%c0_60, %c0_61] : memref<1x32xf32, #tpu.memory_space<vmem>>, vector<1x32xf32>
    %148 = vector.broadcast %147 : vector<1x32xf32> to vector<8x32xf32>
    %149 = arith.addf %146, %148 : vector<8x32xf32>
    %c0_62 = arith.constant 0 : index
    %c0_63 = arith.constant 0 : index
    %150 = vector.load %arg16[%c0_62, %c0_63] : memref<1x32xf32, #tpu.memory_space<vmem>>, vector<1x32xf32>
    %c1 = arith.constant 1 : index
    %c0_64 = arith.constant 0 : index
    %151 = vector.load %arg25[%c1, %c0_64] : memref<12x32xf32, #tpu.memory_space<vmem>>, vector<8x32xf32>
    %152 = arith.truncf %151 : vector<8x32xf32> to vector<8x32xbf16>
    %c0_65 = arith.constant 0 : index
    %c0_66 = arith.constant 0 : index
    %c0_67 = arith.constant 0 : index
    %153 = vector.load %arg15[%c0_65, %c0_66, %c0_67] : memref<3x32x32xbf16, #tpu.memory_space<vmem>>, vector<1x32x32xbf16>
    %154 = vector.shape_cast %153 : vector<1x32x32xbf16> to vector<32x32xbf16>
    %cst_68 = arith.constant dense<0.000000e+00> : vector<8x32xf32>
    %155 = tpu.matmul %152, %154, %cst_68 {dimension_numbers = #tpu.dot_dimension_numbers<[1], [0], [0], [1], [0, 0, 1, 1], [], []>} : vector<8x32xbf16>, vector<32x32xbf16>, vector<8x32xf32> -> vector<8x32xf32>
    %cst_69 = arith.constant 0.000000e+00 : f32
    %156 = vector.broadcast %cst_69 : f32 to vector<8x32xf32>
    %157 = arith.addf %156, %155 : vector<8x32xf32>
    %c1_70 = arith.constant 1 : index
    %c0_71 = arith.constant 0 : index
    %c0_72 = arith.constant 0 : index
    %158 = vector.load %arg15[%c1_70, %c0_71, %c0_72] : memref<3x32x32xbf16, #tpu.memory_space<vmem>>, vector<1x32x32xbf16>
    %159 = vector.shape_cast %158 : vector<1x32x32xbf16> to vector<32x32xbf16>
    %cst_73 = arith.constant dense<0.000000e+00> : vector<8x32xf32>
    %160 = tpu.matmul %144, %159, %cst_73 {dimension_numbers = #tpu.dot_dimension_numbers<[1], [0], [0], [1], [0, 0, 1, 1], [], []>} : vector<8x32xbf16>, vector<32x32xbf16>, vector<8x32xf32> -> vector<8x32xf32>
    %161 = arith.addf %157, %160 : vector<8x32xf32>
    %c3 = arith.constant 3 : index
    %c0_74 = arith.constant 0 : index
    %162 = vector.load %arg25[%c3, %c0_74] : memref<12x32xf32, #tpu.memory_space<vmem>>, vector<8x32xf32>
    %163 = arith.truncf %162 : vector<8x32xf32> to vector<8x32xbf16>
    %c2_75 = arith.constant 2 : index
    %c0_76 = arith.constant 0 : index
    %c0_77 = arith.constant 0 : index
    %164 = vector.load %arg15[%c2_75, %c0_76, %c0_77] : memref<3x32x32xbf16, #tpu.memory_space<vmem>>, vector<1x32x32xbf16>
    %165 = vector.shape_cast %164 : vector<1x32x32xbf16> to vector<32x32xbf16>
    %cst_78 = arith.constant dense<0.000000e+00> : vector<8x32xf32>
    %166 = tpu.matmul %163, %165, %cst_78 {dimension_numbers = #tpu.dot_dimension_numbers<[1], [0], [0], [1], [0, 0, 1, 1], [], []>} : vector<8x32xbf16>, vector<32x32xbf16>, vector<8x32xf32> -> vector<8x32xf32>
    %167 = arith.addf %161, %166 : vector<8x32xf32>
    %168 = vector.broadcast %150 : vector<1x32xf32> to vector<8x32xf32>
    %169 = arith.addf %168, %167 : vector<8x32xf32>
    %c0_79 = arith.constant 0 : index
    %c0_80 = arith.constant 0 : index
    %170 = vector.load %arg18[%c0_79, %c0_80] : memref<1x32xf32, #tpu.memory_space<vmem>>, vector<1x32xf32>
    %c0_81 = arith.constant 0 : index
    %c0_82 = arith.constant 0 : index
    %171 = vector.load %arg25[%c0_81, %c0_82] : memref<12x32xf32, #tpu.memory_space<vmem>>, vector<8x32xf32>
    %172 = arith.truncf %171 : vector<8x32xf32> to vector<8x32xbf16>
    %c0_83 = arith.constant 0 : index
    %c0_84 = arith.constant 0 : index
    %c0_85 = arith.constant 0 : index
    %173 = vector.load %arg17[%c0_83, %c0_84, %c0_85] : memref<5x32x32xbf16, #tpu.memory_space<vmem>>, vector<1x32x32xbf16>
    %174 = vector.shape_cast %173 : vector<1x32x32xbf16> to vector<32x32xbf16>
    %cst_86 = arith.constant dense<0.000000e+00> : vector<8x32xf32>
    %175 = tpu.matmul %172, %174, %cst_86 {dimension_numbers = #tpu.dot_dimension_numbers<[1], [0], [0], [1], [0, 0, 1, 1], [], []>} : vector<8x32xbf16>, vector<32x32xbf16>, vector<8x32xf32> -> vector<8x32xf32>
    %cst_87 = arith.constant 0.000000e+00 : f32
    %176 = vector.broadcast %cst_87 : f32 to vector<8x32xf32>
    %177 = arith.addf %176, %175 : vector<8x32xf32>
    %c1_88 = arith.constant 1 : index
    %c0_89 = arith.constant 0 : index
    %178 = vector.load %arg25[%c1_88, %c0_89] : memref<12x32xf32, #tpu.memory_space<vmem>>, vector<8x32xf32>
    %179 = arith.truncf %178 : vector<8x32xf32> to vector<8x32xbf16>
    %c1_90 = arith.constant 1 : index
    %c0_91 = arith.constant 0 : index
    %c0_92 = arith.constant 0 : index
    %180 = vector.load %arg17[%c1_90, %c0_91, %c0_92] : memref<5x32x32xbf16, #tpu.memory_space<vmem>>, vector<1x32x32xbf16>
    %181 = vector.shape_cast %180 : vector<1x32x32xbf16> to vector<32x32xbf16>
    %cst_93 = arith.constant dense<0.000000e+00> : vector<8x32xf32>
    %182 = tpu.matmul %179, %181, %cst_93 {dimension_numbers = #tpu.dot_dimension_numbers<[1], [0], [0], [1], [0, 0, 1, 1], [], []>} : vector<8x32xbf16>, vector<32x32xbf16>, vector<8x32xf32> -> vector<8x32xf32>
    %183 = arith.addf %177, %182 : vector<8x32xf32>
    %c2_94 = arith.constant 2 : index
    %c0_95 = arith.constant 0 : index
    %c0_96 = arith.constant 0 : index
    %184 = vector.load %arg17[%c2_94, %c0_95, %c0_96] : memref<5x32x32xbf16, #tpu.memory_space<vmem>>, vector<1x32x32xbf16>
    %185 = vector.shape_cast %184 : vector<1x32x32xbf16> to vector<32x32xbf16>
    %cst_97 = arith.constant dense<0.000000e+00> : vector<8x32xf32>
    %186 = tpu.matmul %144, %185, %cst_97 {dimension_numbers = #tpu.dot_dimension_numbers<[1], [0], [0], [1], [0, 0, 1, 1], [], []>} : vector<8x32xbf16>, vector<32x32xbf16>, vector<8x32xf32> -> vector<8x32xf32>
    %187 = arith.addf %183, %186 : vector<8x32xf32>
    %c3_98 = arith.constant 3 : index
    %c0_99 = arith.constant 0 : index
    %188 = vector.load %arg25[%c3_98, %c0_99] : memref<12x32xf32, #tpu.memory_space<vmem>>, vector<8x32xf32>
    %189 = arith.truncf %188 : vector<8x32xf32> to vector<8x32xbf16>
    %c3_100 = arith.constant 3 : index
    %c0_101 = arith.constant 0 : index
    %c0_102 = arith.constant 0 : index
    %190 = vector.load %arg17[%c3_100, %c0_101, %c0_102] : memref<5x32x32xbf16, #tpu.memory_space<vmem>>, vector<1x32x32xbf16>
    %191 = vector.shape_cast %190 : vector<1x32x32xbf16> to vector<32x32xbf16>
    %cst_103 = arith.constant dense<0.000000e+00> : vector<8x32xf32>
    %192 = tpu.matmul %189, %191, %cst_103 {dimension_numbers = #tpu.dot_dimension_numbers<[1], [0], [0], [1], [0, 0, 1, 1], [], []>} : vector<8x32xbf16>, vector<32x32xbf16>, vector<8x32xf32> -> vector<8x32xf32>
    %193 = arith.addf %187, %192 : vector<8x32xf32>
    %c4 = arith.constant 4 : index
    %c0_104 = arith.constant 0 : index
    %194 = vector.load %arg25[%c4, %c0_104] : memref<12x32xf32, #tpu.memory_space<vmem>>, vector<8x32xf32>
    %195 = arith.truncf %194 : vector<8x32xf32> to vector<8x32xbf16>
    %c4_105 = arith.constant 4 : index
    %c0_106 = arith.constant 0 : index
    %c0_107 = arith.constant 0 : index
    %196 = vector.load %arg17[%c4_105, %c0_106, %c0_107] : memref<5x32x32xbf16, #tpu.memory_space<vmem>>, vector<1x32x32xbf16>
    %197 = vector.shape_cast %196 : vector<1x32x32xbf16> to vector<32x32xbf16>
    %cst_108 = arith.constant dense<0.000000e+00> : vector<8x32xf32>
    %198 = tpu.matmul %195, %197, %cst_108 {dimension_numbers = #tpu.dot_dimension_numbers<[1], [0], [0], [1], [0, 0, 1, 1], [], []>} : vector<8x32xbf16>, vector<32x32xbf16>, vector<8x32xf32> -> vector<8x32xf32>
    %199 = arith.addf %193, %198 : vector<8x32xf32>
    %200 = vector.broadcast %170 : vector<1x32xf32> to vector<8x32xf32>
    %201 = arith.addf %200, %199 : vector<8x32xf32>
    %202 = arith.truncf %149 : vector<8x32xf32> to vector<8x32xbf16>
    %c0_109 = arith.constant 0 : index
    %c0_110 = arith.constant 0 : index
    %203 = vector.load %arg19[%c0_109, %c0_110] : memref<32x32xbf16, #tpu.memory_space<vmem>>, vector<32x32xbf16>
    %cst_111 = arith.constant dense<0.000000e+00> : vector<8x32xf32>
    %204 = tpu.matmul %202, %203, %cst_111 {dimension_numbers = #tpu.dot_dimension_numbers<[1], [0], [0], [1], [0, 0, 1, 1], [], []>} : vector<8x32xbf16>, vector<32x32xbf16>, vector<8x32xf32> -> vector<8x32xf32>
    %205 = arith.truncf %169 : vector<8x32xf32> to vector<8x32xbf16>
    %c0_112 = arith.constant 0 : index
    %c0_113 = arith.constant 0 : index
    %206 = vector.load %arg20[%c0_112, %c0_113] : memref<32x32xbf16, #tpu.memory_space<vmem>>, vector<32x32xbf16>
    %cst_114 = arith.constant dense<0.000000e+00> : vector<8x32xf32>
    %207 = tpu.matmul %205, %206, %cst_114 {dimension_numbers = #tpu.dot_dimension_numbers<[1], [0], [0], [1], [0, 0, 1, 1], [], []>} : vector<8x32xbf16>, vector<32x32xbf16>, vector<8x32xf32> -> vector<8x32xf32>
    %208 = arith.addf %204, %207 : vector<8x32xf32>
    %c0_115 = arith.constant 0 : index
    %c0_116 = arith.constant 0 : index
    %209 = vector.load %arg21[%c0_115, %c0_116] : memref<1x32xf32, #tpu.memory_space<vmem>>, vector<1x32xf32>
    %210 = vector.broadcast %209 : vector<1x32xf32> to vector<8x32xf32>
    %211 = arith.addf %208, %210 : vector<8x32xf32>
    %212 = arith.negf %211 : vector<8x32xf32>
    %213 = math.exp %212 : vector<8x32xf32>
    %cst_117 = arith.constant 1.000000e+00 : f32
    %214 = vector.broadcast %cst_117 : f32 to vector<8x32xf32>
    %215 = arith.addf %214, %213 : vector<8x32xf32>
    %216 = arith.divf %214, %215 : vector<8x32xf32>
    %217 = arith.mulf %211, %216 : vector<8x32xf32>
    %c0_118 = arith.constant 0 : index
    %c0_119 = arith.constant 0 : index
    %218 = vector.load %arg22[%c0_118, %c0_119] : memref<1x32xf32, #tpu.memory_space<vmem>>, vector<1x32xf32>
    %219 = vector.broadcast %218 : vector<1x32xf32> to vector<8x32xf32>
    %220 = arith.mulf %217, %219 : vector<8x32xf32>
    %cst_120 = arith.constant dense<0.000000e+00> : vector<8xf32>
    %221 = vector.multi_reduction <add>, %220, %cst_120 [1] : vector<8x32xf32> to vector<8xf32>
    %222 = vector.shape_cast %221 : vector<8xf32> to vector<8x1xf32>
    %c0_121 = arith.constant 0 : index
    %223 = memref.load %arg23[%c0_121] : memref<1xf32, #tpu.memory_space<smem>>
    %224 = vector.broadcast %223 : f32 to vector<8x1xf32>
    %225 = arith.addf %222, %224 : vector<8x1xf32>
    %226 = arith.negf %225 : vector<8x1xf32>
    %227 = math.exp %226 : vector<8x1xf32>
    %cst_122 = arith.constant 1.000000e+00 : f32
    %228 = vector.broadcast %cst_122 : f32 to vector<8x1xf32>
    %229 = arith.addf %228, %227 : vector<8x1xf32>
    %230 = arith.divf %228, %229 : vector<8x1xf32>
    %231 = vector.broadcast %230 : vector<8x1xf32> to vector<8x32xf32>
    %232 = arith.mulf %231, %149 : vector<8x32xf32>
    %cst_123 = arith.constant 1.000000e+00 : f32
    %233 = vector.broadcast %cst_123 : f32 to vector<8x1xf32>
    %234 = arith.subf %233, %230 : vector<8x1xf32>
    %235 = vector.broadcast %234 : vector<8x1xf32> to vector<8x32xf32>
    %236 = arith.mulf %235, %169 : vector<8x32xf32>
    %237 = arith.addf %232, %236 : vector<8x32xf32>
    %238 = arith.truncf %237 : vector<8x32xf32> to vector<8x32xbf16>
    %c0_124 = arith.constant 0 : index
    %c0_125 = arith.constant 0 : index
    %239 = vector.load %arg19[%c0_124, %c0_125] : memref<32x32xbf16, #tpu.memory_space<vmem>>, vector<32x32xbf16>
    %cst_126 = arith.constant dense<0.000000e+00> : vector<8x32xf32>
    %240 = tpu.matmul %238, %239, %cst_126 {dimension_numbers = #tpu.dot_dimension_numbers<[1], [0], [0], [1], [0, 0, 1, 1], [], []>} : vector<8x32xbf16>, vector<32x32xbf16>, vector<8x32xf32> -> vector<8x32xf32>
    %241 = arith.truncf %201 : vector<8x32xf32> to vector<8x32xbf16>
    %c0_127 = arith.constant 0 : index
    %c0_128 = arith.constant 0 : index
    %242 = vector.load %arg20[%c0_127, %c0_128] : memref<32x32xbf16, #tpu.memory_space<vmem>>, vector<32x32xbf16>
    %cst_129 = arith.constant dense<0.000000e+00> : vector<8x32xf32>
    %243 = tpu.matmul %241, %242, %cst_129 {dimension_numbers = #tpu.dot_dimension_numbers<[1], [0], [0], [1], [0, 0, 1, 1], [], []>} : vector<8x32xbf16>, vector<32x32xbf16>, vector<8x32xf32> -> vector<8x32xf32>
    %244 = arith.addf %240, %243 : vector<8x32xf32>
    %c0_130 = arith.constant 0 : index
    %c0_131 = arith.constant 0 : index
    %245 = vector.load %arg21[%c0_130, %c0_131] : memref<1x32xf32, #tpu.memory_space<vmem>>, vector<1x32xf32>
    %246 = vector.broadcast %245 : vector<1x32xf32> to vector<8x32xf32>
    %247 = arith.addf %244, %246 : vector<8x32xf32>
    %248 = arith.negf %247 : vector<8x32xf32>
    %249 = math.exp %248 : vector<8x32xf32>
    %cst_132 = arith.constant 1.000000e+00 : f32
    %250 = vector.broadcast %cst_132 : f32 to vector<8x32xf32>
    %251 = arith.addf %250, %249 : vector<8x32xf32>
    %252 = arith.divf %250, %251 : vector<8x32xf32>
    %253 = arith.mulf %247, %252 : vector<8x32xf32>
    %c0_133 = arith.constant 0 : index
    %c0_134 = arith.constant 0 : index
    %254 = vector.load %arg22[%c0_133, %c0_134] : memref<1x32xf32, #tpu.memory_space<vmem>>, vector<1x32xf32>
    %255 = vector.broadcast %254 : vector<1x32xf32> to vector<8x32xf32>
    %256 = arith.mulf %253, %255 : vector<8x32xf32>
    %cst_135 = arith.constant dense<0.000000e+00> : vector<8xf32>
    %257 = vector.multi_reduction <add>, %256, %cst_135 [1] : vector<8x32xf32> to vector<8xf32>
    %258 = vector.shape_cast %257 : vector<8xf32> to vector<8x1xf32>
    %c0_136 = arith.constant 0 : index
    %259 = memref.load %arg23[%c0_136] : memref<1xf32, #tpu.memory_space<smem>>
    %260 = vector.broadcast %259 : f32 to vector<8x1xf32>
    %261 = arith.addf %258, %260 : vector<8x1xf32>
    %262 = arith.negf %261 : vector<8x1xf32>
    %263 = math.exp %262 : vector<8x1xf32>
    %cst_137 = arith.constant 1.000000e+00 : f32
    %264 = vector.broadcast %cst_137 : f32 to vector<8x1xf32>
    %265 = arith.addf %264, %263 : vector<8x1xf32>
    %266 = arith.divf %264, %265 : vector<8x1xf32>
    %267 = vector.broadcast %266 : vector<8x1xf32> to vector<8x32xf32>
    %268 = arith.mulf %267, %237 : vector<8x32xf32>
    %cst_138 = arith.constant 1.000000e+00 : f32
    %269 = vector.broadcast %cst_138 : f32 to vector<8x1xf32>
    %270 = arith.subf %269, %266 : vector<8x1xf32>
    %271 = vector.broadcast %270 : vector<8x1xf32> to vector<8x32xf32>
    %272 = arith.mulf %271, %201 : vector<8x32xf32>
    %273 = arith.addf %268, %272 : vector<8x32xf32>
    %cst_139 = arith.constant 0.000000e+00 : f32
    %274 = vector.broadcast %cst_139 : f32 to vector<8x32xf32>
    %275 = arith.maximumf %273, %274 : vector<8x32xf32>
    %c0_140 = arith.constant 0 : index
    %c0_141 = arith.constant 0 : index
    %276 = vector.load %arg11[%c0_140, %c0_141] : memref<1x32xf32, #tpu.memory_space<vmem>>, vector<1x32xf32>
    %c0_142 = arith.constant 0 : index
    %c0_143 = arith.constant 0 : index
    %277 = vector.load %arg12[%c0_142, %c0_143] : memref<1x32xf32, #tpu.memory_space<vmem>>, vector<1x32xf32>
    %cst_144 = arith.constant dense<0.000000e+00> : vector<8xf32>
    %278 = vector.multi_reduction <add>, %275, %cst_144 [1] : vector<8x32xf32> to vector<8xf32>
    %279 = vector.shape_cast %278 : vector<8xf32> to vector<8x1xf32>
    %cst_145 = arith.constant 3.200000e+01 : f32
    %280 = vector.broadcast %cst_145 : f32 to vector<8x1xf32>
    %281 = arith.divf %279, %280 : vector<8x1xf32>
    %282 = vector.broadcast %281 : vector<8x1xf32> to vector<8x32xf32>
    %283 = arith.subf %275, %282 : vector<8x32xf32>
    %284 = arith.mulf %283, %283 : vector<8x32xf32>
    %cst_146 = arith.constant dense<0.000000e+00> : vector<8xf32>
    %285 = vector.multi_reduction <add>, %284, %cst_146 [1] : vector<8x32xf32> to vector<8xf32>
    %286 = vector.shape_cast %285 : vector<8xf32> to vector<8x1xf32>
    %cst_147 = arith.constant 3.200000e+01 : f32
    %287 = vector.broadcast %cst_147 : f32 to vector<8x1xf32>
    %288 = arith.divf %286, %287 : vector<8x1xf32>
    %289 = vector.broadcast %281 : vector<8x1xf32> to vector<8x32xf32>
    %290 = arith.subf %275, %289 : vector<8x32xf32>
    %cst_148 = arith.constant 9.99999974E-6 : f32
    %291 = vector.broadcast %cst_148 : f32 to vector<8x1xf32>
    %292 = arith.addf %288, %291 : vector<8x1xf32>
    %293 = math.rsqrt %292 : vector<8x1xf32>
    %294 = vector.broadcast %293 : vector<8x1xf32> to vector<8x32xf32>
    %295 = arith.mulf %290, %294 : vector<8x32xf32>
    %296 = vector.broadcast %276 : vector<1x32xf32> to vector<8x32xf32>
    %297 = arith.mulf %295, %296 : vector<8x32xf32>
    %298 = vector.broadcast %277 : vector<1x32xf32> to vector<8x32xf32>
    %299 = arith.addf %297, %298 : vector<8x32xf32>
    %c0_149 = arith.constant 0 : index
    %c0_150 = arith.constant 0 : index
    %c0_151 = arith.constant 0 : index
    %300 = vector.load %arg24[%c0_149, %c0_150, %c0_151] : memref<1x8x32xf32, #tpu.memory_space<vmem>>, vector<1x8x32xf32>
    %301 = vector.shape_cast %300 : vector<1x8x32xf32> to vector<8x32xf32>
    %302 = vector.shape_cast %299 : vector<8x32xf32> to vector<1x8x32xf32>
    tpu.vector_store %arg24[%c0_149, %c0_150, %c0_151], %302 {strides = array<i32>} : memref<1x8x32xf32, #tpu.memory_space<vmem>>, vector<1x8x32xf32>,
    return
  }
  func.func @transform_0(%arg0: i32) -> (i32, i32, i32) {
    %c0_i32 = arith.constant 0 : i32
    %c0_i32_0 = arith.constant 0 : i32
    %c0_i32_1 = arith.constant 0 : i32
    return %arg0, %c0_i32, %c0_i32_0 : i32, i32, i32
  }
  func.func @transform_1(%arg0: i32) -> (i32, i32, i32) {
    %c0_i32 = arith.constant 0 : i32
    %c0_i32_0 = arith.constant 0 : i32
    %c0_i32_1 = arith.constant 0 : i32
    return %arg0, %c0_i32, %c0_i32_0 : i32, i32, i32
  }
  func.func @transform_2(%arg0: i32) -> (i32, i32) {
    %c0_i32 = arith.constant 0 : i32
    %c0_i32_0 = arith.constant 0 : i32
    %c0_i32_1 = arith.constant 0 : i32
    return %c0_i32, %c0_i32_0 : i32, i32
  }
  func.func @transform_3(%arg0: i32) -> (i32, i32) {
    %c0_i32 = arith.constant 0 : i32
    %c0_i32_0 = arith.constant 0 : i32
    %c0_i32_1 = arith.constant 0 : i32
    return %c0_i32, %c0_i32_0 : i32, i32
  }
  func.func @transform_4(%arg0: i32) -> (i32, i32) {
    %c0_i32 = arith.constant 0 : i32
    %c0_i32_0 = arith.constant 0 : i32
    %c0_i32_1 = arith.constant 0 : i32
    return %c0_i32, %c0_i32_0 : i32, i32
  }
  func.func @transform_5(%arg0: i32) -> (i32, i32) {
    %c0_i32 = arith.constant 0 : i32
    %c0_i32_0 = arith.constant 0 : i32
    %c0_i32_1 = arith.constant 0 : i32
    return %c0_i32, %c0_i32_0 : i32, i32
  }
  func.func @transform_6(%arg0: i32) -> (i32, i32) {
    %c0_i32 = arith.constant 0 : i32
    %c0_i32_0 = arith.constant 0 : i32
    %c0_i32_1 = arith.constant 0 : i32
    return %c0_i32, %c0_i32_0 : i32, i32
  }
  func.func @transform_7(%arg0: i32) -> (i32, i32) {
    %c0_i32 = arith.constant 0 : i32
    %c0_i32_0 = arith.constant 0 : i32
    %c0_i32_1 = arith.constant 0 : i32
    return %c0_i32, %c0_i32_0 : i32, i32
  }
  func.func @transform_8(%arg0: i32) -> (i32, i32) {
    %c0_i32 = arith.constant 0 : i32
    %c0_i32_0 = arith.constant 0 : i32
    %c0_i32_1 = arith.constant 0 : i32
    return %c0_i32, %c0_i32_0 : i32, i32
  }
  func.func @transform_9(%arg0: i32) -> (i32, i32) {
    %c0_i32 = arith.constant 0 : i32
    %c0_i32_0 = arith.constant 0 : i32
    %c0_i32_1 = arith.constant 0 : i32
    return %c0_i32, %c0_i32_0 : i32, i32
  }
  func.func @transform_10(%arg0: i32) -> (i32, i32) {
    %c0_i32 = arith.constant 0 : i32
    %c0_i32_0 = arith.constant 0 : i32
    %c0_i32_1 = arith.constant 0 : i32
    return %c0_i32, %c0_i32_0 : i32, i32
  }
  func.func @transform_11(%arg0: i32) -> (i32, i32) {
    %c0_i32 = arith.constant 0 : i32
    %c0_i32_0 = arith.constant 0 : i32
    %c0_i32_1 = arith.constant 0 : i32
    return %c0_i32, %c0_i32_0 : i32, i32
  }
  func.func @transform_12(%arg0: i32) -> (i32, i32) {
    %c0_i32 = arith.constant 0 : i32
    %c0_i32_0 = arith.constant 0 : i32
    %c0_i32_1 = arith.constant 0 : i32
    return %c0_i32, %c0_i32_0 : i32, i32
  }
  func.func @transform_13(%arg0: i32) -> (i32, i32) {
    %c0_i32 = arith.constant 0 : i32
    %c0_i32_0 = arith.constant 0 : i32
    %c0_i32_1 = arith.constant 0 : i32
    return %c0_i32, %c0_i32_0 : i32, i32
  }
  func.func @transform_14(%arg0: i32) -> (i32, i32, i32) {
    %c0_i32 = arith.constant 0 : i32
    %c0_i32_0 = arith.constant 0 : i32
    %c0_i32_1 = arith.constant 0 : i32
    %c0_i32_2 = arith.constant 0 : i32
    return %c0_i32, %c0_i32_0, %c0_i32_1 : i32, i32, i32
  }
  func.func @transform_15(%arg0: i32) -> (i32, i32) {
    %c0_i32 = arith.constant 0 : i32
    %c0_i32_0 = arith.constant 0 : i32
    %c0_i32_1 = arith.constant 0 : i32
    return %c0_i32, %c0_i32_0 : i32, i32
  }
  func.func @transform_16(%arg0: i32) -> (i32, i32, i32) {
    %c0_i32 = arith.constant 0 : i32
    %c0_i32_0 = arith.constant 0 : i32
    %c0_i32_1 = arith.constant 0 : i32
    %c0_i32_2 = arith.constant 0 : i32
    return %c0_i32, %c0_i32_0, %c0_i32_1 : i32, i32, i32
  }
  func.func @transform_17(%arg0: i32) -> (i32, i32) {
    %c0_i32 = arith.constant 0 : i32
    %c0_i32_0 = arith.constant 0 : i32
    %c0_i32_1 = arith.constant 0 : i32
    return %c0_i32, %c0_i32_0 : i32, i32
  }
  func.func @transform_18(%arg0: i32) -> (i32, i32) {
    %c0_i32 = arith.constant 0 : i32
    %c0_i32_0 = arith.constant 0 : i32
    %c0_i32_1 = arith.constant 0 : i32
    return %c0_i32, %c0_i32_0 : i32, i32
  }
  func.func @transform_19(%arg0: i32) -> (i32, i32) {
    %c0_i32 = arith.constant 0 : i32
    %c0_i32_0 = arith.constant 0 : i32
    %c0_i32_1 = arith.constant 0 : i32
    return %c0_i32, %c0_i32_0 : i32, i32
  }
  func.func @transform_20(%arg0: i32) -> (i32, i32) {
    %c0_i32 = arith.constant 0 : i32
    %c0_i32_0 = arith.constant 0 : i32
    %c0_i32_1 = arith.constant 0 : i32
    return %c0_i32, %c0_i32_0 : i32, i32
  }
  func.func @transform_21(%arg0: i32) -> (i32, i32) {
    %c0_i32 = arith.constant 0 : i32
    %c0_i32_0 = arith.constant 0 : i32
    %c0_i32_1 = arith.constant 0 : i32
    return %c0_i32, %c0_i32_0 : i32, i32
  }
  func.func @transform_22(%arg0: i32) -> i32 {
    %c0_i32 = arith.constant 0 : i32
    %c0_i32_0 = arith.constant 0 : i32
    return %c0_i32 : i32
  }
  func.func @transform_23(%arg0: i32) -> (i32, i32, i32) {
    %c0_i32 = arith.constant 0 : i32
    %c0_i32_0 = arith.constant 0 : i32
    %c0_i32_1 = arith.constant 0 : i32
    return %arg0, %c0_i32, %c0_i32_0 : i32, i32, i32
  }
}

</mosaic_0001>

<llo_original>
// kernel: tpu_custom_call.1
$region0: #{tpu_custom_call.1}
  #allocation0 [shape = 'u32[]', space=smem, size = 0x4, offset = 0x4, fixed_abs, tag = 'smem constant byte address 0x4 - core index']
  #allocation1 [shape = 'u32[144,128]{1,0:T(1,128)}', space=vmem, size = 0x12000, scoped, tag = 'internal scratch']
  #allocation2 [shape = 'f32[12,32]{1,0:T(8,128)}', space=vmem, size = 0x2000, scoped, tag = 'scratch operand']
  #allocation3 [shape = 'f32[1]{0:T(128)S(6)}', space=smem, size = 0x200, scoped, tag = 'scoped memory for tpu_custom_call.1']
  %s0 = inlined_call_operand.hbm [shape: f32[2,8,32], index: 0, kind: input, shape index: {}]
  %s1 = inlined_call_operand.hbm [shape: f32[2,8,32], index: 1, kind: input, shape index: {}]
  %s2 = inlined_call_operand.hbm [shape: bf16[32,32], index: 2, kind: input, shape index: {}]
  %s3 = inlined_call_operand.hbm [shape: f32[1,32], index: 3, kind: input, shape index: {}]
  %s4 = inlined_call_operand.hbm [shape: bf16[32,32], index: 4, kind: input, shape index: {}]
  %s5 = inlined_call_operand.hbm [shape: f32[1,32], index: 5, kind: input, shape index: {}]
  %s6 = inlined_call_operand.hbm [shape: bf16[32,32], index: 6, kind: input, shape index: {}]
  %s7 = inlined_call_operand.hbm [shape: f32[1,32], index: 7, kind: input, shape index: {}]
  %s8 = inlined_call_operand.hbm [shape: bf16[32,32], index: 8, kind: input, shape index: {}]
  %s9 = inlined_call_operand.hbm [shape: f32[1,32], index: 9, kind: input, shape index: {}]
  %s10 = inlined_call_operand.hbm [shape: f32[1,32], index: 10, kind: input, shape index: {}]
  %s11 = inlined_call_operand.hbm [shape: f32[1,32], index: 11, kind: input, shape index: {}]
  %s12 = inlined_call_operand.hbm [shape: bf16[32,32], index: 12, kind: input, shape index: {}]
  %s13 = inlined_call_operand.hbm [shape: f32[1,32], index: 13, kind: input, shape index: {}]
  %s14 = inlined_call_operand.vmem [shape: bf16[3,32,32], index: 14, kind: input, shape index: {}]
  %s15 = inlined_call_operand.hbm [shape: f32[1,32], index: 15, kind: input, shape index: {}]
  %s16 = inlined_call_operand.hbm [shape: bf16[5,32,32], index: 16, kind: input, shape index: {}]
  %s17 = inlined_call_operand.vmem [shape: f32[1,32], index: 17, kind: input, shape index: {}]
  %s18 = inlined_call_operand.vmem [shape: bf16[32,32], index: 18, kind: input, shape index: {}]
  %s19 = inlined_call_operand.hbm [shape: bf16[32,32], index: 19, kind: input, shape index: {}]
  %s20 = inlined_call_operand.vmem [shape: f32[1,32], index: 20, kind: input, shape index: {}]
  %s21 = inlined_call_operand.vmem [shape: f32[1,32], index: 21, kind: input, shape index: {}]
  %s22 = inlined_call_operand.<no memory space> [shape: f32[1], index: 22, kind: input, shape index: {}]
  %s23 = inlined_call_operand.hbm [shape: f32[2,8,32], index: 23, kind: output, shape index: {}]
  %s24 = sld [smem:[#allocation0]]
  $region193: #{tpu_custom_call.1} parent=0
    _
  %s26 = ssub.s32 1, %s24
  %s27 = scalar_select 0, %s26, %s24
  %28 = sst [smem:[#allocation3]] %s22
  $region1: #{tpu_custom_call.1} parent=0
    #allocation4 [shape = 'u8[8192]{0}', space=vmem, size = 0x2000, scoped, tag = 'input window, operand 0']
    #allocation5 [shape = 's32[2]{0}', space=sflag, size = 0x8, scoped, tag = 'scoped memory for tpu_custom_call.1']
    #allocation6 [shape = 's32[2]{0}', space=sflag, size = 0x8, scoped, tag = 'scoped memory for tpu_custom_call.1']
    #allocation7 [shape = 'u8[8192]{0}', space=vmem, size = 0x2000, scoped, tag = 'input window, operand 1']
    #allocation8 [shape = 's32[2]{0}', space=sflag, size = 0x8, scoped, tag = 'scoped memory for tpu_custom_call.1']
    #allocation9 [shape = 'u8[8192]{0}', space=vmem, size = 0x2000, scoped, tag = 'input window, operand 2, single buffered']
    #allocation10 [shape = 'u8[512]{0}', space=vmem, size = 0x400, scoped, tag = 'input window, operand 3, single buffered']
    #allocation11 [shape = 's32[1]{0}', space=sflag, size = 0x4, scoped, tag = 'scoped memory for tpu_custom_call.1']
    #allocation12 [shape = 'u8[8192]{0}', space=vmem, size = 0x2000, scoped, tag = 'input window, operand 4, single buffered']
    #allocation13 [shape = 'u8[512]{0}', space=vmem, size = 0x400, scoped, tag = 'input window, operand 5, single buffered']
    #allocation14 [shape = 's32[1]{0}', space=sflag, size = 0x4, scoped, tag = 'scoped memory for tpu_custom_call.1']
    #allocation15 [shape = 'u8[8192]{0}', space=vmem, size = 0x2000, scoped, tag = 'input window, operand 6, single buffered']
    #allocation16 [shape = 'u8[512]{0}', space=vmem, size = 0x400, scoped, tag = 'input window, operand 7, single buffered']
    #allocation17 [shape = 's32[1]{0}', space=sflag, size = 0x4, scoped, tag = 'scoped memory for tpu_custom_call.1']
    #allocation18 [shape = 'u8[8192]{0}', space=vmem, size = 0x2000, scoped, tag = 'input window, operand 8, single buffered']
    #allocation19 [shape = 'u8[512]{0}', space=vmem, size = 0x400, scoped, tag = 'input window, operand 9, single buffered']
    #allocation20 [shape = 's32[1]{0}', space=sflag, size = 0x4, scoped, tag = 'scoped memory for tpu_custom_call.1']
    #allocation21 [shape = 'u8[512]{0}', space=vmem, size = 0x400, scoped, tag = 'input window, operand 10, single buffered']
    #allocation22 [shape = 'u8[512]{0}', space=vmem, size = 0x400, scoped, tag = 'input window, operand 11, single buffered']
    #allocation23 [shape = 's32[1]{0}', space=sflag, size = 0x4, scoped, tag = 'scoped memory for tpu_custom_call.1']
    #allocation24 [shape = 'u8[8192]{0}', space=vmem, size = 0x2000, scoped, tag = 'input window, operand 12, single buffered']
    #allocation25 [shape = 'u8[512]{0}', space=vmem, size = 0x400, scoped, tag = 'input window, operand 13, single buffered']
    #allocation26 [shape = 's32[1]{0}', space=sflag, size = 0x4, scoped, tag = 'scoped memory for tpu_custom_call.1']
    #allocation27 [shape = 'u8[512]{0}', space=vmem, size = 0x400, scoped, tag = 'input window, operand 15, single buffered']
    #allocation28 [shape = 'u8[40960]{0}', space=vmem, size = 0xa000, scoped, tag = 'input window, operand 16, single buffered']
    #allocation29 [shape = 's32[1]{0}', space=sflag, size = 0x4, scoped, tag = 'scoped memory for tpu_custom_call.1']
    #allocation30 [shape = 'u8[8192]{0}', space=vmem, size = 0x2000, scoped, tag = 'input window, operand 19, single buffered']
    #allocation31 [shape = 'u8[8192]{0}', space=vmem, size = 0x2000, scoped, tag = 'output window, operand 0']
    %29 = vsyncpa [#allocation5], 0
    %s30 = scalar_lea.sflag [#allocation5], 1
    %31 = vsyncpa %s30, 0
    %32 = vsyncpa [#allocation8], 0
    %s33 = scalar_lea.sflag [#allocation8], 1
    %34 = vsyncpa %s33, 0
    %35 = vsyncpa [#allocation11], 0
    %36 = vsyncpa [#allocation14], 0
    %37 = vsyncpa [#allocation17], 0
    %38 = vsyncpa [#allocation20], 0
    %39 = vsyncpa [#allocation23], 0
    %40 = vsyncpa [#allocation26], 0
    %41 = vsyncpa [#allocation29], 0
    %42 = vsyncpa [#allocation6], 0
    %s43 = scalar_lea.sflag [#allocation6], 1
    %44 = vsyncpa %s43, 0
    loop: start=0, step=1, limit=4
    $region2: #{tpu_custom_call.1} parent=1 // loop_pre_header
      _
    $region3: #{tpu_custom_call.1} parent=1 // loop_header
      %s46 = sphi 0, %s50
      %p47 = scmp.ge.s32.totalorder %s46, 4
      %s56 = sphi 0, %s58
      %s59 = sphi 0, %s56
      %s60 = sphi 0, %s59
      %s76 = sphi 0, %s60
      %s82 = sphi 0, %s84
      %s85 = sphi 0, %s82
      %s86 = sphi 0, %s85
      %s102 = sphi 0, %s86
      %s106 = sphi 0, %s106
      %s108 = sphi 0, %s106
      %s109 = sphi 0, %s108
      %s123 = sphi 0, %s109
      %s127 = sphi 0, %s127
      %s129 = sphi 0, %s127
      %s130 = sphi 0, %s129
      %s144 = sphi 0, %s130
      %s148 = sphi 0, %s148
      %s150 = sphi 0, %s148
      %s151 = sphi 0, %s150
      %s165 = sphi 0, %s151
      %s169 = sphi 0, %s169
      %s171 = sphi 0, %s169
      %s172 = sphi 0, %s171
      %s186 = sphi 0, %s172
      %s190 = sphi 0, %s190
      %s192 = sphi 0, %s190
      %s193 = sphi 0, %s192
      %s207 = sphi 0, %s193
      %s211 = sphi 0, %s211
      %s213 = sphi 0, %s211
      %s214 = sphi 0, %s213
      %s228 = sphi 0, %s214
      %s232 = sphi 0, %s232
      %s234 = sphi 0, %s232
      %s235 = sphi 0, %s234
      %s249 = sphi 0, %s235
      %s253 = sphi 0, %s253
      %s255 = sphi 0, %s253
      %s256 = sphi 0, %s255
      %s270 = sphi 0, %s256
      %s274 = sphi 0, %s274
      %s276 = sphi 0, %s274
      %s277 = sphi 0, %s276
      %s291 = sphi 0, %s277
      %s295 = sphi 0, %s295
      %s297 = sphi 0, %s295
      %s298 = sphi 0, %s297
      %s312 = sphi 0, %s298
      %s316 = sphi 0, %s316
      %s318 = sphi 0, %s316
      %s319 = sphi 0, %s318
      %s333 = sphi 0, %s319
      %s337 = sphi 0, %s337
      %s339 = sphi 0, %s337
      %s340 = sphi 0, %s339
      %s354 = sphi 0, %s340
      %s358 = sphi 0, %s358
      %s360 = sphi 0, %s358
      %s361 = sphi 0, %s360
      %s375 = sphi 0, %s361
      %s379 = sphi 0, %s379
      %s381 = sphi 0, %s379
      %s382 = sphi 0, %s381
      %s396 = sphi 0, %s382
      %s400 = sphi 0, %s400
      %s402 = sphi 0, %s400
      %s403 = sphi 0, %s402
      %s417 = sphi 0, %s403
      %s421 = sphi 0, %s421
      %s423 = sphi 0, %s421
      %s424 = sphi 0, %s423
      %s438 = sphi 0, %s424
      %s442 = sphi 0, %s442
      %s444 = sphi 0, %s442
      %s445 = sphi 0, %s444
      %s459 = sphi 0, %s445
      %s463 = sphi 0, %s463
      %s465 = sphi 0, %s463
      %s466 = sphi 0, %s465
      %s480 = sphi 0, %s466
      %s484 = sphi 0, %s484
      %s486 = sphi 0, %s484
      %s487 = sphi 0, %s486
      %s501 = sphi 0, %s487
      %s505 = sphi 0, %s505
      %s507 = sphi 0, %s505
      %s508 = sphi 0, %s507
      %s522 = sphi 0, %s508
      %s526 = sphi 0, %s526
      %s528 = sphi 0, %s526
      %s529 = sphi 0, %s528
      %s543 = sphi 0, %s529
      %s549 = sphi 0, %s551
      %s552 = sphi 0, %s549
      %s553 = sphi 0, %s552
      %s569 = sphi 0, %s553
    $region4: #{tpu_custom_call.1} parent=1 // loop_header_branch
      %49 = sbr.rel (%p47) target = $region8
    $region5: #{tpu_custom_call.1} parent=1 // loop_body
      %s51 = ssub.s32 %s46, 1
      %s52 = ssub.s32 %s46, 2
      %s53 = sadd.s32 %s46, 1
      %s54 = ssub.s32 %s46, %s53
      %p55 = scmp.eq.s32.totalorder %s54, 0
      %s57 = sadd.s32 %s56, 1
      %s58 = scalar_select %p55, %s56, %s57
      %p61 = pneg %p55
      %p62 = scmp.eq.s32.totalorder %s46, 1
      %p63 = por %p61, %p62
      %p64 = scmp.ne.s32.totalorder %s56, %s59
      %p65 = scmp.eq.s32.totalorder %s46, 0
      %p66 = por %p64, %p65
      %p67 = scmp.ne.s32.totalorder %s56, %s59
      %p68 = scmp.eq.s32.totalorder %s51, 1
      %p69 = por %p67, %p68
      %p70 = scmp.ne.s32.totalorder %s59, %s60
      %p71 = scmp.eq.s32.totalorder %s51, 0
      %p72 = por %p70, %p71
      %p73 = scmp.ne.s32.totalorder %s59, %s60
      %p74 = scmp.eq.s32.totalorder %s52, 1
      %p75 = por %p73, %p74
      %p77 = scmp.ne.s32.totalorder %s60, %s76
      %p78 = scmp.eq.s32.totalorder %s52, 0
      %p79 = por %p77, %p78
      %s80 = ssub.s32 %s46, %s53
      %p81 = scmp.eq.s32.totalorder %s80, 0
      %s83 = sadd.s32 %s82, 1
      %s84 = scalar_select %p81, %s82, %s83
      %p87 = pneg %p81
      %p88 = scmp.eq.s32.totalorder %s46, 1
      %p89 = por %p87, %p88
      %p90 = scmp.ne.s32.totalorder %s82, %s85
      %p91 = scmp.eq.s32.totalorder %s46, 0
      %p92 = por %p90, %p91
      %p93 = scmp.ne.s32.totalorder %s82, %s85
      %p94 = scmp.eq.s32.totalorder %s51, 1
      %p95 = por %p93, %p94
      %p96 = scmp.ne.s32.totalorder %s85, %s86
      %p97 = scmp.eq.s32.totalorder %s51, 0
      %p98 = por %p96, %p97
      %p99 = scmp.ne.s32.totalorder %s85, %s86
      %p100 = scmp.eq.s32.totalorder %s52, 1
      %p101 = por %p99, %p100
      %p103 = scmp.ne.s32.totalorder %s86, %s102
      %p104 = scmp.eq.s32.totalorder %s52, 0
      %p105 = por %p103, %p104
      %s107 = sadd.s32 %s106, 1
      %p110 = scmp.eq.s32.totalorder %s46, 1
      %p111 = scmp.ne.s32.totalorder %s106, %s108
      %p112 = scmp.eq.s32.totalorder %s46, 0
      %p113 = por %p111, %p112
      %p114 = scmp.ne.s32.totalorder %s106, %s108
      %p115 = scmp.eq.s32.totalorder %s51, 1
      %p116 = por %p114, %p115
      %p117 = scmp.ne.s32.totalorder %s108, %s109
      %p118 = scmp.eq.s32.totalorder %s51, 0
      %p119 = por %p117, %p118
      %p120 = scmp.ne.s32.totalorder %s108, %s109
      %p121 = scmp.eq.s32.totalorder %s52, 1
      %p122 = por %p120, %p121
      %p124 = scmp.ne.s32.totalorder %s109, %s123
      %p125 = scmp.eq.s32.totalorder %s52, 0
      %p126 = por %p124, %p125
      %s128 = sadd.s32 %s127, 1
      %p131 = scmp.eq.s32.totalorder %s46, 1
      %p132 = scmp.ne.s32.totalorder %s127, %s129
      %p133 = scmp.eq.s32.totalorder %s46, 0
      %p134 = por %p132, %p133
      %p135 = scmp.ne.s32.totalorder %s127, %s129
      %p136 = scmp.eq.s32.totalorder %s51, 1
      %p137 = por %p135, %p136
      %p138 = scmp.ne.s32.totalorder %s129, %s130
      %p139 = scmp.eq.s32.totalorder %s51, 0
      %p140 = por %p138, %p139
      %p141 = scmp.ne.s32.totalorder %s129, %s130
      %p142 = scmp.eq.s32.totalorder %s52, 1
      %p143 = por %p141, %p142
      %p145 = scmp.ne.s32.totalorder %s130, %s144
      %p146 = scmp.eq.s32.totalorder %s52, 0
      %p147 = por %p145, %p146
      %s149 = sadd.s32 %s148, 1
      %p152 = scmp.eq.s32.totalorder %s46, 1
      %p153 = scmp.ne.s32.totalorder %s148, %s150
      %p154 = scmp.eq.s32.totalorder %s46, 0
      %p155 = por %p153, %p154
      %p156 = scmp.ne.s32.totalorder %s148, %s150
      %p157 = scmp.eq.s32.totalorder %s51, 1
      %p158 = por %p156, %p157
      %p159 = scmp.ne.s32.totalorder %s150, %s151
      %p160 = scmp.eq.s32.totalorder %s51, 0
      %p161 = por %p159, %p160
      %p162 = scmp.ne.s32.totalorder %s150, %s151
      %p163 = scmp.eq.s32.totalorder %s52, 1
      %p164 = por %p162, %p163
      %p166 = scmp.ne.s32.totalorder %s151, %s165
      %p167 = scmp.eq.s32.totalorder %s52, 0
      %p168 = por %p166, %p167
      %s170 = sadd.s32 %s169, 1
      %p173 = scmp.eq.s32.totalorder %s46, 1
      %p174 = scmp.ne.s32.totalorder %s169, %s171
      %p175 = scmp.eq.s32.totalorder %s46, 0
      %p176 = por %p174, %p175
      %p177 = scmp.ne.s32.totalorder %s169, %s171
      %p178 = scmp.eq.s32.totalorder %s51, 1
      %p179 = por %p177, %p178
      %p180 = scmp.ne.s32.totalorder %s171, %s172
      %p181 = scmp.eq.s32.totalorder %s51, 0
      %p182 = por %p180, %p181
      %p183 = scmp.ne.s32.totalorder %s171, %s172
      %p184 = scmp.eq.s32.totalorder %s52, 1
      %p185 = por %p183, %p184
      %p187 = scmp.ne.s32.totalorder %s172, %s186
      %p188 = scmp.eq.s32.totalorder %s52, 0
      %p189 = por %p187, %p188
      %s191 = sadd.s32 %s190, 1
      %p194 = scmp.eq.s32.totalorder %s46, 1
      %p195 = scmp.ne.s32.totalorder %s190, %s192
      %p196 = scmp.eq.s32.totalorder %s46, 0
      %p197 = por %p195, %p196
      %p198 = scmp.ne.s32.totalorder %s190, %s192
      %p199 = scmp.eq.s32.totalorder %s51, 1
      %p200 = por %p198, %p199
      %p201 = scmp.ne.s32.totalorder %s192, %s193
      %p202 = scmp.eq.s32.totalorder %s51, 0
      %p203 = por %p201, %p202
      %p204 = scmp.ne.s32.totalorder %s192, %s193
      %p205 = scmp.eq.s32.totalorder %s52, 1
      %p206 = por %p204, %p205
      %p208 = scmp.ne.s32.totalorder %s193, %s207
      %p209 = scmp.eq.s32.totalorder %s52, 0
      %p210 = por %p208, %p209
      %s212 = sadd.s32 %s211, 1
      %p215 = scmp.eq.s32.totalorder %s46, 1
      %p216 = scmp.ne.s32.totalorder %s211, %s213
      %p217 = scmp.eq.s32.totalorder %s46, 0
      %p218 = por %p216, %p217
      %p219 = scmp.ne.s32.totalorder %s211, %s213
      %p220 = scmp.eq.s32.totalorder %s51, 1
      %p221 = por %p219, %p220
      %p222 = scmp.ne.s32.totalorder %s213, %s214
      %p223 = scmp.eq.s32.totalorder %s51, 0
      %p224 = por %p222, %p223
      %p225 = scmp.ne.s32.totalorder %s213, %s214
      %p226 = scmp.eq.s32.totalorder %s52, 1
      %p227 = por %p225, %p226
      %p229 = scmp.ne.s32.totalorder %s214, %s228
      %p230 = scmp.eq.s32.totalorder %s52, 0
      %p231 = por %p229, %p230
      %s233 = sadd.s32 %s232, 1
      %p236 = scmp.eq.s32.totalorder %s46, 1
      %p237 = scmp.ne.s32.totalorder %s232, %s234
      %p238 = scmp.eq.s32.totalorder %s46, 0
      %p239 = por %p237, %p238
      %p240 = scmp.ne.s32.totalorder %s232, %s234
      %p241 = scmp.eq.s32.totalorder %s51, 1
      %p242 = por %p240, %p241
      %p243 = scmp.ne.s32.totalorder %s234, %s235
      %p244 = scmp.eq.s32.totalorder %s51, 0
      %p245 = por %p243, %p244
      %p246 = scmp.ne.s32.totalorder %s234, %s235
      %p247 = scmp.eq.s32.totalorder %s52, 1
      %p248 = por %p246, %p247
      %p250 = scmp.ne.s32.totalorder %s235, %s249
      %p251 = scmp.eq.s32.totalorder %s52, 0
      %p252 = por %p250, %p251
      %s254 = sadd.s32 %s253, 1
      %p257 = scmp.eq.s32.totalorder %s46, 1
      %p258 = scmp.ne.s32.totalorder %s253, %s255
      %p259 = scmp.eq.s32.totalorder %s46, 0
      %p260 = por %p258, %p259
      %p261 = scmp.ne.s32.totalorder %s253, %s255
      %p262 = scmp.eq.s32.totalorder %s51, 1
      %p263 = por %p261, %p262
      %p264 = scmp.ne.s32.totalorder %s255, %s256
      %p265 = scmp.eq.s32.totalorder %s51, 0
      %p266 = por %p264, %p265
      %p267 = scmp.ne.s32.totalorder %s255, %s256
      %p268 = scmp.eq.s32.totalorder %s52, 1
      %p269 = por %p267, %p268
      %p271 = scmp.ne.s32.totalorder %s256, %s270
      %p272 = scmp.eq.s32.totalorder %s52, 0
      %p273 = por %p271, %p272
      %s275 = sadd.s32 %s274, 1
      %p278 = scmp.eq.s32.totalorder %s46, 1
      %p279 = scmp.ne.s32.totalorder %s274, %s276
      %p280 = scmp.eq.s32.totalorder %s46, 0
      %p281 = por %p279, %p280
      %p282 = scmp.ne.s32.totalorder %s274, %s276
      %p283 = scmp.eq.s32.totalorder %s51, 1
      %p284 = por %p282, %p283
      %p285 = scmp.ne.s32.totalorder %s276, %s277
      %p286 = scmp.eq.s32.totalorder %s51, 0
      %p287 = por %p285, %p286
      %p288 = scmp.ne.s32.totalorder %s276, %s277
      %p289 = scmp.eq.s32.totalorder %s52, 1
      %p290 = por %p288, %p289
      %p292 = scmp.ne.s32.totalorder %s277, %s291
      %p293 = scmp.eq.s32.totalorder %s52, 0
      %p294 = por %p292, %p293
      %s296 = sadd.s32 %s295, 1
      %p299 = scmp.eq.s32.totalorder %s46, 1
      %p300 = scmp.ne.s32.totalorder %s295, %s297
      %p301 = scmp.eq.s32.totalorder %s46, 0
      %p302 = por %p300, %p301
      %p303 = scmp.ne.s32.totalorder %s295, %s297
      %p304 = scmp.eq.s32.totalorder %s51, 1
      %p305 = por %p303, %p304
      %p306 = scmp.ne.s32.totalorder %s297, %s298
      %p307 = scmp.eq.s32.totalorder %s51, 0
      %p308 = por %p306, %p307
      %p309 = scmp.ne.s32.totalorder %s297, %s298
      %p310 = scmp.eq.s32.totalorder %s52, 1
      %p311 = por %p309, %p310
      %p313 = scmp.ne.s32.totalorder %s298, %s312
      %p314 = scmp.eq.s32.totalorder %s52, 0
      %p315 = por %p313, %p314
      %s317 = sadd.s32 %s316, 1
      %p320 = scmp.eq.s32.totalorder %s46, 1
      %p321 = scmp.ne.s32.totalorder %s316, %s318
      %p322 = scmp.eq.s32.totalorder %s46, 0
      %p323 = por %p321, %p322
      %p324 = scmp.ne.s32.totalorder %s316, %s318
      %p325 = scmp.eq.s32.totalorder %s51, 1
      %p326 = por %p324, %p325
      %p327 = scmp.ne.s32.totalorder %s318, %s319
      %p328 = scmp.eq.s32.totalorder %s51, 0
      %p329 = por %p327, %p328
      %p330 = scmp.ne.s32.totalorder %s318, %s319
      %p331 = scmp.eq.s32.totalorder %s52, 1
      %p332 = por %p330, %p331
      %p334 = scmp.ne.s32.totalorder %s319, %s333
      %p335 = scmp.eq.s32.totalorder %s52, 0
      %p336 = por %p334, %p335
      %s338 = sadd.s32 %s337, 1
      %p341 = scmp.eq.s32.totalorder %s46, 1
      %p342 = scmp.ne.s32.totalorder %s337, %s339
      %p343 = scmp.eq.s32.totalorder %s46, 0
      %p344 = por %p342, %p343
      %p345 = scmp.ne.s32.totalorder %s337, %s339
      %p346 = scmp.eq.s32.totalorder %s51, 1
      %p347 = por %p345, %p346
      %p348 = scmp.ne.s32.totalorder %s339, %s340
      %p349 = scmp.eq.s32.totalorder %s51, 0
      %p350 = por %p348, %p349
      %p351 = scmp.ne.s32.totalorder %s339, %s340
      %p352 = scmp.eq.s32.totalorder %s52, 1
      %p353 = por %p351, %p352
      %p355 = scmp.ne.s32.totalorder %s340, %s354
      %p356 = scmp.eq.s32.totalorder %s52, 0
      %p357 = por %p355, %p356
      %s359 = sadd.s32 %s358, 1
      %p362 = scmp.eq.s32.totalorder %s46, 1
      %p363 = scmp.ne.s32.totalorder %s358, %s360
      %p364 = scmp.eq.s32.totalorder %s46, 0
      %p365 = por %p363, %p364
      %p366 = scmp.ne.s32.totalorder %s358, %s360
      %p367 = scmp.eq.s32.totalorder %s51, 1
      %p368 = por %p366, %p367
      %p369 = scmp.ne.s32.totalorder %s360, %s361
      %p370 = scmp.eq.s32.totalorder %s51, 0
      %p371 = por %p369, %p370
      %p372 = scmp.ne.s32.totalorder %s360, %s361
      %p373 = scmp.eq.s32.totalorder %s52, 1
      %p374 = por %p372, %p373
      %p376 = scmp.ne.s32.totalorder %s361, %s375
      %p377 = scmp.eq.s32.totalorder %s52, 0
      %p378 = por %p376, %p377
      %s380 = sadd.s32 %s379, 1
      %p383 = scmp.eq.s32.totalorder %s46, 1
      %p384 = scmp.ne.s32.totalorder %s379, %s381
      %p385 = scmp.eq.s32.totalorder %s46, 0
      %p386 = por %p384, %p385
      %p387 = scmp.ne.s32.totalorder %s379, %s381
      %p388 = scmp.eq.s32.totalorder %s51, 1
      %p389 = por %p387, %p388
      %p390 = scmp.ne.s32.totalorder %s381, %s382
      %p391 = scmp.eq.s32.totalorder %s51, 0
      %p392 = por %p390, %p391
      %p393 = scmp.ne.s32.totalorder %s381, %s382
      %p394 = scmp.eq.s32.totalorder %s52, 1
      %p395 = por %p393, %p394
      %p397 = scmp.ne.s32.totalorder %s382, %s396
      %p398 = scmp.eq.s32.totalorder %s52, 0
      %p399 = por %p397, %p398
      %s401 = sadd.s32 %s400, 1
      %p404 = scmp.eq.s32.totalorder %s46, 1
      %p405 = scmp.ne.s32.totalorder %s400, %s402
      %p406 = scmp.eq.s32.totalorder %s46, 0
      %p407 = por %p405, %p406
      %p408 = scmp.ne.s32.totalorder %s400, %s402
      %p409 = scmp.eq.s32.totalorder %s51, 1
      %p410 = por %p408, %p409
      %p411 = scmp.ne.s32.totalorder %s402, %s403
      %p412 = scmp.eq.s32.totalorder %s51, 0
      %p413 = por %p411, %p412
      %p414 = scmp.ne.s32.totalorder %s402, %s403
      %p415 = scmp.eq.s32.totalorder %s52, 1
      %p416 = por %p414, %p415
      %p418 = scmp.ne.s32.totalorder %s403, %s417
      %p419 = scmp.eq.s32.totalorder %s52, 0
      %p420 = por %p418, %p419
      %s422 = sadd.s32 %s421, 1
      %p425 = scmp.eq.s32.totalorder %s46, 1
      %p426 = scmp.ne.s32.totalorder %s421, %s423
      %p427 = scmp.eq.s32.totalorder %s46, 0
      %p428 = por %p426, %p427
      %p429 = scmp.ne.s32.totalorder %s421, %s423
      %p430 = scmp.eq.s32.totalorder %s51, 1
      %p431 = por %p429, %p430
      %p432 = scmp.ne.s32.totalorder %s423, %s424
      %p433 = scmp.eq.s32.totalorder %s51, 0
      %p434 = por %p432, %p433
      %p435 = scmp.ne.s32.totalorder %s423, %s424
      %p436 = scmp.eq.s32.totalorder %s52, 1
      %p437 = por %p435, %p436
      %p439 = scmp.ne.s32.totalorder %s424, %s438
      %p440 = scmp.eq.s32.totalorder %s52, 0
      %p441 = por %p439, %p440
      %s443 = sadd.s32 %s442, 1
      %p446 = scmp.eq.s32.totalorder %s46, 1
      %p447 = scmp.ne.s32.totalorder %s442, %s444
      %p448 = scmp.eq.s32.totalorder %s46, 0
      %p449 = por %p447, %p448
      %p450 = scmp.ne.s32.totalorder %s442, %s444
      %p451 = scmp.eq.s32.totalorder %s51, 1
      %p452 = por %p450, %p451
      %p453 = scmp.ne.s32.totalorder %s444, %s445
      %p454 = scmp.eq.s32.totalorder %s51, 0
      %p455 = por %p453, %p454
      %p456 = scmp.ne.s32.totalorder %s444, %s445
      %p457 = scmp.eq.s32.totalorder %s52, 1
      %p458 = por %p456, %p457
      %p460 = scmp.ne.s32.totalorder %s445, %s459
      %p461 = scmp.eq.s32.totalorder %s52, 0
      %p462 = por %p460, %p461
      %s464 = sadd.s32 %s463, 1
      %p467 = scmp.eq.s32.totalorder %s46, 1
      %p468 = scmp.ne.s32.totalorder %s463, %s465
      %p469 = scmp.eq.s32.totalorder %s46, 0
      %p470 = por %p468, %p469
      %p471 = scmp.ne.s32.totalorder %s463, %s465
      %p472 = scmp.eq.s32.totalorder %s51, 1
      %p473 = por %p471, %p472
      %p474 = scmp.ne.s32.totalorder %s465, %s466
      %p475 = scmp.eq.s32.totalorder %s51, 0
      %p476 = por %p474, %p475
      %p477 = scmp.ne.s32.totalorder %s465, %s466
      %p478 = scmp.eq.s32.totalorder %s52, 1
      %p479 = por %p477, %p478
      %p481 = scmp.ne.s32.totalorder %s466, %s480
      %p482 = scmp.eq.s32.totalorder %s52, 0
      %p483 = por %p481, %p482
      %s485 = sadd.s32 %s484, 1
      %p488 = scmp.eq.s32.totalorder %s46, 1
      %p489 = scmp.ne.s32.totalorder %s484, %s486
      %p490 = scmp.eq.s32.totalorder %s46, 0
      %p491 = por %p489, %p490
      %p492 = scmp.ne.s32.totalorder %s484, %s486
      %p493 = scmp.eq.s32.totalorder %s51, 1
      %p494 = por %p492, %p493
      %p495 = scmp.ne.s32.totalorder %s486, %s487
      %p496 = scmp.eq.s32.totalorder %s51, 0
      %p497 = por %p495, %p496
      %p498 = scmp.ne.s32.totalorder %s486, %s487
      %p499 = scmp.eq.s32.totalorder %s52, 1
      %p500 = por %p498, %p499
      %p502 = scmp.ne.s32.totalorder %s487, %s501
      %p503 = scmp.eq.s32.totalorder %s52, 0
      %p504 = por %p502, %p503
      %s506 = sadd.s32 %s505, 1
      %p509 = scmp.eq.s32.totalorder %s46, 1
      %p510 = scmp.ne.s32.totalorder %s505, %s507
      %p511 = scmp.eq.s32.totalorder %s46, 0
      %p512 = por %p510, %p511
      %p513 = scmp.ne.s32.totalorder %s505, %s507
      %p514 = scmp.eq.s32.totalorder %s51, 1
      %p515 = por %p513, %p514
      %p516 = scmp.ne.s32.totalorder %s507, %s508
      %p517 = scmp.eq.s32.totalorder %s51, 0
      %p518 = por %p516, %p517
      %p519 = scmp.ne.s32.totalorder %s507, %s508
      %p520 = scmp.eq.s32.totalorder %s52, 1
      %p521 = por %p519, %p520
      %p523 = scmp.ne.s32.totalorder %s508, %s522
      %p524 = scmp.eq.s32.totalorder %s52, 0
      %p525 = por %p523, %p524
      %s527 = sadd.s32 %s526, 1
      %p530 = scmp.eq.s32.totalorder %s46, 1
      %p531 = scmp.ne.s32.totalorder %s526, %s528
      %p532 = scmp.eq.s32.totalorder %s46, 0
      %p533 = por %p531, %p532
      %p534 = scmp.ne.s32.totalorder %s526, %s528
      %p535 = scmp.eq.s32.totalorder %s51, 1
      %p536 = por %p534, %p535
      %p537 = scmp.ne.s32.totalorder %s528, %s529
      %p538 = scmp.eq.s32.totalorder %s51, 0
      %p539 = por %p537, %p538
      %p540 = scmp.ne.s32.totalorder %s528, %s529
      %p541 = scmp.eq.s32.totalorder %s52, 1
      %p542 = por %p540, %p541
      %p544 = scmp.ne.s32.totalorder %s529, %s543
      %p545 = scmp.eq.s32.totalorder %s52, 0
      %p546 = por %p544, %p545
      %s547 = ssub.s32 %s46, %s53
      %p548 = scmp.eq.s32.totalorder %s547, 0
      %s550 = sadd.s32 %s549, 1
      %s551 = scalar_select %p548, %s549, %s550
      %p554 = pneg %p548
      %p555 = scmp.eq.s32.totalorder %s46, 1
      %p556 = por %p554, %p555
      %p557 = scmp.ne.s32.totalorder %s549, %s552
      %p558 = scmp.eq.s32.totalorder %s46, 0
      %p559 = por %p557, %p558
      %p560 = scmp.ne.s32.totalorder %s549, %s552
      %p561 = scmp.eq.s32.totalorder %s51, 1
      %p562 = por %p560, %p561
      %p563 = scmp.ne.s32.totalorder %s552, %s553
      %p564 = scmp.eq.s32.totalorder %s51, 0
      %p565 = por %p563, %p564
      %p566 = scmp.ne.s32.totalorder %s552, %s553
      %p567 = scmp.eq.s32.totalorder %s52, 1
      %p568 = por %p566, %p567
      %p570 = scmp.ne.s32.totalorder %s553, %s569
      %p571 = scmp.eq.s32.totalorder %s52, 0
      %p572 = por %p570, %p571
      %p573 = scmp.le.s32.totalorder 1, %s46
      %p574 = scmp.lt.s32.totalorder %s46, 3
      %p575 = pnand %p573, %p574
      %p576 = pneg %p575
      // Predicated region
      $region9: #{tpu_custom_call.1} parent=5 // pred_check
        _
      $region10: #{tpu_custom_call.1} parent=5 // pred_check_branch
        %578 = sbr.rel (%p575) target = $region12
      $region11: #{tpu_custom_call.1} parent=5 // pred_region
        %s579 = ssub.s32 %s46, 1
        // Predicated region
        $region13: #{tpu_custom_call.1} parent=11 // pred_check
          %p580 = pneg %p119
        $region14: #{tpu_custom_call.1} parent=11 // pred_check_branch
          %582 = sbr.rel (%p580) target = $region16
        $region15: #{tpu_custom_call.1} parent=11 // pred_region
          %s584 = ssub.s32 256, 256
          %585 = vsyncadd [#allocation8], %s584
          %s586 = sshll.u32 [#allocation9], 4
          %s587 = int_to_ptr.vmem [resolvable:$true] %s586
          %592 = dma.hbm_to_vmem [thread:$0]  %s2, 256, %s587, [#allocation8], 64, 64, 4
        $region16: #{tpu_custom_call.1} parent=11 // pred_fallthru
          _
        // Predicated region
        $region17: #{tpu_custom_call.1} parent=11 // pred_check
          %p593 = pneg %p140
        $region18: #{tpu_custom_call.1} parent=11 // pred_check_branch
          %595 = sbr.rel (%p593) target = $region20
        $region19: #{tpu_custom_call.1} parent=11 // pred_region
          %s597 = ssub.s32 16, 16
          %598 = vsyncadd [#allocation11], %s597
          %s600 = sshll.u32 [#allocation10], 4
          %s601 = int_to_ptr.vmem [resolvable:$true] %s600
          %603 = dma.hbm_to_vmem [thread:$0]  %s3, 16, %s601, [#allocation11]
        $region20: #{tpu_custom_call.1} parent=11 // pred_fallthru
          _
        // Predicated region
        $region21: #{tpu_custom_call.1} parent=11 // pred_check
          %p604 = pneg %p161
        $region22: #{tpu_custom_call.1} parent=11 // pred_check_branch
          %606 = sbr.rel (%p604) target = $region24
        $region23: #{tpu_custom_call.1} parent=11 // pred_region
          %s608 = ssub.s32 256, 256
          %609 = vsyncadd [#allocation11], %s608
          %s610 = sshll.u32 [#allocation12], 4
          %s611 = int_to_ptr.vmem [resolvable:$true] %s610
          %616 = dma.hbm_to_vmem [thread:$0]  %s4, 256, %s611, [#allocation11], 64, 64, 4
        $region24: #{tpu_custom_call.1} parent=11 // pred_fallthru
          _
        // Predicated region
        $region25: #{tpu_custom_call.1} parent=11 // pred_check
          %p617 = pneg %p182
        $region26: #{tpu_custom_call.1} parent=11 // pred_check_branch
          %619 = sbr.rel (%p617) target = $region28
        $region27: #{tpu_custom_call.1} parent=11 // pred_region
          %s621 = ssub.s32 16, 16
          %622 = vsyncadd [#allocation14], %s621
          %s624 = sshll.u32 [#allocation13], 4
          %s625 = int_to_ptr.vmem [resolvable:$true] %s624
          %627 = dma.hbm_to_vmem [thread:$0]  %s5, 16, %s625, [#allocation14]
        $region28: #{tpu_custom_call.1} parent=11 // pred_fallthru
          _
        // Predicated region
        $region29: #{tpu_custom_call.1} parent=11 // pred_check
          %p628 = pneg %p203
        $region30: #{tpu_custom_call.1} parent=11 // pred_check_branch
          %630 = sbr.rel (%p628) target = $region32
        $region31: #{tpu_custom_call.1} parent=11 // pred_region
          %s632 = ssub.s32 256, 256
          %633 = vsyncadd [#allocation14], %s632
          %s634 = sshll.u32 [#allocation15], 4
          %s635 = int_to_ptr.vmem [resolvable:$true] %s634
          %640 = dma.hbm_to_vmem [thread:$0]  %s6, 256, %s635, [#allocation14], 64, 64, 4
        $region32: #{tpu_custom_call.1} parent=11 // pred_fallthru
          _
        // Predicated region
        $region33: #{tpu_custom_call.1} parent=11 // pred_check
          %p641 = pneg %p224
        $region34: #{tpu_custom_call.1} parent=11 // pred_check_branch
          %643 = sbr.rel (%p641) target = $region36
        $region35: #{tpu_custom_call.1} parent=11 // pred_region
          %s645 = ssub.s32 16, 16
          %646 = vsyncadd [#allocation17], %s645
          %s648 = sshll.u32 [#allocation16], 4
          %s649 = int_to_ptr.vmem [resolvable:$true] %s648
          %651 = dma.hbm_to_vmem [thread:$0]  %s7, 16, %s649, [#allocation17]
        $region36: #{tpu_custom_call.1} parent=11 // pred_fallthru
          _
        // Predicated region
        $region37: #{tpu_custom_call.1} parent=11 // pred_check
          %p652 = pneg %p245
        $region38: #{tpu_custom_call.1} parent=11 // pred_check_branch
          %654 = sbr.rel (%p652) target = $region40
        $region39: #{tpu_custom_call.1} parent=11 // pred_region
          %s656 = ssub.s32 256, 256
          %657 = vsyncadd [#allocation17], %s656
          %s658 = sshll.u32 [#allocation18], 4
          %s659 = int_to_ptr.vmem [resolvable:$true] %s658
          %664 = dma.hbm_to_vmem [thread:$0]  %s8, 256, %s659, [#allocation17], 64, 64, 4
        $region40: #{tpu_custom_call.1} parent=11 // pred_fallthru
          _
        // Predicated region
        $region41: #{tpu_custom_call.1} parent=11 // pred_check
          %p665 = pneg %p266
        $region42: #{tpu_custom_call.1} parent=11 // pred_check_branch
          %667 = sbr.rel (%p665) target = $region44
        $region43: #{tpu_custom_call.1} parent=11 // pred_region
          %s669 = ssub.s32 16, 16
          %670 = vsyncadd [#allocation20], %s669
          %s672 = sshll.u32 [#allocation19], 4
          %s673 = int_to_ptr.vmem [resolvable:$true] %s672
          %675 = dma.hbm_to_vmem [thread:$0]  %s9, 16, %s673, [#allocation20]
        $region44: #{tpu_custom_call.1} parent=11 // pred_fallthru
          _
        // Predicated region
        $region45: #{tpu_custom_call.1} parent=11 // pred_check
          %p676 = pneg %p287
        $region46: #{tpu_custom_call.1} parent=11 // pred_check_branch
          %678 = sbr.rel (%p676) target = $region48
        $region47: #{tpu_custom_call.1} parent=11 // pred_region
          %s680 = ssub.s32 16, 16
          %681 = vsyncadd [#allocation20], %s680
          %s683 = sshll.u32 [#allocation21], 4
          %s684 = int_to_ptr.vmem [resolvable:$true] %s683
          %686 = dma.hbm_to_vmem [thread:$0]  %s10, 16, %s684, [#allocation20]
        $region48: #{tpu_custom_call.1} parent=11 // pred_fallthru
          _
        // Predicated region
        $region49: #{tpu_custom_call.1} parent=11 // pred_check
          %p687 = pneg %p308
        $region50: #{tpu_custom_call.1} parent=11 // pred_check_branch
          %689 = sbr.rel (%p687) target = $region52
        $region51: #{tpu_custom_call.1} parent=11 // pred_region
          %s691 = ssub.s32 16, 16
          %692 = vsyncadd [#allocation23], %s691
          %s694 = sshll.u32 [#allocation22], 4
          %s695 = int_to_ptr.vmem [resolvable:$true] %s694
          %697 = dma.hbm_to_vmem [thread:$0]  %s11, 16, %s695, [#allocation23]
        $region52: #{tpu_custom_call.1} parent=11 // pred_fallthru
          _
        // Predicated region
        $region53: #{tpu_custom_call.1} parent=11 // pred_check
          %p698 = pneg %p329
        $region54: #{tpu_custom_call.1} parent=11 // pred_check_branch
          %700 = sbr.rel (%p698) target = $region56
        $region55: #{tpu_custom_call.1} parent=11 // pred_region
          %s702 = ssub.s32 256, 256
          %703 = vsyncadd [#allocation23], %s702
          %s704 = sshll.u32 [#allocation24], 4
          %s705 = int_to_ptr.vmem [resolvable:$true] %s704
          %710 = dma.hbm_to_vmem [thread:$0]  %s12, 256, %s705, [#allocation23], 64, 64, 4
        $region56: #{tpu_custom_call.1} parent=11 // pred_fallthru
          _
        // Predicated region
        $region57: #{tpu_custom_call.1} parent=11 // pred_check
          %p711 = pneg %p350
        $region58: #{tpu_custom_call.1} parent=11 // pred_check_branch
          %713 = sbr.rel (%p711) target = $region60
        $region59: #{tpu_custom_call.1} parent=11 // pred_region
          %s715 = ssub.s32 16, 16
          %716 = vsyncadd [#allocation26], %s715
          %s718 = sshll.u32 [#allocation25], 4
          %s719 = int_to_ptr.vmem [resolvable:$true] %s718
          %721 = dma.hbm_to_vmem [thread:$0]  %s13, 16, %s719, [#allocation26]
        $region60: #{tpu_custom_call.1} parent=11 // pred_fallthru
          _
        // Predicated region
        $region61: #{tpu_custom_call.1} parent=11 // pred_check
          %p722 = pneg %p371
        $region62: #{tpu_custom_call.1} parent=11 // pred_check_branch
          %724 = sbr.rel (%p722) target = $region64
        $region63: #{tpu_custom_call.1} parent=11 // pred_region
          _
        $region64: #{tpu_custom_call.1} parent=11 // pred_fallthru
          _
        // Predicated region
        $region65: #{tpu_custom_call.1} parent=11 // pred_check
          %p725 = pneg %p392
        $region66: #{tpu_custom_call.1} parent=11 // pred_check_branch
          %727 = sbr.rel (%p725) target = $region68
        $region67: #{tpu_custom_call.1} parent=11 // pred_region
          %s729 = ssub.s32 16, 16
          %730 = vsyncadd [#allocation26], %s729
          %s732 = sshll.u32 [#allocation27], 4
          %s733 = int_to_ptr.vmem [resolvable:$true] %s732
          %735 = dma.hbm_to_vmem [thread:$0]  %s15, 16, %s733, [#allocation26]
        $region68: #{tpu_custom_call.1} parent=11 // pred_fallthru
          _
        // Predicated region
        $region69: #{tpu_custom_call.1} parent=11 // pred_check
          %p736 = pneg %p413
        $region70: #{tpu_custom_call.1} parent=11 // pred_check_branch
          %738 = sbr.rel (%p736) target = $region72
        $region71: #{tpu_custom_call.1} parent=11 // pred_region
          %s740 = ssub.s32 1280, 1280
          %741 = vsyncadd [#allocation29], %s740
          %s742 = sshll.u32 [#allocation28], 4
          %s743 = int_to_ptr.vmem [resolvable:$true] %s742
          %748 = dma.hbm_to_vmem [thread:$0]  %s16, 1280, %s743, [#allocation29], 64, 64, 4
        $region72: #{tpu_custom_call.1} parent=11 // pred_fallthru
          _
        // Predicated region
        $region73: #{tpu_custom_call.1} parent=11 // pred_check
          %p749 = pneg %p434
        $region74: #{tpu_custom_call.1} parent=11 // pred_check_branch
          %751 = sbr.rel (%p749) target = $region76
        $region75: #{tpu_custom_call.1} parent=11 // pred_region
          _
        $region76: #{tpu_custom_call.1} parent=11 // pred_fallthru
          _
        // Predicated region
        $region77: #{tpu_custom_call.1} parent=11 // pred_check
          %p752 = pneg %p455
        $region78: #{tpu_custom_call.1} parent=11 // pred_check_branch
          %754 = sbr.rel (%p752) target = $region80
        $region79: #{tpu_custom_call.1} parent=11 // pred_region
          _
        $region80: #{tpu_custom_call.1} parent=11 // pred_fallthru
          _
        // Predicated region
        $region81: #{tpu_custom_call.1} parent=11 // pred_check
          %p755 = pneg %p476
        $region82: #{tpu_custom_call.1} parent=11 // pred_check_branch
          %757 = sbr.rel (%p755) target = $region84
        $region83: #{tpu_custom_call.1} parent=11 // pred_region
          %s759 = ssub.s32 256, 256
          %760 = vsyncadd [#allocation29], %s759
          %s761 = sshll.u32 [#allocation30], 4
          %s762 = int_to_ptr.vmem [resolvable:$true] %s761
          %767 = dma.hbm_to_vmem [thread:$0]  %s19, 256, %s762, [#allocation29], 64, 64, 4
        $region84: #{tpu_custom_call.1} parent=11 // pred_fallthru
          _
        // Predicated region
        $region85: #{tpu_custom_call.1} parent=11 // pred_check
          %p768 = pneg %p497
        $region86: #{tpu_custom_call.1} parent=11 // pred_check_branch
          %770 = sbr.rel (%p768) target = $region88
        $region87: #{tpu_custom_call.1} parent=11 // pred_region
          _
        $region88: #{tpu_custom_call.1} parent=11 // pred_fallthru
          _
        // Predicated region
        $region89: #{tpu_custom_call.1} parent=11 // pred_check
          %p771 = pneg %p518
        $region90: #{tpu_custom_call.1} parent=11 // pred_check_branch
          %773 = sbr.rel (%p771) target = $region92
        $region91: #{tpu_custom_call.1} parent=11 // pred_region
          _
        $region92: #{tpu_custom_call.1} parent=11 // pred_fallthru
          _
        // Predicated region
        $region93: #{tpu_custom_call.1} parent=11 // pred_check
          %p774 = pneg %p539
        $region94: #{tpu_custom_call.1} parent=11 // pred_check_branch
          %776 = sbr.rel (%p774) target = $region96
        $region95: #{tpu_custom_call.1} parent=11 // pred_region
          _
        $region96: #{tpu_custom_call.1} parent=11 // pred_fallthru
          _
      $region12: #{tpu_custom_call.1} parent=5 // pred_fallthru
        _
      %p777 = scmp.lt.s32.totalorder %s46, 2
      // Predicated region
      $region97: #{tpu_custom_call.1} parent=5 // pred_check
        %p778 = pneg %p777
      $region98: #{tpu_custom_call.1} parent=5 // pred_check_branch
        %780 = sbr.rel (%p778) target = $region100
      $region99: #{tpu_custom_call.1} parent=5 // pred_region
        // Predicated region
        $region101: #{tpu_custom_call.1} parent=99 // pred_check
          %p781 = pneg %p66
        $region102: #{tpu_custom_call.1} parent=99 // pred_check_branch
          %783 = sbr.rel (%p781) target = $region104
        $region103: #{tpu_custom_call.1} parent=99 // pred_region
          %s784 = sand.u32 %s56, 1
          %s785 = scalar_lea.sflag [#allocation5], %s784
          %s786 = sand.u32 %s56, 1
          %s787 = smul.addr %s786, 8
          %s788 = scalar_lea.vmem [#allocation4], %s787
          %s790 = ssub.s32 128, 128
          %791 = vsyncadd %s785, %s790
          %s792 = smul.addr %s46, 128
          %s793 = scalar_lea.hbm %s0, %s792
          %s795 = sshll.u32 %s788, 4
          %s796 = int_to_ptr.vmem [resolvable:$true] %s795
          %798 = dma.hbm_to_vmem [thread:$0]  %s793, 128, %s796, %s785
        $region104: #{tpu_custom_call.1} parent=99 // pred_fallthru
          _
        // Predicated region
        $region105: #{tpu_custom_call.1} parent=99 // pred_check
          %p799 = pneg %p92
        $region106: #{tpu_custom_call.1} parent=99 // pred_check_branch
          %801 = sbr.rel (%p799) target = $region108
        $region107: #{tpu_custom_call.1} parent=99 // pred_region
          %s802 = sand.u32 %s46, 1
          %s803 = scalar_lea.sflag [#allocation8], %s802
          %s804 = sand.u32 %s82, 1
          %s805 = smul.addr %s804, 8
          %s806 = scalar_lea.vmem [#allocation7], %s805
          %s808 = ssub.s32 128, 128
          %809 = vsyncadd %s803, %s808
          %s810 = smul.addr %s46, 128
          %s811 = scalar_lea.hbm %s1, %s810
          %s813 = sshll.u32 %s806, 4
          %s814 = int_to_ptr.vmem [resolvable:$true] %s813
          %816 = dma.hbm_to_vmem [thread:$0]  %s811, 128, %s814, %s803
        $region108: #{tpu_custom_call.1} parent=99 // pred_fallthru
          _
      $region100: #{tpu_custom_call.1} parent=5 // pred_fallthru
        _
      %p817 = scmp.le.s32.totalorder 1, %s46
      %p818 = scmp.lt.s32.totalorder %s46, 3
      %p819 = pnand %p817, %p818
      %p820 = pneg %p819
      // Predicated region
      $region109: #{tpu_custom_call.1} parent=5 // pred_check
        _
      $region110: #{tpu_custom_call.1} parent=5 // pred_check_branch
        %822 = sbr.rel (%p819) target = $region112
      $region111: #{tpu_custom_call.1} parent=5 // pred_region
        %s823 = ssub.s32 %s46, 1
        %s824 = sand.u32 %s59, 1
        %s825 = scalar_lea.sflag [#allocation5], %s824
        %s826 = sand.u32 %s59, 1
        %s827 = smul.addr %s826, 8
        %s828 = scalar_lea.vmem [#allocation4], %s827
        // Predicated region
        $region113: #{tpu_custom_call.1} parent=111 // pred_check
          %p829 = pneg %p72
        $region114: #{tpu_custom_call.1} parent=111 // pred_check_branch
          %831 = sbr.rel (%p829) target = $region116
        $region115: #{tpu_custom_call.1} parent=111 // pred_region
          %832 = dma.done %s825, 128
        $region116: #{tpu_custom_call.1} parent=111 // pred_fallthru
          _
        %s833 = sand.u32 %s51, 1
        %s834 = scalar_lea.sflag [#allocation8], %s833
        %s835 = sand.u32 %s85, 1
        %s836 = smul.addr %s835, 8
        %s837 = scalar_lea.vmem [#allocation7], %s836
        // Predicated region
        $region117: #{tpu_custom_call.1} parent=111 // pred_check
          %p838 = pneg %p98
        $region118: #{tpu_custom_call.1} parent=111 // pred_check_branch
          %840 = sbr.rel (%p838) target = $region120
        $region119: #{tpu_custom_call.1} parent=111 // pred_region
          %841 = dma.done %s834, 128
        $region120: #{tpu_custom_call.1} parent=111 // pred_fallthru
          _
        // Predicated region
        $region121: #{tpu_custom_call.1} parent=111 // pred_check
          %p842 = pneg %p119
        $region122: #{tpu_custom_call.1} parent=111 // pred_check_branch
          %844 = sbr.rel (%p842) target = $region124
        $region123: #{tpu_custom_call.1} parent=111 // pred_region
          %845 = dma.done [#allocation8], 256
        $region124: #{tpu_custom_call.1} parent=111 // pred_fallthru
          _
        // Predicated region
        $region125: #{tpu_custom_call.1} parent=111 // pred_check
          %p846 = pneg %p140
        $region126: #{tpu_custom_call.1} parent=111 // pred_check_branch
          %848 = sbr.rel (%p846) target = $region128
        $region127: #{tpu_custom_call.1} parent=111 // pred_region
          %849 = dma.done [#allocation11], 16
        $region128: #{tpu_custom_call.1} parent=111 // pred_fallthru
          _
        // Predicated region
        $region129: #{tpu_custom_call.1} parent=111 // pred_check
          %p850 = pneg %p161
        $region130: #{tpu_custom_call.1} parent=111 // pred_check_branch
          %852 = sbr.rel (%p850) target = $region132
        $region131: #{tpu_custom_call.1} parent=111 // pred_region
          %853 = dma.done [#allocation11], 256
        $region132: #{tpu_custom_call.1} parent=111 // pred_fallthru
          _
        // Predicated region
        $region133: #{tpu_custom_call.1} parent=111 // pred_check
          %p854 = pneg %p182
        $region134: #{tpu_custom_call.1} parent=111 // pred_check_branch
          %856 = sbr.rel (%p854) target = $region136
        $region135: #{tpu_custom_call.1} parent=111 // pred_region
          %857 = dma.done [#allocation14], 16
        $region136: #{tpu_custom_call.1} parent=111 // pred_fallthru
          _
        // Predicated region
        $region137: #{tpu_custom_call.1} parent=111 // pred_check
          %p858 = pneg %p203
        $region138: #{tpu_custom_call.1} parent=111 // pred_check_branch
          %860 = sbr.rel (%p858) target = $region140
        $region139: #{tpu_custom_call.1} parent=111 // pred_region
          %861 = dma.done [#allocation14], 256
        $region140: #{tpu_custom_call.1} parent=111 // pred_fallthru
          _
        // Predicated region
        $region141: #{tpu_custom_call.1} parent=111 // pred_check
          %p862 = pneg %p224
        $region142: #{tpu_custom_call.1} parent=111 // pred_check_branch
          %864 = sbr.rel (%p862) target = $region144
        $region143: #{tpu_custom_call.1} parent=111 // pred_region
          %865 = dma.done [#allocation17], 16
        $region144: #{tpu_custom_call.1} parent=111 // pred_fallthru
          _
        // Predicated region
        $region145: #{tpu_custom_call.1} parent=111 // pred_check
          %p866 = pneg %p245
        $region146: #{tpu_custom_call.1} parent=111 // pred_check_branch
          %868 = sbr.rel (%p866) target = $region148
        $region147: #{tpu_custom_call.1} parent=111 // pred_region
          %869 = dma.done [#allocation17], 256
        $region148: #{tpu_custom_call.1} parent=111 // pred_fallthru
          _
        // Predicated region
        $region149: #{tpu_custom_call.1} parent=111 // pred_check
          %p870 = pneg %p266
        $region150: #{tpu_custom_call.1} parent=111 // pred_check_branch
          %872 = sbr.rel (%p870) target = $region152
        $region151: #{tpu_custom_call.1} parent=111 // pred_region
          %873 = dma.done [#allocation20], 16
        $region152: #{tpu_custom_call.1} parent=111 // pred_fallthru
          _
        // Predicated region
        $region153: #{tpu_custom_call.1} parent=111 // pred_check
          %p874 = pneg %p287
        $region154: #{tpu_custom_call.1} parent=111 // pred_check_branch
          %876 = sbr.rel (%p874) target = $region156
        $region155: #{tpu_custom_call.1} parent=111 // pred_region
          %877 = dma.done [#allocation20], 16
        $region156: #{tpu_custom_call.1} parent=111 // pred_fallthru
          _
        // Predicated region
        $region157: #{tpu_custom_call.1} parent=111 // pred_check
          %p878 = pneg %p308
        $region158: #{tpu_custom_call.1} parent=111 // pred_check_branch
          %880 = sbr.rel (%p878) target = $region160
        $region159: #{tpu_custom_call.1} parent=111 // pred_region
          %881 = dma.done [#allocation23], 16
        $region160: #{tpu_custom_call.1} parent=111 // pred_fallthru
          _
        // Predicated region
        $region161: #{tpu_custom_call.1} parent=111 // pred_check
          %p882 = pneg %p329
        $region162: #{tpu_custom_call.1} parent=111 // pred_check_branch
          %884 = sbr.rel (%p882) target = $region164
        $region163: #{tpu_custom_call.1} parent=111 // pred_region
          %885 = dma.done [#allocation23], 256
        $region164: #{tpu_custom_call.1} parent=111 // pred_fallthru
          _
        // Predicated region
        $region165: #{tpu_custom_call.1} parent=111 // pred_check
          %p886 = pneg %p350
        $region166: #{tpu_custom_call.1} parent=111 // pred_check_branch
          %888 = sbr.rel (%p886) target = $region168
        $region167: #{tpu_custom_call.1} parent=111 // pred_region
          %889 = dma.done [#allocation26], 16
        $region168: #{tpu_custom_call.1} parent=111 // pred_fallthru
          _
        // Predicated region
        $region169: #{tpu_custom_call.1} parent=111 // pred_check
          %p890 = pneg %p392
        $region170: #{tpu_custom_call.1} parent=111 // pred_check_branch
          %892 = sbr.rel (%p890) target = $region172
        $region171: #{tpu_custom_call.1} parent=111 // pred_region
          %893 = dma.done [#allocation26], 16
        $region172: #{tpu_custom_call.1} parent=111 // pred_fallthru
          _
        // Predicated region
        $region173: #{tpu_custom_call.1} parent=111 // pred_check
          %p894 = pneg %p413
        $region174: #{tpu_custom_call.1} parent=111 // pred_check_branch
          %896 = sbr.rel (%p894) target = $region176
        $region175: #{tpu_custom_call.1} parent=111 // pred_region
          %897 = dma.done [#allocation29], 1280
        $region176: #{tpu_custom_call.1} parent=111 // pred_fallthru
          _
        // Predicated region
        $region177: #{tpu_custom_call.1} parent=111 // pred_check
          %p898 = pneg %p476
        $region178: #{tpu_custom_call.1} parent=111 // pred_check_branch
          %900 = sbr.rel (%p898) target = $region180
        $region179: #{tpu_custom_call.1} parent=111 // pred_region
          %901 = dma.done [#allocation29], 256
        $region180: #{tpu_custom_call.1} parent=111 // pred_fallthru
          _
        %s902 = sand.u32 %s59, 1
        %s903 = scalar_lea.sflag [#allocation5], %s902
        %s904 = sand.u32 %s59, 1
        %s905 = smul.addr %s904, 8
        %s906 = scalar_lea.vmem [#allocation4], %s905
        %p907 = pneg %p72
        %p908 = pneg %p69
        %s909 = sand.u32 %s51, 1
        %s910 = scalar_lea.sflag [#allocation8], %s909
        %s911 = sand.u32 %s85, 1
        %s912 = smul.addr %s911, 8
        %s913 = scalar_lea.vmem [#allocation7], %s912
        %p914 = pneg %p98
        %p915 = pneg %p95
        %p916 = pneg %p119
        %p917 = pneg %p116
        %p918 = pneg %p140
        %p919 = pneg %p137
        %p920 = pneg %p161
        %p921 = pneg %p158
        %p922 = pneg %p182
        %p923 = pneg %p179
        %p924 = pneg %p203
        %p925 = pneg %p200
        %p926 = pneg %p224
        %p927 = pneg %p221
        %p928 = pneg %p245
        %p929 = pneg %p242
        %p930 = pneg %p266
        %p931 = pneg %p263
        %p932 = pneg %p287
        %p933 = pneg %p284
        %p934 = pneg %p308
        %p935 = pneg %p305
        %p936 = pneg %p329
        %p937 = pneg %p326
        %p938 = pneg %p350
        %p939 = pneg %p347
        %p940 = pneg %p371
        %p941 = pneg %p368
        %p942 = pneg %p392
        %p943 = pneg %p389
        %p944 = pneg %p413
        %p945 = pneg %p410
        %p946 = pneg %p434
        %p947 = pneg %p431
        %p948 = pneg %p455
        %p949 = pneg %p452
        %p950 = pneg %p476
        %p951 = pneg %p473
        %p952 = pneg %p497
        %p953 = pneg %p494
        %p954 = pneg %p518
        %p955 = pneg %p515
        %p956 = pneg %p539
        %p957 = pneg %p536
        %p958 = pneg %p565
        %p959 = pneg %p562
        %s960 = sand.u32 %s552, 1
        %s961 = scalar_lea.sflag [#allocation6], %s960
        %s962 = sand.u32 %s552, 1
        %s963 = smul.addr %s962, 8
        %s964 = scalar_lea.vmem [#allocation31], %s963
        %v966 = vld [vmem:[%s828] sm:$0xff]
        %v967 = vld [vmem:[%s837] sm:$0xff]
        %v968 = vpack.c.bf16 %v966, %v966
        %v969 = vpack.c.bf16 %v967, %v967
        %v970 = vld [vmem:[#allocation9] sm:$0xf]
        %v971 = vld [vmem:[#allocation9 + $0x4] sm:$0xf]
        %v972 = vld [vmem:[#allocation9 + $0x8] sm:$0xf]
        %v973 = vld [vmem:[#allocation9 + $0xc] sm:$0xf]
        %v974 = vld [vmem:[#allocation10] sm:$0x1]
        %v976 = vlaneseq
        %v977 = vshrl.u32 %v976, 7
        %v978 = vsub.s32 0, %v977
        %v979 = vrot.slane %v974, %v978
        %v985 = vunpack.c.l.b16 %v970
        %v986 = vunpack.c.l.b16 %v971
        %v987 = vunpack.c.l.b16 %v972
        %v988 = vunpack.c.l.b16 %v973
        %v989 = vpack.c.b16 %v986, %v985
        %v990 = vpack.c.b16 %v988, %v987
        %vm993 = vcmask 261120
        %v995 = vsel %vm993, %v968, 0
        %997 = vmatprep.subr.bf16.mxu0 0
        %998 = vmatpush1.bf16.msra.mxu0 %v989
        %999 = vmatprep.subr.bf16.mxu0 0
        %1000 = vmatpush1.bf16.msra.mxu0 %v990
        %1001 = vmatprep.subr.bf16.mxu0 0
        %1002 = vmatpush1.bf16.msra.mxu0 0
        %1003 = vmatprep.subr.bf16.mxu0 0
        %1004 = vmatpush1.bf16.msra.mxu0 0
        %1005 = vmatprep.subr.bf16.mxu0 0
        %1006 = vmatpush1.bf16.msra.mxu0 0
        %1007 = vmatprep.subr.bf16.mxu0 0
        %1008 = vmatpush1.bf16.msra.mxu0 0
        %1009 = vmatprep.subr.bf16.mxu0 0
        %1010 = vmatpush1.bf16.msra.mxu0 0
        %1011 = vmatprep.subr.bf16.mxu0 0
        %1012 = vmatpush1.bf16.msra.mxu0 0
        %1013 = vmatprep.subr.bf16.mxu0 0
        %1014 = vmatpush1.bf16.msra.mxu0 0
        %1015 = vmatprep.subr.bf16.mxu0 0
        %1016 = vmatpush1.bf16.msra.mxu0 0
        %1017 = vmatprep.subr.bf16.mxu0 0
        %1018 = vmatpush1.bf16.msra.mxu0 0
        %1019 = vmatprep.subr.bf16.mxu0 0
        %1020 = vmatpush1.bf16.msra.mxu0 0
        %1021 = vmatprep.subr.bf16.mxu0 0
        %1022 = vmatpush1.bf16.msra.mxu0 0
        %1023 = vmatprep.subr.bf16.mxu0 0
        %1024 = vmatpush1.bf16.msra.mxu0 0
        %1025 = vmatprep.subr.bf16.mxu0 0
        %1026 = vmatpush1.bf16.msra.mxu0 0
        %1027 = vmatprep.subr.bf16.mxu0 0
        %1028 = vmatpush1.bf16.msra.mxu0 0
        %1029 = vmatprep.mubr.bf16.mxu0 0
        %1030 = vmatmul.mubr.bf16.gmra.mrb[0].mxu0 %v995
        %v1031 = vpop.f32.mrb[0].mxu0
        %v1032 = vadd.f32 %v979, %v1031
        %v1033 = vpop.f32.mrb[0].mxu0
        %v1034 = vpop.f32.mrb[0].mxu0
        %v1035 = vpop.f32.mrb[0].mxu0
        %1036 = vdwg.mxu0
        %v1037 = vld [vmem:[#allocation12] sm:$0xf]
        %v1038 = vld [vmem:[#allocation12 + $0x4] sm:$0xf]
        %v1039 = vld [vmem:[#allocation12 + $0x8] sm:$0xf]
        %v1040 = vld [vmem:[#allocation12 + $0xc] sm:$0xf]
        %v1041 = vld [vmem:[#allocation13] sm:$0x1]
        %v1043 = vlaneseq
        %v1044 = vshrl.u32 %v1043, 7
        %v1045 = vsub.s32 0, %v1044
        %v1046 = vrot.slane %v1041, %v1045
        %v1052 = vunpack.c.l.b16 %v1037
        %v1053 = vunpack.c.l.b16 %v1038
        %v1054 = vunpack.c.l.b16 %v1039
        %v1055 = vunpack.c.l.b16 %v1040
        %v1056 = vpack.c.b16 %v1053, %v1052
        %v1057 = vpack.c.b16 %v1055, %v1054
        %v1061 = vsel %vm993, %v969, 0
        %1063 = vmatprep.subr.bf16.mxu0 0
        %1064 = vmatpush1.bf16.msra.mxu0 %v1056
        %1065 = vmatprep.subr.bf16.mxu0 0
        %1066 = vmatpush1.bf16.msra.mxu0 %v1057
        %1067 = vmatprep.subr.bf16.mxu0 0
        %1068 = vmatpush1.bf16.msra.mxu0 0
        %1069 = vmatprep.subr.bf16.mxu0 0
        %1070 = vmatpush1.bf16.msra.mxu0 0
        %1071 = vmatprep.subr.bf16.mxu0 0
        %1072 = vmatpush1.bf16.msra.mxu0 0
        %1073 = vmatprep.subr.bf16.mxu0 0
        %1074 = vmatpush1.bf16.msra.mxu0 0
        %1075 = vmatprep.subr.bf16.mxu0 0
        %1076 = vmatpush1.bf16.msra.mxu0 0
        %1077 = vmatprep.subr.bf16.mxu0 0
        %1078 = vmatpush1.bf16.msra.mxu0 0
        %1079 = vmatprep.subr.bf16.mxu0 0
        %1080 = vmatpush1.bf16.msra.mxu0 0
        %1081 = vmatprep.subr.bf16.mxu0 0
        %1082 = vmatpush1.bf16.msra.mxu0 0
        %1083 = vmatprep.subr.bf16.mxu0 0
        %1084 = vmatpush1.bf16.msra.mxu0 0
        %1085 = vmatprep.subr.bf16.mxu0 0
        %1086 = vmatpush1.bf16.msra.mxu0 0
        %1087 = vmatprep.subr.bf16.mxu0 0
        %1088 = vmatpush1.bf16.msra.mxu0 0
        %1089 = vmatprep.subr.bf16.mxu0 0
        %1090 = vmatpush1.bf16.msra.mxu0 0
        %1091 = vmatprep.subr.bf16.mxu0 0
        %1092 = vmatpush1.bf16.msra.mxu0 0
        %1093 = vmatprep.subr.bf16.mxu0 0
        %1094 = vmatpush1.bf16.msra.mxu0 0
        %1095 = vmatprep.mubr.bf16.mxu0 0
        %1096 = vmatmul.mubr.bf16.gmra.mrb[0].mxu0 %v1061
        %v1097 = vpop.f32.mrb[0].mxu0
        %v1098 = vadd.f32 %v1046, %v1097
        %v1099 = vpop.f32.mrb[0].mxu0
        %v1100 = vpop.f32.mrb[0].mxu0
        %v1101 = vpop.f32.mrb[0].mxu0
        %1102 = vdwg.mxu0
        %v1103 = vld [vmem:[#allocation15] sm:$0xf]
        %v1104 = vld [vmem:[#allocation15 + $0x4] sm:$0xf]
        %v1105 = vld [vmem:[#allocation15 + $0x8] sm:$0xf]
        %v1106 = vld [vmem:[#allocation15 + $0xc] sm:$0xf]
        %v1107 = vld [vmem:[#allocation16] sm:$0x1]
        %v1109 = vlaneseq
        %v1110 = vshrl.u32 %v1109, 7
        %v1111 = vsub.s32 0, %v1110
        %v1112 = vrot.slane %v1107, %v1111
        %v1118 = vunpack.c.l.b16 %v1103
        %v1119 = vunpack.c.l.b16 %v1104
        %v1120 = vunpack.c.l.b16 %v1105
        %v1121 = vunpack.c.l.b16 %v1106
        %v1122 = vpack.c.b16 %v1119, %v1118
        %v1123 = vpack.c.b16 %v1121, %v1120
        %1126 = vmatprep.subr.bf16.mxu0 0
        %1127 = vmatpush1.bf16.msra.mxu0 %v1122
        %1128 = vmatprep.subr.bf16.mxu0 0
        %1129 = vmatpush1.bf16.msra.mxu0 %v1123
        %1130 = vmatprep.subr.bf16.mxu0 0
        %1131 = vmatpush1.bf16.msra.mxu0 0
        %1132 = vmatprep.subr.bf16.mxu0 0
        %1133 = vmatpush1.bf16.msra.mxu0 0
        %1134 = vmatprep.subr.bf16.mxu0 0
        %1135 = vmatpush1.bf16.msra.mxu0 0
        %1136 = vmatprep.subr.bf16.mxu0 0
        %1137 = vmatpush1.bf16.msra.mxu0 0
        %1138 = vmatprep.subr.bf16.mxu0 0
        %1139 = vmatpush1.bf16.msra.mxu0 0
        %1140 = vmatprep.subr.bf16.mxu0 0
        %1141 = vmatpush1.bf16.msra.mxu0 0
        %1142 = vmatprep.subr.bf16.mxu0 0
        %1143 = vmatpush1.bf16.msra.mxu0 0
        %1144 = vmatprep.subr.bf16.mxu0 0
        %1145 = vmatpush1.bf16.msra.mxu0 0
        %1146 = vmatprep.subr.bf16.mxu0 0
        %1147 = vmatpush1.bf16.msra.mxu0 0
        %1148 = vmatprep.subr.bf16.mxu0 0
        %1149 = vmatpush1.bf16.msra.mxu0 0
        %1150 = vmatprep.subr.bf16.mxu0 0
        %1151 = vmatpush1.bf16.msra.mxu0 0
        %1152 = vmatprep.subr.bf16.mxu0 0
        %1153 = vmatpush1.bf16.msra.mxu0 0
        %1154 = vmatprep.subr.bf16.mxu0 0
        %1155 = vmatpush1.bf16.msra.mxu0 0
        %1156 = vmatprep.subr.bf16.mxu0 0
        %1157 = vmatpush1.bf16.msra.mxu0 0
        %1158 = vmatprep.mubr.bf16.mxu0 0
        %1159 = vmatmul.mubr.bf16.gmra.mrb[0].mxu0 %v1061
        %v1160 = vpop.f32.mrb[0].mxu0
        %v1161 = vadd.f32 %v1112, %v1160
        %v1162 = vpop.f32.mrb[0].mxu0
        %v1163 = vpop.f32.mrb[0].mxu0
        %v1164 = vpop.f32.mrb[0].mxu0
        %1165 = vdwg.mxu0
        %v1166 = vpack.c.bf16 %v1032, %v1032
        %v1167 = vpack.c.bf16 %v1098, %v1098
        %v1168 = vpack.c.bf16 %v1161, %v1161
        %vm1169 = vcmask 64512
        %v1171 = vsel %vm1169, %v1166, 0
        %v1174 = vsel %vm1169, %v1167, 0
        %1176 = vmatprep.subr.bf16.mxu0 0
        %1177 = vmatpush1.bf16.xpose.msra.mxu0 %v1174
        %1178 = vmatprep.subr.bf16.mxu0 0
        %1179 = vmatpush1.bf16.xpose.msra.mxu0 0
        %1180 = vmatprep.subr.bf16.mxu0 0
        %1181 = vmatpush1.bf16.xpose.msra.mxu0 0
        %1182 = vmatprep.subr.bf16.mxu0 0
        %1183 = vmatpush1.bf16.xpose.msra.mxu0 0
        %1184 = vmatprep.subr.bf16.mxu0 0
        %1185 = vmatpush1.bf16.xpose.msra.mxu0 0
        %1186 = vmatprep.subr.bf16.mxu0 0
        %1187 = vmatpush1.bf16.xpose.msra.mxu0 0
        %1188 = vmatprep.subr.bf16.mxu0 0
        %1189 = vmatpush1.bf16.xpose.msra.mxu0 0
        %1190 = vmatprep.subr.bf16.mxu0 0
        %1191 = vmatpush1.bf16.xpose.msra.mxu0 0
        %1192 = vmatprep.subr.bf16.mxu0 0
        %1193 = vmatpush1.bf16.xpose.msra.mxu0 0
        %1194 = vmatprep.subr.bf16.mxu0 0
        %1195 = vmatpush1.bf16.xpose.msra.mxu0 0
        %1196 = vmatprep.subr.bf16.mxu0 0
        %1197 = vmatpush1.bf16.xpose.msra.mxu0 0
        %1198 = vmatprep.subr.bf16.mxu0 0
        %1199 = vmatpush1.bf16.xpose.msra.mxu0 0
        %1200 = vmatprep.subr.bf16.mxu0 0
        %1201 = vmatpush1.bf16.xpose.msra.mxu0 0
        %1202 = vmatprep.subr.bf16.mxu0 0
        %1203 = vmatpush1.bf16.xpose.msra.mxu0 0
        %1204 = vmatprep.subr.bf16.mxu0 0
        %1205 = vmatpush1.bf16.xpose.msra.mxu0 0
        %1206 = vmatprep.subr.bf16.mxu0 0
        %1207 = vmatpush1.bf16.xpose.msra.mxu0 0
        %1208 = vmatprep.mubr.bf16.mxu0 0
        %1209 = vmatmul.mubr.bf16.gmra.mrb[0].mxu0 %v1171
        %v1210 = vpop.f32.mrb[0].mxu0
        %v1211 = vadd.f32 0.0, %v1210
        %v1212 = vpop.f32.mrb[0].mxu0
        %v1213 = vpop.f32.mrb[0].mxu0
        %v1214 = vpop.f32.mrb[0].mxu0
        %1215 = vdwg.mxu0
        %v1216 = vmul.f32 %v1211, 0.35355338
        %v1217 = vsel %vm1169, %v1216, -inf
        %1218 = vmax.xlane.f32.xlu0 %v1217
        %v1219 = vpop.xlane.xlu0 %1218
        %v1220 = vsub.f32 %v1216, %v1219
        %v1221 = vmul.f32 %v1220, 1.442695
        %v1222 = vpow.pop %v1221
        %v1223 = vsel %vm1169, %v1222, 0.0
        %1224 = vadd.xlane.f32.xlu0 %v1223
        %v1225 = vpop.xlane.xlu0 %1224
        %v1226 = vrcp.pop %v1225
        %v1227 = vmul.f32 %v1222, %v1226
        %v1228 = vpack.c.bf16 %v1227, %v1227
        %v1230 = vsel %vm1169, %v1228, 0
        %vm1232 = vcmask 1043456
        %v1234 = vsel %vm1232, %v1168, 0
        %1236 = vmatprep.subr.bf16.mxu0 0
        %1237 = vmatpush1.bf16.msra.mxu0 %v1234
        %1238 = vmatprep.subr.bf16.mxu0 0
        %1239 = vmatpush1.bf16.msra.mxu0 0
        %1240 = vmatprep.subr.bf16.mxu0 0
        %1241 = vmatpush1.bf16.msra.mxu0 0
        %1242 = vmatprep.subr.bf16.mxu0 0
        %1243 = vmatpush1.bf16.msra.mxu0 0
        %1244 = vmatprep.subr.bf16.mxu0 0
        %1245 = vmatpush1.bf16.msra.mxu0 0
        %1246 = vmatprep.subr.bf16.mxu0 0
        %1247 = vmatpush1.bf16.msra.mxu0 0
        %1248 = vmatprep.subr.bf16.mxu0 0
        %1249 = vmatpush1.bf16.msra.mxu0 0
        %1250 = vmatprep.subr.bf16.mxu0 0
        %1251 = vmatpush1.bf16.msra.mxu0 0
        %1252 = vmatprep.subr.bf16.mxu0 0
        %1253 = vmatpush1.bf16.msra.mxu0 0
        %1254 = vmatprep.subr.bf16.mxu0 0
        %1255 = vmatpush1.bf16.msra.mxu0 0
        %1256 = vmatprep.subr.bf16.mxu0 0
        %1257 = vmatpush1.bf16.msra.mxu0 0
        %1258 = vmatprep.subr.bf16.mxu0 0
        %1259 = vmatpush1.bf16.msra.mxu0 0
        %1260 = vmatprep.subr.bf16.mxu0 0
        %1261 = vmatpush1.bf16.msra.mxu0 0
        %1262 = vmatprep.subr.bf16.mxu0 0
        %1263 = vmatpush1.bf16.msra.mxu0 0
        %1264 = vmatprep.subr.bf16.mxu0 0
        %1265 = vmatpush1.bf16.msra.mxu0 0
        %1266 = vmatprep.subr.bf16.mxu0 0
        %1267 = vmatpush1.bf16.msra.mxu0 0
        %1268 = vmatprep.mubr.bf16.mxu0 0
        %1269 = vmatmul.mubr.bf16.gmra.mrb[0].mxu0 %v1230
        %v1270 = vpop.f32.mrb[0].mxu0
        %v1271 = vadd.f32 0.0, %v1270
        %v1272 = vpop.f32.mrb[0].mxu0
        %v1273 = vpop.f32.mrb[0].mxu0
        %v1274 = vpop.f32.mrb[0].mxu0
        %1275 = vdwg.mxu0
        %1277 = vrot.lane.b32.xlu0 %v1166, 120
        %v1278 = vpop.permute.xlu0 %1277
        %1280 = vrot.lane.b32.xlu0 %v1167, 120
        %v1281 = vpop.permute.xlu0 %1280
        %v1283 = vsel %vm1169, %v1278, 0
        %v1286 = vsel %vm1169, %v1281, 0
        %1288 = vmatprep.subr.bf16.mxu0 0
        %1289 = vmatpush1.bf16.xpose.msra.mxu0 %v1286
        %1290 = vmatprep.subr.bf16.mxu0 0
        %1291 = vmatpush1.bf16.xpose.msra.mxu0 0
        %1292 = vmatprep.subr.bf16.mxu0 0
        %1293 = vmatpush1.bf16.xpose.msra.mxu0 0
        %1294 = vmatprep.subr.bf16.mxu0 0
        %1295 = vmatpush1.bf16.xpose.msra.mxu0 0
        %1296 = vmatprep.subr.bf16.mxu0 0
        %1297 = vmatpush1.bf16.xpose.msra.mxu0 0
        %1298 = vmatprep.subr.bf16.mxu0 0
        %1299 = vmatpush1.bf16.xpose.msra.mxu0 0
        %1300 = vmatprep.subr.bf16.mxu0 0
        %1301 = vmatpush1.bf16.xpose.msra.mxu0 0
        %1302 = vmatprep.subr.bf16.mxu0 0
        %1303 = vmatpush1.bf16.xpose.msra.mxu0 0
        %1304 = vmatprep.subr.bf16.mxu0 0
        %1305 = vmatpush1.bf16.xpose.msra.mxu0 0
        %1306 = vmatprep.subr.bf16.mxu0 0
        %1307 = vmatpush1.bf16.xpose.msra.mxu0 0
        %1308 = vmatprep.subr.bf16.mxu0 0
        %1309 = vmatpush1.bf16.xpose.msra.mxu0 0
        %1310 = vmatprep.subr.bf16.mxu0 0
        %1311 = vmatpush1.bf16.xpose.msra.mxu0 0
        %1312 = vmatprep.subr.bf16.mxu0 0
        %1313 = vmatpush1.bf16.xpose.msra.mxu0 0
        %1314 = vmatprep.subr.bf16.mxu0 0
        %1315 = vmatpush1.bf16.xpose.msra.mxu0 0
        %1316 = vmatprep.subr.bf16.mxu0 0
        %1317 = vmatpush1.bf16.xpose.msra.mxu0 0
        %1318 = vmatprep.subr.bf16.mxu0 0
        %1319 = vmatpush1.bf16.xpose.msra.mxu0 0
        %1320 = vmatprep.mubr.bf16.mxu0 0
        %1321 = vmatmul.mubr.bf16.gmra.mrb[0].mxu0 %v1283
        %v1322 = vpop.f32.mrb[0].mxu0
        %v1323 = vadd.f32 0.0, %v1322
        %v1324 = vpop.f32.mrb[0].mxu0
        %v1325 = vpop.f32.mrb[0].mxu0
        %v1326 = vpop.f32.mrb[0].mxu0
        %1327 = vdwg.mxu0
        %v1328 = vmul.f32 %v1323, 0.35355338
        %v1329 = vsel %vm1169, %v1328, -inf
        %1330 = vmax.xlane.f32.xlu0 %v1329
        %v1331 = vpop.xlane.xlu0 %1330
        %v1332 = vsub.f32 %v1328, %v1331
        %v1333 = vmul.f32 %v1332, 1.442695
        %v1334 = vpow.pop %v1333
        %v1335 = vsel %vm1169, %v1334, 0.0
        %1336 = vadd.xlane.f32.xlu0 %v1335
        %v1337 = vpop.xlane.xlu0 %1336
        %v1338 = vrcp.pop %v1337
        %v1339 = vmul.f32 %v1334, %v1338
        %v1340 = vpack.c.bf16 %v1339, %v1339
        %1342 = vrot.lane.b32.xlu0 %v1168, 120
        %v1343 = vpop.permute.xlu0 %1342
        %v1345 = vsel %vm1169, %v1340, 0
        %v1348 = vsel %vm1232, %v1343, 0
        %1350 = vmatprep.subr.bf16.mxu0 0
        %1351 = vmatpush1.bf16.msra.mxu0 %v1348
        %1352 = vmatprep.subr.bf16.mxu0 0
        %1353 = vmatpush1.bf16.msra.mxu0 0
        %1354 = vmatprep.subr.bf16.mxu0 0
        %1355 = vmatpush1.bf16.msra.mxu0 0
        %1356 = vmatprep.subr.bf16.mxu0 0
        %1357 = vmatpush1.bf16.msra.mxu0 0
        %1358 = vmatprep.subr.bf16.mxu0 0
        %1359 = vmatpush1.bf16.msra.mxu0 0
        %1360 = vmatprep.subr.bf16.mxu0 0
        %1361 = vmatpush1.bf16.msra.mxu0 0
        %1362 = vmatprep.subr.bf16.mxu0 0
        %1363 = vmatpush1.bf16.msra.mxu0 0
        %1364 = vmatprep.subr.bf16.mxu0 0
        %1365 = vmatpush1.bf16.msra.mxu0 0
        %1366 = vmatprep.subr.bf16.mxu0 0
        %1367 = vmatpush1.bf16.msra.mxu0 0
        %1368 = vmatprep.subr.bf16.mxu0 0
        %1369 = vmatpush1.bf16.msra.mxu0 0
        %1370 = vmatprep.subr.bf16.mxu0 0
        %1371 = vmatpush1.bf16.msra.mxu0 0
        %1372 = vmatprep.subr.bf16.mxu0 0
        %1373 = vmatpush1.bf16.msra.mxu0 0
        %1374 = vmatprep.subr.bf16.mxu0 0
        %1375 = vmatpush1.bf16.msra.mxu0 0
        %1376 = vmatprep.subr.bf16.mxu0 0
        %1377 = vmatpush1.bf16.msra.mxu0 0
        %1378 = vmatprep.subr.bf16.mxu0 0
        %1379 = vmatpush1.bf16.msra.mxu0 0
        %1380 = vmatprep.subr.bf16.mxu0 0
        %1381 = vmatpush1.bf16.msra.mxu0 0
        %1382 = vmatprep.mubr.bf16.mxu0 0
        %1383 = vmatmul.mubr.bf16.gmra.mrb[0].mxu0 %v1345
        %v1384 = vpop.f32.mrb[0].mxu0
        %v1385 = vadd.f32 0.0, %v1384
        %v1386 = vpop.f32.mrb[0].mxu0
        %v1387 = vpop.f32.mrb[0].mxu0
        %v1388 = vpop.f32.mrb[0].mxu0
        %1389 = vdwg.mxu0
        %1390 = vrot.lane.b32.xlu0 %v1166, 112
        %v1391 = vpop.permute.xlu0 %1390
        %1392 = vrot.lane.b32.xlu0 %v1167, 112
        %v1393 = vpop.permute.xlu0 %1392
        %v1395 = vsel %vm1169, %v1391, 0
        %v1398 = vsel %vm1169, %v1393, 0
        %1400 = vmatprep.subr.bf16.mxu0 0
        %1401 = vmatpush1.bf16.xpose.msra.mxu0 %v1398
        %1402 = vmatprep.subr.bf16.mxu0 0
        %1403 = vmatpush1.bf16.xpose.msra.mxu0 0
        %1404 = vmatprep.subr.bf16.mxu0 0
        %1405 = vmatpush1.bf16.xpose.msra.mxu0 0
        %1406 = vmatprep.subr.bf16.mxu0 0
        %1407 = vmatpush1.bf16.xpose.msra.mxu0 0
        %1408 = vmatprep.subr.bf16.mxu0 0
        %1409 = vmatpush1.bf16.xpose.msra.mxu0 0
        %1410 = vmatprep.subr.bf16.mxu0 0
        %1411 = vmatpush1.bf16.xpose.msra.mxu0 0
        %1412 = vmatprep.subr.bf16.mxu0 0
        %1413 = vmatpush1.bf16.xpose.msra.mxu0 0
        %1414 = vmatprep.subr.bf16.mxu0 0
        %1415 = vmatpush1.bf16.xpose.msra.mxu0 0
        %1416 = vmatprep.subr.bf16.mxu0 0
        %1417 = vmatpush1.bf16.xpose.msra.mxu0 0
        %1418 = vmatprep.subr.bf16.mxu0 0
        %1419 = vmatpush1.bf16.xpose.msra.mxu0 0
        %1420 = vmatprep.subr.bf16.mxu0 0
        %1421 = vmatpush1.bf16.xpose.msra.mxu0 0
        %1422 = vmatprep.subr.bf16.mxu0 0
        %1423 = vmatpush1.bf16.xpose.msra.mxu0 0
        %1424 = vmatprep.subr.bf16.mxu0 0
        %1425 = vmatpush1.bf16.xpose.msra.mxu0 0
        %1426 = vmatprep.subr.bf16.mxu0 0
        %1427 = vmatpush1.bf16.xpose.msra.mxu0 0
        %1428 = vmatprep.subr.bf16.mxu0 0
        %1429 = vmatpush1.bf16.xpose.msra.mxu0 0
        %1430 = vmatprep.subr.bf16.mxu0 0
        %1431 = vmatpush1.bf16.xpose.msra.mxu0 0
        %1432 = vmatprep.mubr.bf16.mxu0 0
        %1433 = vmatmul.mubr.bf16.gmra.mrb[0].mxu0 %v1395
        %v1434 = vpop.f32.mrb[0].mxu0
        %v1435 = vadd.f32 0.0, %v1434
        %v1436 = vpop.f32.mrb[0].mxu0
        %v1437 = vpop.f32.mrb[0].mxu0
        %v1438 = vpop.f32.mrb[0].mxu0
        %1439 = vdwg.mxu0
        %v1440 = vmul.f32 %v1435, 0.35355338
        %v1441 = vsel %vm1169, %v1440, -inf
        %1442 = vmax.xlane.f32.xlu0 %v1441
        %v1443 = vpop.xlane.xlu0 %1442
        %v1444 = vsub.f32 %v1440, %v1443
        %v1445 = vmul.f32 %v1444, 1.442695
        %v1446 = vpow.pop %v1445
        %v1447 = vsel %vm1169, %v1446, 0.0
        %1448 = vadd.xlane.f32.xlu0 %v1447
        %v1449 = vpop.xlane.xlu0 %1448
        %v1450 = vrcp.pop %v1449
        %v1451 = vmul.f32 %v1446, %v1450
        %v1452 = vpack.c.bf16 %v1451, %v1451
        %1453 = vrot.lane.b32.xlu0 %v1168, 112
        %v1454 = vpop.permute.xlu0 %1453
        %v1456 = vsel %vm1169, %v1452, 0
        %v1459 = vsel %vm1232, %v1454, 0
        %1461 = vmatprep.subr.bf16.mxu0 0
        %1462 = vmatpush1.bf16.msra.mxu0 %v1459
        %1463 = vmatprep.subr.bf16.mxu0 0
        %1464 = vmatpush1.bf16.msra.mxu0 0
        %1465 = vmatprep.subr.bf16.mxu0 0
        %1466 = vmatpush1.bf16.msra.mxu0 0
        %1467 = vmatprep.subr.bf16.mxu0 0
        %1468 = vmatpush1.bf16.msra.mxu0 0
        %1469 = vmatprep.subr.bf16.mxu0 0
        %1470 = vmatpush1.bf16.msra.mxu0 0
        %1471 = vmatprep.subr.bf16.mxu0 0
        %1472 = vmatpush1.bf16.msra.mxu0 0
        %1473 = vmatprep.subr.bf16.mxu0 0
        %1474 = vmatpush1.bf16.msra.mxu0 0
        %1475 = vmatprep.subr.bf16.mxu0 0
        %1476 = vmatpush1.bf16.msra.mxu0 0
        %1477 = vmatprep.subr.bf16.mxu0 0
        %1478 = vmatpush1.bf16.msra.mxu0 0
        %1479 = vmatprep.subr.bf16.mxu0 0
        %1480 = vmatpush1.bf16.msra.mxu0 0
        %1481 = vmatprep.subr.bf16.mxu0 0
        %1482 = vmatpush1.bf16.msra.mxu0 0
        %1483 = vmatprep.subr.bf16.mxu0 0
        %1484 = vmatpush1.bf16.msra.mxu0 0
        %1485 = vmatprep.subr.bf16.mxu0 0
        %1486 = vmatpush1.bf16.msra.mxu0 0
        %1487 = vmatprep.subr.bf16.mxu0 0
        %1488 = vmatpush1.bf16.msra.mxu0 0
        %1489 = vmatprep.subr.bf16.mxu0 0
        %1490 = vmatpush1.bf16.msra.mxu0 0
        %1491 = vmatprep.subr.bf16.mxu0 0
        %1492 = vmatpush1.bf16.msra.mxu0 0
        %1493 = vmatprep.mubr.bf16.mxu0 0
        %1494 = vmatmul.mubr.bf16.gmra.mrb[0].mxu0 %v1456
        %v1495 = vpop.f32.mrb[0].mxu0
        %v1496 = vadd.f32 0.0, %v1495
        %v1497 = vpop.f32.mrb[0].mxu0
        %v1498 = vpop.f32.mrb[0].mxu0
        %v1499 = vpop.f32.mrb[0].mxu0
        %1500 = vdwg.mxu0
        %1501 = vrot.lane.b32.xlu0 %v1166, 104
        %v1502 = vpop.permute.xlu0 %1501
        %1503 = vrot.lane.b32.xlu0 %v1167, 104
        %v1504 = vpop.permute.xlu0 %1503
        %v1506 = vsel %vm1169, %v1502, 0
        %v1509 = vsel %vm1169, %v1504, 0
        %1511 = vmatprep.subr.bf16.mxu0 0
        %1512 = vmatpush1.bf16.xpose.msra.mxu0 %v1509
        %1513 = vmatprep.subr.bf16.mxu0 0
        %1514 = vmatpush1.bf16.xpose.msra.mxu0 0
        %1515 = vmatprep.subr.bf16.mxu0 0
        %1516 = vmatpush1.bf16.xpose.msra.mxu0 0
        %1517 = vmatprep.subr.bf16.mxu0 0
        %1518 = vmatpush1.bf16.xpose.msra.mxu0 0
        %1519 = vmatprep.subr.bf16.mxu0 0
        %1520 = vmatpush1.bf16.xpose.msra.mxu0 0
        %1521 = vmatprep.subr.bf16.mxu0 0
        %1522 = vmatpush1.bf16.xpose.msra.mxu0 0
        %1523 = vmatprep.subr.bf16.mxu0 0
        %1524 = vmatpush1.bf16.xpose.msra.mxu0 0
        %1525 = vmatprep.subr.bf16.mxu0 0
        %1526 = vmatpush1.bf16.xpose.msra.mxu0 0
        %1527 = vmatprep.subr.bf16.mxu0 0
        %1528 = vmatpush1.bf16.xpose.msra.mxu0 0
        %1529 = vmatprep.subr.bf16.mxu0 0
        %1530 = vmatpush1.bf16.xpose.msra.mxu0 0
        %1531 = vmatprep.subr.bf16.mxu0 0
        %1532 = vmatpush1.bf16.xpose.msra.mxu0 0
        %1533 = vmatprep.subr.bf16.mxu0 0
        %1534 = vmatpush1.bf16.xpose.msra.mxu0 0
        %1535 = vmatprep.subr.bf16.mxu0 0
        %1536 = vmatpush1.bf16.xpose.msra.mxu0 0
        %1537 = vmatprep.subr.bf16.mxu0 0
        %1538 = vmatpush1.bf16.xpose.msra.mxu0 0
        %1539 = vmatprep.subr.bf16.mxu0 0
        %1540 = vmatpush1.bf16.xpose.msra.mxu0 0
        %1541 = vmatprep.subr.bf16.mxu0 0
        %1542 = vmatpush1.bf16.xpose.msra.mxu0 0
        %1543 = vmatprep.mubr.bf16.mxu0 0
        %1544 = vmatmul.mubr.bf16.gmra.mrb[0].mxu0 %v1506
        %v1545 = vpop.f32.mrb[0].mxu0
        %v1546 = vadd.f32 0.0, %v1545
        %v1547 = vpop.f32.mrb[0].mxu0
        %v1548 = vpop.f32.mrb[0].mxu0
        %v1549 = vpop.f32.mrb[0].mxu0
        %1550 = vdwg.mxu0
        %v1551 = vmul.f32 %v1546, 0.35355338
        %v1552 = vsel %vm1169, %v1551, -inf
        %1553 = vmax.xlane.f32.xlu0 %v1552
        %v1554 = vpop.xlane.xlu0 %1553
        %v1555 = vsub.f32 %v1551, %v1554
        %v1556 = vmul.f32 %v1555, 1.442695
        %v1557 = vpow.pop %v1556
        %v1558 = vsel %vm1169, %v1557, 0.0
        %1559 = vadd.xlane.f32.xlu0 %v1558
        %v1560 = vpop.xlane.xlu0 %1559
        %v1561 = vrcp.pop %v1560
        %v1562 = vmul.f32 %v1557, %v1561
        %v1563 = vpack.c.bf16 %v1562, %v1562
        %1564 = vrot.lane.b32.xlu0 %v1168, 104
        %v1565 = vpop.permute.xlu0 %1564
        %v1567 = vsel %vm1169, %v1563, 0
        %v1570 = vsel %vm1232, %v1565, 0
        %1572 = vmatprep.subr.bf16.mxu0 0
        %1573 = vmatpush1.bf16.msra.mxu0 %v1570
        %1574 = vmatprep.subr.bf16.mxu0 0
        %1575 = vmatpush1.bf16.msra.mxu0 0
        %1576 = vmatprep.subr.bf16.mxu0 0
        %1577 = vmatpush1.bf16.msra.mxu0 0
        %1578 = vmatprep.subr.bf16.mxu0 0
        %1579 = vmatpush1.bf16.msra.mxu0 0
        %1580 = vmatprep.subr.bf16.mxu0 0
        %1581 = vmatpush1.bf16.msra.mxu0 0
        %1582 = vmatprep.subr.bf16.mxu0 0
        %1583 = vmatpush1.bf16.msra.mxu0 0
        %1584 = vmatprep.subr.bf16.mxu0 0
        %1585 = vmatpush1.bf16.msra.mxu0 0
        %1586 = vmatprep.subr.bf16.mxu0 0
        %1587 = vmatpush1.bf16.msra.mxu0 0
        %1588 = vmatprep.subr.bf16.mxu0 0
        %1589 = vmatpush1.bf16.msra.mxu0 0
        %1590 = vmatprep.subr.bf16.mxu0 0
        %1591 = vmatpush1.bf16.msra.mxu0 0
        %1592 = vmatprep.subr.bf16.mxu0 0
        %1593 = vmatpush1.bf16.msra.mxu0 0
        %1594 = vmatprep.subr.bf16.mxu0 0
        %1595 = vmatpush1.bf16.msra.mxu0 0
        %1596 = vmatprep.subr.bf16.mxu0 0
        %1597 = vmatpush1.bf16.msra.mxu0 0
        %1598 = vmatprep.subr.bf16.mxu0 0
        %1599 = vmatpush1.bf16.msra.mxu0 0
        %1600 = vmatprep.subr.bf16.mxu0 0
        %1601 = vmatpush1.bf16.msra.mxu0 0
        %1602 = vmatprep.subr.bf16.mxu0 0
        %1603 = vmatpush1.bf16.msra.mxu0 0
        %1604 = vmatprep.mubr.bf16.mxu0 0
        %1605 = vmatmul.mubr.bf16.gmra.mrb[0].mxu0 %v1567
        %v1606 = vpop.f32.mrb[0].mxu0
        %v1607 = vadd.f32 0.0, %v1606
        %v1608 = vpop.f32.mrb[0].mxu0
        %v1609 = vpop.f32.mrb[0].mxu0
        %v1610 = vpop.f32.mrb[0].mxu0
        %1611 = vdwg.mxu0
        %1613 = vrot.lane.b32.xlu0 %v1385, 8
        %v1614 = vpop.permute.xlu0 %1613
        %1617 = vrot.lane.b32.xlu0 %v1496, 16
        %v1618 = vpop.permute.xlu0 %1617
        %1621 = vrot.lane.b32.xlu0 %v1607, 24
        %v1622 = vpop.permute.xlu0 %1621
        %v1624 = vsel %vm1169, %v1271, %v1614
        %vm1625 = vcmask 130048
        %v1626 = vsel %vm1625, %v1624, %v1618
        %vm1627 = vcmask 195584
        %v1628 = vsel %vm1627, %v1626, %v1622
        %v1629 = vpack.c.bf16 %v1628, %v1628
        %v1630 = vld [vmem:[#allocation18] sm:$0xf]
        %v1631 = vld [vmem:[#allocation18 + $0x4] sm:$0xf]
        %v1632 = vld [vmem:[#allocation18 + $0x8] sm:$0xf]
        %v1633 = vld [vmem:[#allocation18 + $0xc] sm:$0xf]
        %v1634 = vld [vmem:[#allocation19] sm:$0x1]
        %v1636 = vlaneseq
        %v1637 = vshrl.u32 %v1636, 7
        %v1638 = vsub.s32 0, %v1637
        %v1639 = vrot.slane %v1634, %v1638
        %v1645 = vunpack.c.l.b16 %v1630
        %v1646 = vunpack.c.l.b16 %v1631
        %v1647 = vunpack.c.l.b16 %v1632
        %v1648 = vunpack.c.l.b16 %v1633
        %v1649 = vpack.c.b16 %v1646, %v1645
        %v1650 = vpack.c.b16 %v1648, %v1647
        %v1654 = vsel %vm993, %v1629, 0
        %1656 = vmatprep.subr.bf16.mxu0 0
        %1657 = vmatpush1.bf16.msra.mxu0 %v1649
        %1658 = vmatprep.subr.bf16.mxu0 0
        %1659 = vmatpush1.bf16.msra.mxu0 %v1650
        %1660 = vmatprep.subr.bf16.mxu0 0
        %1661 = vmatpush1.bf16.msra.mxu0 0
        %1662 = vmatprep.subr.bf16.mxu0 0
        %1663 = vmatpush1.bf16.msra.mxu0 0
        %1664 = vmatprep.subr.bf16.mxu0 0
        %1665 = vmatpush1.bf16.msra.mxu0 0
        %1666 = vmatprep.subr.bf16.mxu0 0
        %1667 = vmatpush1.bf16.msra.mxu0 0
        %1668 = vmatprep.subr.bf16.mxu0 0
        %1669 = vmatpush1.bf16.msra.mxu0 0
        %1670 = vmatprep.subr.bf16.mxu0 0
        %1671 = vmatpush1.bf16.msra.mxu0 0
        %1672 = vmatprep.subr.bf16.mxu0 0
        %1673 = vmatpush1.bf16.msra.mxu0 0
        %1674 = vmatprep.subr.bf16.mxu0 0
        %1675 = vmatpush1.bf16.msra.mxu0 0
        %1676 = vmatprep.subr.bf16.mxu0 0
        %1677 = vmatpush1.bf16.msra.mxu0 0
        %1678 = vmatprep.subr.bf16.mxu0 0
        %1679 = vmatpush1.bf16.msra.mxu0 0
        %1680 = vmatprep.subr.bf16.mxu0 0
        %1681 = vmatpush1.bf16.msra.mxu0 0
        %1682 = vmatprep.subr.bf16.mxu0 0
        %1683 = vmatpush1.bf16.msra.mxu0 0
        %1684 = vmatprep.subr.bf16.mxu0 0
        %1685 = vmatpush1.bf16.msra.mxu0 0
        %1686 = vmatprep.subr.bf16.mxu0 0
        %1687 = vmatpush1.bf16.msra.mxu0 0
        %1688 = vmatprep.mubr.bf16.mxu0 0
        %1689 = vmatmul.mubr.bf16.gmra.mrb[0].mxu0 %v1654
        %v1690 = vpop.f32.mrb[0].mxu0
        %v1691 = vadd.f32 %v1639, %v1690
        %v1692 = vpop.f32.mrb[0].mxu0
        %v1693 = vpop.f32.mrb[0].mxu0
        %v1694 = vpop.f32.mrb[0].mxu0
        %1695 = vdwg.mxu0
        %v1696 = vadd.f32 %v966, %v1691
        %v1697 = vld [vmem:[#allocation21] sm:$0x1]
        %v1698 = vld [vmem:[#allocation22] sm:$0x1]
        %v1699 = vsel %vm993, %v1696, 0.0
        %1700 = vadd.xlane.f32.xlu0 %v1699
        %v1701 = vpop.xlane.xlu0 %1700
        %v1702 = vrcp.pop 32.0
        %v1703 = vmul.f32 %v1701, %v1702
        %v1704 = vsub.f32 %v1696, %v1703
        %v1705 = vmul.f32 %v1704, %v1704
        %v1706 = vsel %vm993, %v1705, 0.0
        %1707 = vadd.xlane.f32.xlu0 %v1706
        %v1708 = vpop.xlane.xlu0 %1707
        %v1709 = vmul.f32 %v1708, %v1702
        %v1710 = vadd.f32 %v1709, 1e-05
        %v1711 = vrsqrt.pop %v1710
        %v1712 = vmul.f32 %v1704, %v1711
        %v1714 = vlaneseq
        %v1715 = vshrl.u32 %v1714, 7
        %v1716 = vsub.s32 0, %v1715
        %v1717 = vrot.slane %v1697, %v1716
        %v1719 = vmul.f32 %v1712, %v1717
        %v1721 = vlaneseq
        %v1722 = vshrl.u32 %v1721, 7
        %v1723 = vsub.s32 0, %v1722
        %v1724 = vrot.slane %v1698, %v1723
        %v1726 = vadd.f32 %v1719, %v1724
        %1727 = vst.msk [vmem:[#allocation2] sm:$0xff] %vm993, 0.0
        %vm1728 = vcmask 257024
        %1729 = vst.msk [vmem:[#allocation2 + $0x8] sm:$0xf] %vm1728, 0.0
        %1730 = vst.msk [vmem:[#allocation2 + $0x2] sm:$0xff] %vm993, %v1726
        %v1731 = vpack.c.bf16 %v1726, %v1726
        %v1732 = vld [vmem:[#allocation24] sm:$0xf]
        %v1733 = vld [vmem:[#allocation24 + $0x4] sm:$0xf]
        %v1734 = vld [vmem:[#allocation24 + $0x8] sm:$0xf]
        %v1735 = vld [vmem:[#allocation24 + $0xc] sm:$0xf]
        %v1736 = vld [vmem:[#allocation25] sm:$0x1]
        %v1738 = vlaneseq
        %v1739 = vshrl.u32 %v1738, 7
        %v1740 = vsub.s32 0, %v1739
        %v1741 = vrot.slane %v1736, %v1740
        %v1747 = vunpack.c.l.b16 %v1732
        %v1748 = vunpack.c.l.b16 %v1733
        %v1749 = vunpack.c.l.b16 %v1734
        %v1750 = vunpack.c.l.b16 %v1735
        %v1751 = vpack.c.b16 %v1748, %v1747
        %v1752 = vpack.c.b16 %v1750, %v1749
        %v1756 = vsel %vm993, %v1731, 0
        %1758 = vmatprep.subr.bf16.mxu0 0
        %1759 = vmatpush1.bf16.msra.mxu0 %v1751
        %1760 = vmatprep.subr.bf16.mxu0 0
        %1761 = vmatpush1.bf16.msra.mxu0 %v1752
        %1762 = vmatprep.subr.bf16.mxu0 0
        %1763 = vmatpush1.bf16.msra.mxu0 0
        %1764 = vmatprep.subr.bf16.mxu0 0
        %1765 = vmatpush1.bf16.msra.mxu0 0
        %1766 = vmatprep.subr.bf16.mxu0 0
        %1767 = vmatpush1.bf16.msra.mxu0 0
        %1768 = vmatprep.subr.bf16.mxu0 0
        %1769 = vmatpush1.bf16.msra.mxu0 0
        %1770 = vmatprep.subr.bf16.mxu0 0
        %1771 = vmatpush1.bf16.msra.mxu0 0
        %1772 = vmatprep.subr.bf16.mxu0 0
        %1773 = vmatpush1.bf16.msra.mxu0 0
        %1774 = vmatprep.subr.bf16.mxu0 0
        %1775 = vmatpush1.bf16.msra.mxu0 0
        %1776 = vmatprep.subr.bf16.mxu0 0
        %1777 = vmatpush1.bf16.msra.mxu0 0
        %1778 = vmatprep.subr.bf16.mxu0 0
        %1779 = vmatpush1.bf16.msra.mxu0 0
        %1780 = vmatprep.subr.bf16.mxu0 0
        %1781 = vmatpush1.bf16.msra.mxu0 0
        %1782 = vmatprep.subr.bf16.mxu0 0
        %1783 = vmatpush1.bf16.msra.mxu0 0
        %1784 = vmatprep.subr.bf16.mxu0 0
        %1785 = vmatpush1.bf16.msra.mxu0 0
        %1786 = vmatprep.subr.bf16.mxu0 0
        %1787 = vmatpush1.bf16.msra.mxu0 0
        %1788 = vmatprep.subr.bf16.mxu0 0
        %1789 = vmatpush1.bf16.msra.mxu0 0
        %1790 = vmatprep.mubr.bf16.mxu0 0
        %1791 = vmatmul.mubr.bf16.gmra.mrb[0].mxu0 %v1756
        %v1792 = vpop.f32.mrb[0].mxu0
        %v1793 = vadd.f32 %v1741, %v1792
        %v1794 = vpop.f32.mrb[0].mxu0
        %v1795 = vpop.f32.mrb[0].mxu0
        %v1796 = vpop.f32.mrb[0].mxu0
        %1797 = vdwg.mxu0
        %v1798 = vld [vmem:[#allocation27] sm:$0x1]
        %v1799 = vld [vmem:[#allocation2 + $0x1] sm:$0xff]
        %v1800 = vpack.c.bf16 %v1799, %v1799
        %v1801 = vld [vmem:[%s14] sm:$0xf]
        %v1802 = vld [vmem:[%s14 + $0x4] sm:$0xf]
        %v1803 = vld [vmem:[%s14 + $0x8] sm:$0xf]
        %v1804 = vld [vmem:[%s14 + $0xc] sm:$0xf]
        %s1805 = scalar_lea.vmem %s14, 16
        %v1806 = vld [vmem:[%s1805] sm:$0xf]
        %v1807 = vld [vmem:[%s1805 + $0x4] sm:$0xf]
        %v1808 = vld [vmem:[%s1805 + $0x8] sm:$0xf]
        %v1809 = vld [vmem:[%s1805 + $0xc] sm:$0xf]
        %v1814 = vunpack.c.l.b16 %v1806
        %v1815 = vunpack.c.l.b16 %v1807
        %v1816 = vunpack.c.l.b16 %v1808
        %v1817 = vunpack.c.l.b16 %v1809
        %v1818 = vpack.c.b16 %v1815, %v1814
        %v1819 = vpack.c.b16 %v1817, %v1816
        %1822 = vmatprep.subr.bf16.mxu0 0
        %1823 = vmatpush1.bf16.msra.mxu0 %v1818
        %1824 = vmatprep.subr.bf16.mxu0 0
        %1825 = vmatpush1.bf16.msra.mxu0 %v1819
        %1826 = vmatprep.subr.bf16.mxu0 0
        %1827 = vmatpush1.bf16.msra.mxu0 0
        %1828 = vmatprep.subr.bf16.mxu0 0
        %1829 = vmatpush1.bf16.msra.mxu0 0
        %1830 = vmatprep.subr.bf16.mxu0 0
        %1831 = vmatpush1.bf16.msra.mxu0 0
        %1832 = vmatprep.subr.bf16.mxu0 0
        %1833 = vmatpush1.bf16.msra.mxu0 0
        %1834 = vmatprep.subr.bf16.mxu0 0
        %1835 = vmatpush1.bf16.msra.mxu0 0
        %1836 = vmatprep.subr.bf16.mxu0 0
        %1837 = vmatpush1.bf16.msra.mxu0 0
        %1838 = vmatprep.subr.bf16.mxu0 0
        %1839 = vmatpush1.bf16.msra.mxu0 0
        %1840 = vmatprep.subr.bf16.mxu0 0
        %1841 = vmatpush1.bf16.msra.mxu0 0
        %1842 = vmatprep.subr.bf16.mxu0 0
        %1843 = vmatpush1.bf16.msra.mxu0 0
        %1844 = vmatprep.subr.bf16.mxu0 0
        %1845 = vmatpush1.bf16.msra.mxu0 0
        %1846 = vmatprep.subr.bf16.mxu0 0
        %1847 = vmatpush1.bf16.msra.mxu0 0
        %1848 = vmatprep.subr.bf16.mxu0 0
        %1849 = vmatpush1.bf16.msra.mxu0 0
        %1850 = vmatprep.subr.bf16.mxu0 0
        %1851 = vmatpush1.bf16.msra.mxu0 0
        %1852 = vmatprep.subr.bf16.mxu0 0
        %1853 = vmatpush1.bf16.msra.mxu0 0
        %1854 = vmatprep.mubr.bf16.mxu0 0
        %1855 = vmatmul.mubr.bf16.gmra.mrb[0].mxu0 %v1756
        %v1856 = vpop.f32.mrb[0].mxu0
        %v1857 = vadd.f32 0.0, %v1856
        %v1858 = vpop.f32.mrb[0].mxu0
        %v1859 = vpop.f32.mrb[0].mxu0
        %v1860 = vpop.f32.mrb[0].mxu0
        %1861 = vdwg.mxu0
        %v1866 = vunpack.c.l.b16 %v1801
        %v1867 = vunpack.c.l.b16 %v1802
        %v1868 = vunpack.c.l.b16 %v1803
        %v1869 = vunpack.c.l.b16 %v1804
        %v1870 = vpack.c.b16 %v1867, %v1866
        %v1871 = vpack.c.b16 %v1869, %v1868
        %v1875 = vsel %vm993, %v1800, 0
        %1877 = vmatprep.subr.bf16.mxu0 0
        %1878 = vmatpush1.bf16.msra.mxu0 %v1870
        %1879 = vmatprep.subr.bf16.mxu0 0
        %1880 = vmatpush1.bf16.msra.mxu0 %v1871
        %1881 = vmatprep.subr.bf16.mxu0 0
        %1882 = vmatpush1.bf16.msra.mxu0 0
        %1883 = vmatprep.subr.bf16.mxu0 0
        %1884 = vmatpush1.bf16.msra.mxu0 0
        %1885 = vmatprep.subr.bf16.mxu0 0
        %1886 = vmatpush1.bf16.msra.mxu0 0
        %1887 = vmatprep.subr.bf16.mxu0 0
        %1888 = vmatpush1.bf16.msra.mxu0 0
        %1889 = vmatprep.subr.bf16.mxu0 0
        %1890 = vmatpush1.bf16.msra.mxu0 0
        %1891 = vmatprep.subr.bf16.mxu0 0
        %1892 = vmatpush1.bf16.msra.mxu0 0
        %1893 = vmatprep.subr.bf16.mxu0 0
        %1894 = vmatpush1.bf16.msra.mxu0 0
        %1895 = vmatprep.subr.bf16.mxu0 0
        %1896 = vmatpush1.bf16.msra.mxu0 0
        %1897 = vmatprep.subr.bf16.mxu0 0
        %1898 = vmatpush1.bf16.msra.mxu0 0
        %1899 = vmatprep.subr.bf16.mxu0 0
        %1900 = vmatpush1.bf16.msra.mxu0 0
        %1901 = vmatprep.subr.bf16.mxu0 0
        %1902 = vmatpush1.bf16.msra.mxu0 0
        %1903 = vmatprep.subr.bf16.mxu0 0
        %1904 = vmatpush1.bf16.msra.mxu0 0
        %1905 = vmatprep.subr.bf16.mxu0 0
        %1906 = vmatpush1.bf16.msra.mxu0 0
        %1907 = vmatprep.subr.bf16.mxu0 0
        %1908 = vmatpush1.bf16.msra.mxu0 0
        %1909 = vmatprep.mubr.bf16.mxu0 0
        %1910 = vmatmul.mubr.bf16.gmra.mrb[0].mxu0 %v1875
        %v1911 = vpop.f32.mrb[0].mxu0
        %v1912 = vadd.f32 %v1857, %v1911
        %v1913 = vpop.f32.mrb[0].mxu0
        %v1914 = vpop.f32.mrb[0].mxu0
        %v1915 = vpop.f32.mrb[0].mxu0
        %1916 = vdwg.mxu0
        %v1917 = vld [vmem:[#allocation2 + $0x3] sm:$0xff]
        %v1918 = vpack.c.bf16 %v1917, %v1917
        %s1919 = scalar_lea.vmem %s14, 32
        %v1920 = vld [vmem:[%s1919] sm:$0xf]
        %v1921 = vld [vmem:[%s1919 + $0x4] sm:$0xf]
        %v1922 = vld [vmem:[%s1919 + $0x8] sm:$0xf]
        %v1923 = vld [vmem:[%s1919 + $0xc] sm:$0xf]
        %v1928 = vunpack.c.l.b16 %v1920
        %v1929 = vunpack.c.l.b16 %v1921
        %v1930 = vunpack.c.l.b16 %v1922
        %v1931 = vunpack.c.l.b16 %v1923
        %v1932 = vpack.c.b16 %v1929, %v1928
        %v1933 = vpack.c.b16 %v1931, %v1930
        %v1937 = vsel %vm993, %v1918, 0
        %1939 = vmatprep.subr.bf16.mxu0 0
        %1940 = vmatpush1.bf16.msra.mxu0 %v1932
        %1941 = vmatprep.subr.bf16.mxu0 0
        %1942 = vmatpush1.bf16.msra.mxu0 %v1933
        %1943 = vmatprep.subr.bf16.mxu0 0
        %1944 = vmatpush1.bf16.msra.mxu0 0
        %1945 = vmatprep.subr.bf16.mxu0 0
        %1946 = vmatpush1.bf16.msra.mxu0 0
        %1947 = vmatprep.subr.bf16.mxu0 0
        %1948 = vmatpush1.bf16.msra.mxu0 0
        %1949 = vmatprep.subr.bf16.mxu0 0
        %1950 = vmatpush1.bf16.msra.mxu0 0
        %1951 = vmatprep.subr.bf16.mxu0 0
        %1952 = vmatpush1.bf16.msra.mxu0 0
        %1953 = vmatprep.subr.bf16.mxu0 0
        %1954 = vmatpush1.bf16.msra.mxu0 0
        %1955 = vmatprep.subr.bf16.mxu0 0
        %1956 = vmatpush1.bf16.msra.mxu0 0
        %1957 = vmatprep.subr.bf16.mxu0 0
        %1958 = vmatpush1.bf16.msra.mxu0 0
        %1959 = vmatprep.subr.bf16.mxu0 0
        %1960 = vmatpush1.bf16.msra.mxu0 0
        %1961 = vmatprep.subr.bf16.mxu0 0
        %1962 = vmatpush1.bf16.msra.mxu0 0
        %1963 = vmatprep.subr.bf16.mxu0 0
        %1964 = vmatpush1.bf16.msra.mxu0 0
        %1965 = vmatprep.subr.bf16.mxu0 0
        %1966 = vmatpush1.bf16.msra.mxu0 0
        %1967 = vmatprep.subr.bf16.mxu0 0
        %1968 = vmatpush1.bf16.msra.mxu0 0
        %1969 = vmatprep.subr.bf16.mxu0 0
        %1970 = vmatpush1.bf16.msra.mxu0 0
        %1971 = vmatprep.mubr.bf16.mxu0 0
        %1972 = vmatmul.mubr.bf16.gmra.mrb[0].mxu0 %v1937
        %v1973 = vpop.f32.mrb[0].mxu0
        %v1974 = vadd.f32 0.0, %v1973
        %v1975 = vpop.f32.mrb[0].mxu0
        %v1976 = vpop.f32.mrb[0].mxu0
        %v1977 = vpop.f32.mrb[0].mxu0
        %1978 = vdwg.mxu0
        %v1979 = vadd.f32 %v1912, %v1974
        %v1981 = vlaneseq
        %v1982 = vshrl.u32 %v1981, 7
        %v1983 = vsub.s32 0, %v1982
        %v1984 = vrot.slane %v1798, %v1983
        %v1986 = vadd.f32 %v1984, %v1979
        %v1987 = vld [vmem:[%s17] sm:$0x1]
        %v1988 = vld [vmem:[#allocation2] sm:$0xff]
        %v1989 = vpack.c.bf16 %v1988, %v1988
        %v1990 = vld [vmem:[#allocation28] sm:$0xf]
        %v1991 = vld [vmem:[#allocation28 + $0x4] sm:$0xf]
        %v1992 = vld [vmem:[#allocation28 + $0x8] sm:$0xf]
        %v1993 = vld [vmem:[#allocation28 + $0xc] sm:$0xf]
        %s1994 = scalar_lea.vmem [#allocation28], 16
        %v1995 = vld [vmem:[%s1994] sm:$0xf]
        %v1996 = vld [vmem:[%s1994 + $0x4] sm:$0xf]
        %v1997 = vld [vmem:[%s1994 + $0x8] sm:$0xf]
        %v1998 = vld [vmem:[%s1994 + $0xc] sm:$0xf]
        %v2003 = vunpack.c.l.b16 %v1995
        %v2004 = vunpack.c.l.b16 %v1996
        %v2005 = vunpack.c.l.b16 %v1997
        %v2006 = vunpack.c.l.b16 %v1998
        %v2007 = vpack.c.b16 %v2004, %v2003
        %v2008 = vpack.c.b16 %v2006, %v2005
        %2011 = vmatprep.subr.bf16.mxu0 0
        %2012 = vmatpush1.bf16.msra.mxu0 %v2007
        %2013 = vmatprep.subr.bf16.mxu0 0
        %2014 = vmatpush1.bf16.msra.mxu0 %v2008
        %2015 = vmatprep.subr.bf16.mxu0 0
        %2016 = vmatpush1.bf16.msra.mxu0 0
        %2017 = vmatprep.subr.bf16.mxu0 0
        %2018 = vmatpush1.bf16.msra.mxu0 0
        %2019 = vmatprep.subr.bf16.mxu0 0
        %2020 = vmatpush1.bf16.msra.mxu0 0
        %2021 = vmatprep.subr.bf16.mxu0 0
        %2022 = vmatpush1.bf16.msra.mxu0 0
        %2023 = vmatprep.subr.bf16.mxu0 0
        %2024 = vmatpush1.bf16.msra.mxu0 0
        %2025 = vmatprep.subr.bf16.mxu0 0
        %2026 = vmatpush1.bf16.msra.mxu0 0
        %2027 = vmatprep.subr.bf16.mxu0 0
        %2028 = vmatpush1.bf16.msra.mxu0 0
        %2029 = vmatprep.subr.bf16.mxu0 0
        %2030 = vmatpush1.bf16.msra.mxu0 0
        %2031 = vmatprep.subr.bf16.mxu0 0
        %2032 = vmatpush1.bf16.msra.mxu0 0
        %2033 = vmatprep.subr.bf16.mxu0 0
        %2034 = vmatpush1.bf16.msra.mxu0 0
        %2035 = vmatprep.subr.bf16.mxu0 0
        %2036 = vmatpush1.bf16.msra.mxu0 0
        %2037 = vmatprep.subr.bf16.mxu0 0
        %2038 = vmatpush1.bf16.msra.mxu0 0
        %2039 = vmatprep.subr.bf16.mxu0 0
        %2040 = vmatpush1.bf16.msra.mxu0 0
        %2041 = vmatprep.subr.bf16.mxu0 0
        %2042 = vmatpush1.bf16.msra.mxu0 0
        %2043 = vmatprep.mubr.bf16.mxu0 0
        %2044 = vmatmul.mubr.bf16.gmra.mrb[0].mxu0 %v1875
        %v2045 = vpop.f32.mrb[0].mxu0
        %v2046 = vadd.f32 0.0, %v2045
        %v2047 = vpop.f32.mrb[0].mxu0
        %v2048 = vpop.f32.mrb[0].mxu0
        %v2049 = vpop.f32.mrb[0].mxu0
        %2050 = vdwg.mxu0
        %v2055 = vunpack.c.l.b16 %v1990
        %v2056 = vunpack.c.l.b16 %v1991
        %v2057 = vunpack.c.l.b16 %v1992
        %v2058 = vunpack.c.l.b16 %v1993
        %v2059 = vpack.c.b16 %v2056, %v2055
        %v2060 = vpack.c.b16 %v2058, %v2057
        %v2064 = vsel %vm993, %v1989, 0
        %2066 = vmatprep.subr.bf16.mxu0 0
        %2067 = vmatpush1.bf16.msra.mxu0 %v2059
        %2068 = vmatprep.subr.bf16.mxu0 0
        %2069 = vmatpush1.bf16.msra.mxu0 %v2060
        %2070 = vmatprep.subr.bf16.mxu0 0
        %2071 = vmatpush1.bf16.msra.mxu0 0
        %2072 = vmatprep.subr.bf16.mxu0 0
        %2073 = vmatpush1.bf16.msra.mxu0 0
        %2074 = vmatprep.subr.bf16.mxu0 0
        %2075 = vmatpush1.bf16.msra.mxu0 0
        %2076 = vmatprep.subr.bf16.mxu0 0
        %2077 = vmatpush1.bf16.msra.mxu0 0
        %2078 = vmatprep.subr.bf16.mxu0 0
        %2079 = vmatpush1.bf16.msra.mxu0 0
        %2080 = vmatprep.subr.bf16.mxu0 0
        %2081 = vmatpush1.bf16.msra.mxu0 0
        %2082 = vmatprep.subr.bf16.mxu0 0
        %2083 = vmatpush1.bf16.msra.mxu0 0
        %2084 = vmatprep.subr.bf16.mxu0 0
        %2085 = vmatpush1.bf16.msra.mxu0 0
        %2086 = vmatprep.subr.bf16.mxu0 0
        %2087 = vmatpush1.bf16.msra.mxu0 0
        %2088 = vmatprep.subr.bf16.mxu0 0
        %2089 = vmatpush1.bf16.msra.mxu0 0
        %2090 = vmatprep.subr.bf16.mxu0 0
        %2091 = vmatpush1.bf16.msra.mxu0 0
        %2092 = vmatprep.subr.bf16.mxu0 0
        %2093 = vmatpush1.bf16.msra.mxu0 0
        %2094 = vmatprep.subr.bf16.mxu0 0
        %2095 = vmatpush1.bf16.msra.mxu0 0
        %2096 = vmatprep.subr.bf16.mxu0 0
        %2097 = vmatpush1.bf16.msra.mxu0 0
        %2098 = vmatprep.mubr.bf16.mxu0 0
        %2099 = vmatmul.mubr.bf16.gmra.mrb[0].mxu0 %v2064
        %v2100 = vpop.f32.mrb[0].mxu0
        %v2101 = vadd.f32 %v2046, %v2100
        %v2102 = vpop.f32.mrb[0].mxu0
        %v2103 = vpop.f32.mrb[0].mxu0
        %v2104 = vpop.f32.mrb[0].mxu0
        %2105 = vdwg.mxu0
        %s2106 = scalar_lea.vmem [#allocation28], 32
        %v2107 = vld [vmem:[%s2106] sm:$0xf]
        %v2108 = vld [vmem:[%s2106 + $0x4] sm:$0xf]
        %v2109 = vld [vmem:[%s2106 + $0x8] sm:$0xf]
        %v2110 = vld [vmem:[%s2106 + $0xc] sm:$0xf]
        %v2115 = vunpack.c.l.b16 %v2107
        %v2116 = vunpack.c.l.b16 %v2108
        %v2117 = vunpack.c.l.b16 %v2109
        %v2118 = vunpack.c.l.b16 %v2110
        %v2119 = vpack.c.b16 %v2116, %v2115
        %v2120 = vpack.c.b16 %v2118, %v2117
        %2123 = vmatprep.subr.bf16.mxu0 0
        %2124 = vmatpush1.bf16.msra.mxu0 %v2119
        %2125 = vmatprep.subr.bf16.mxu0 0
        %2126 = vmatpush1.bf16.msra.mxu0 %v2120
        %2127 = vmatprep.subr.bf16.mxu0 0
        %2128 = vmatpush1.bf16.msra.mxu0 0
        %2129 = vmatprep.subr.bf16.mxu0 0
        %2130 = vmatpush1.bf16.msra.mxu0 0
        %2131 = vmatprep.subr.bf16.mxu0 0
        %2132 = vmatpush1.bf16.msra.mxu0 0
        %2133 = vmatprep.subr.bf16.mxu0 0
        %2134 = vmatpush1.bf16.msra.mxu0 0
        %2135 = vmatprep.subr.bf16.mxu0 0
        %2136 = vmatpush1.bf16.msra.mxu0 0
        %2137 = vmatprep.subr.bf16.mxu0 0
        %2138 = vmatpush1.bf16.msra.mxu0 0
        %2139 = vmatprep.subr.bf16.mxu0 0
        %2140 = vmatpush1.bf16.msra.mxu0 0
        %2141 = vmatprep.subr.bf16.mxu0 0
        %2142 = vmatpush1.bf16.msra.mxu0 0
        %2143 = vmatprep.subr.bf16.mxu0 0
        %2144 = vmatpush1.bf16.msra.mxu0 0
        %2145 = vmatprep.subr.bf16.mxu0 0
        %2146 = vmatpush1.bf16.msra.mxu0 0
        %2147 = vmatprep.subr.bf16.mxu0 0
        %2148 = vmatpush1.bf16.msra.mxu0 0
        %2149 = vmatprep.subr.bf16.mxu0 0
        %2150 = vmatpush1.bf16.msra.mxu0 0
        %2151 = vmatprep.subr.bf16.mxu0 0
        %2152 = vmatpush1.bf16.msra.mxu0 0
        %2153 = vmatprep.subr.bf16.mxu0 0
        %2154 = vmatpush1.bf16.msra.mxu0 0
        %2155 = vmatprep.mubr.bf16.mxu0 0
        %2156 = vmatmul.mubr.bf16.gmra.mrb[0].mxu0 %v1756
        %v2157 = vpop.f32.mrb[0].mxu0
        %v2158 = vadd.f32 0.0, %v2157
        %v2159 = vpop.f32.mrb[0].mxu0
        %v2160 = vpop.f32.mrb[0].mxu0
        %v2161 = vpop.f32.mrb[0].mxu0
        %2162 = vdwg.mxu0
        %v2163 = vadd.f32 %v2101, %v2158
        %s2164 = scalar_lea.vmem [#allocation28], 48
        %v2165 = vld [vmem:[%s2164] sm:$0xf]
        %v2166 = vld [vmem:[%s2164 + $0x4] sm:$0xf]
        %v2167 = vld [vmem:[%s2164 + $0x8] sm:$0xf]
        %v2168 = vld [vmem:[%s2164 + $0xc] sm:$0xf]
        %v2173 = vunpack.c.l.b16 %v2165
        %v2174 = vunpack.c.l.b16 %v2166
        %v2175 = vunpack.c.l.b16 %v2167
        %v2176 = vunpack.c.l.b16 %v2168
        %v2177 = vpack.c.b16 %v2174, %v2173
        %v2178 = vpack.c.b16 %v2176, %v2175
        %2181 = vmatprep.subr.bf16.mxu0 0
        %2182 = vmatpush1.bf16.msra.mxu0 %v2177
        %2183 = vmatprep.subr.bf16.mxu0 0
        %2184 = vmatpush1.bf16.msra.mxu0 %v2178
        %2185 = vmatprep.subr.bf16.mxu0 0
        %2186 = vmatpush1.bf16.msra.mxu0 0
        %2187 = vmatprep.subr.bf16.mxu0 0
        %2188 = vmatpush1.bf16.msra.mxu0 0
        %2189 = vmatprep.subr.bf16.mxu0 0
        %2190 = vmatpush1.bf16.msra.mxu0 0
        %2191 = vmatprep.subr.bf16.mxu0 0
        %2192 = vmatpush1.bf16.msra.mxu0 0
        %2193 = vmatprep.subr.bf16.mxu0 0
        %2194 = vmatpush1.bf16.msra.mxu0 0
        %2195 = vmatprep.subr.bf16.mxu0 0
        %2196 = vmatpush1.bf16.msra.mxu0 0
        %2197 = vmatprep.subr.bf16.mxu0 0
        %2198 = vmatpush1.bf16.msra.mxu0 0
        %2199 = vmatprep.subr.bf16.mxu0 0
        %2200 = vmatpush1.bf16.msra.mxu0 0
        %2201 = vmatprep.subr.bf16.mxu0 0
        %2202 = vmatpush1.bf16.msra.mxu0 0
        %2203 = vmatprep.subr.bf16.mxu0 0
        %2204 = vmatpush1.bf16.msra.mxu0 0
        %2205 = vmatprep.subr.bf16.mxu0 0
        %2206 = vmatpush1.bf16.msra.mxu0 0
        %2207 = vmatprep.subr.bf16.mxu0 0
        %2208 = vmatpush1.bf16.msra.mxu0 0
        %2209 = vmatprep.subr.bf16.mxu0 0
        %2210 = vmatpush1.bf16.msra.mxu0 0
        %2211 = vmatprep.subr.bf16.mxu0 0
        %2212 = vmatpush1.bf16.msra.mxu0 0
        %2213 = vmatprep.mubr.bf16.mxu0 0
        %2214 = vmatmul.mubr.bf16.gmra.mrb[0].mxu0 %v1937
        %v2215 = vpop.f32.mrb[0].mxu0
        %v2216 = vadd.f32 0.0, %v2215
        %v2217 = vpop.f32.mrb[0].mxu0
        %v2218 = vpop.f32.mrb[0].mxu0
        %v2219 = vpop.f32.mrb[0].mxu0
        %2220 = vdwg.mxu0
        %v2221 = vadd.f32 %v2163, %v2216
        %v2222 = vld [vmem:[#allocation2 + $0x4] sm:$0xff]
        %v2223 = vpack.c.bf16 %v2222, %v2222
        %s2224 = scalar_lea.vmem [#allocation28], 64
        %v2225 = vld [vmem:[%s2224] sm:$0xf]
        %v2226 = vld [vmem:[%s2224 + $0x4] sm:$0xf]
        %v2227 = vld [vmem:[%s2224 + $0x8] sm:$0xf]
        %v2228 = vld [vmem:[%s2224 + $0xc] sm:$0xf]
        %v2233 = vunpack.c.l.b16 %v2225
        %v2234 = vunpack.c.l.b16 %v2226
        %v2235 = vunpack.c.l.b16 %v2227
        %v2236 = vunpack.c.l.b16 %v2228
        %v2237 = vpack.c.b16 %v2234, %v2233
        %v2238 = vpack.c.b16 %v2236, %v2235
        %v2242 = vsel %vm993, %v2223, 0
        %2244 = vmatprep.subr.bf16.mxu0 0
        %2245 = vmatpush1.bf16.msra.mxu0 %v2237
        %2246 = vmatprep.subr.bf16.mxu0 0
        %2247 = vmatpush1.bf16.msra.mxu0 %v2238
        %2248 = vmatprep.subr.bf16.mxu0 0
        %2249 = vmatpush1.bf16.msra.mxu0 0
        %2250 = vmatprep.subr.bf16.mxu0 0
        %2251 = vmatpush1.bf16.msra.mxu0 0
        %2252 = vmatprep.subr.bf16.mxu0 0
        %2253 = vmatpush1.bf16.msra.mxu0 0
        %2254 = vmatprep.subr.bf16.mxu0 0
        %2255 = vmatpush1.bf16.msra.mxu0 0
        %2256 = vmatprep.subr.bf16.mxu0 0
        %2257 = vmatpush1.bf16.msra.mxu0 0
        %2258 = vmatprep.subr.bf16.mxu0 0
        %2259 = vmatpush1.bf16.msra.mxu0 0
        %2260 = vmatprep.subr.bf16.mxu0 0
        %2261 = vmatpush1.bf16.msra.mxu0 0
        %2262 = vmatprep.subr.bf16.mxu0 0
        %2263 = vmatpush1.bf16.msra.mxu0 0
        %2264 = vmatprep.subr.bf16.mxu0 0
        %2265 = vmatpush1.bf16.msra.mxu0 0
        %2266 = vmatprep.subr.bf16.mxu0 0
        %2267 = vmatpush1.bf16.msra.mxu0 0
        %2268 = vmatprep.subr.bf16.mxu0 0
        %2269 = vmatpush1.bf16.msra.mxu0 0
        %2270 = vmatprep.subr.bf16.mxu0 0
        %2271 = vmatpush1.bf16.msra.mxu0 0
        %2272 = vmatprep.subr.bf16.mxu0 0
        %2273 = vmatpush1.bf16.msra.mxu0 0
        %2274 = vmatprep.subr.bf16.mxu0 0
        %2275 = vmatpush1.bf16.msra.mxu0 0
        %2276 = vmatprep.mubr.bf16.mxu0 0
        %2277 = vmatmul.mubr.bf16.gmra.mrb[0].mxu0 %v2242
        %v2278 = vpop.f32.mrb[0].mxu0
        %v2279 = vadd.f32 0.0, %v2278
        %v2280 = vpop.f32.mrb[0].mxu0
        %v2281 = vpop.f32.mrb[0].mxu0
        %v2282 = vpop.f32.mrb[0].mxu0
        %2283 = vdwg.mxu0
        %v2284 = vadd.f32 %v2221, %v2279
        %v2286 = vlaneseq
        %v2287 = vshrl.u32 %v2286, 7
        %v2288 = vsub.s32 0, %v2287
        %v2289 = vrot.slane %v1987, %v2288
        %v2291 = vadd.f32 %v2289, %v2284
        %v2292 = vpack.c.bf16 %v1793, %v1793
        %v2293 = vld [vmem:[%s18] sm:$0xf]
        %v2294 = vld [vmem:[%s18 + $0x4] sm:$0xf]
        %v2295 = vld [vmem:[%s18 + $0x8] sm:$0xf]
        %v2296 = vld [vmem:[%s18 + $0xc] sm:$0xf]
        %v2297 = vpack.c.bf16 %v1986, %v1986
        %v2298 = vld [vmem:[#allocation30] sm:$0xf]
        %v2299 = vld [vmem:[#allocation30 + $0x4] sm:$0xf]
        %v2300 = vld [vmem:[#allocation30 + $0x8] sm:$0xf]
        %v2301 = vld [vmem:[#allocation30 + $0xc] sm:$0xf]
        %v2306 = vunpack.c.l.b16 %v2298
        %v2307 = vunpack.c.l.b16 %v2299
        %v2308 = vunpack.c.l.b16 %v2300
        %v2309 = vunpack.c.l.b16 %v2301
        %v2310 = vpack.c.b16 %v2307, %v2306
        %v2311 = vpack.c.b16 %v2309, %v2308
        %v2315 = vsel %vm993, %v2297, 0
        %2317 = vmatprep.subr.bf16.mxu0 0
        %2318 = vmatpush1.bf16.msra.mxu0 %v2310
        %2319 = vmatprep.subr.bf16.mxu0 0
        %2320 = vmatpush1.bf16.msra.mxu0 %v2311
        %2321 = vmatprep.subr.bf16.mxu0 0
        %2322 = vmatpush1.bf16.msra.mxu0 0
        %2323 = vmatprep.subr.bf16.mxu0 0
        %2324 = vmatpush1.bf16.msra.mxu0 0
        %2325 = vmatprep.subr.bf16.mxu0 0
        %2326 = vmatpush1.bf16.msra.mxu0 0
        %2327 = vmatprep.subr.bf16.mxu0 0
        %2328 = vmatpush1.bf16.msra.mxu0 0
        %2329 = vmatprep.subr.bf16.mxu0 0
        %2330 = vmatpush1.bf16.msra.mxu0 0
        %2331 = vmatprep.subr.bf16.mxu0 0
        %2332 = vmatpush1.bf16.msra.mxu0 0
        %2333 = vmatprep.subr.bf16.mxu0 0
        %2334 = vmatpush1.bf16.msra.mxu0 0
        %2335 = vmatprep.subr.bf16.mxu0 0
        %2336 = vmatpush1.bf16.msra.mxu0 0
        %2337 = vmatprep.subr.bf16.mxu0 0
        %2338 = vmatpush1.bf16.msra.mxu0 0
        %2339 = vmatprep.subr.bf16.mxu0 0
        %2340 = vmatpush1.bf16.msra.mxu0 0
        %2341 = vmatprep.subr.bf16.mxu0 0
        %2342 = vmatpush1.bf16.msra.mxu0 0
        %2343 = vmatprep.subr.bf16.mxu0 0
        %2344 = vmatpush1.bf16.msra.mxu0 0
        %2345 = vmatprep.subr.bf16.mxu0 0
        %2346 = vmatpush1.bf16.msra.mxu0 0
        %2347 = vmatprep.subr.bf16.mxu0 0
        %2348 = vmatpush1.bf16.msra.mxu0 0
        %2349 = vmatprep.mubr.bf16.mxu0 0
        %2350 = vmatmul.mubr.bf16.gmra.mrb[0].mxu0 %v2315
        %v2351 = vpop.f32.mrb[0].mxu0
        %v2352 = vadd.f32 0.0, %v2351
        %v2353 = vpop.f32.mrb[0].mxu0
        %v2354 = vpop.f32.mrb[0].mxu0
        %v2355 = vpop.f32.mrb[0].mxu0
        %2356 = vdwg.mxu0
        %v2361 = vunpack.c.l.b16 %v2293
        %v2362 = vunpack.c.l.b16 %v2294
        %v2363 = vunpack.c.l.b16 %v2295
        %v2364 = vunpack.c.l.b16 %v2296
        %v2365 = vpack.c.b16 %v2362, %v2361
        %v2366 = vpack.c.b16 %v2364, %v2363
        %v2370 = vsel %vm993, %v2292, 0
        %2372 = vmatprep.subr.bf16.mxu0 0
        %2373 = vmatpush1.bf16.msra.mxu0 %v2365
        %2374 = vmatprep.subr.bf16.mxu0 0
        %2375 = vmatpush1.bf16.msra.mxu0 %v2366
        %2376 = vmatprep.subr.bf16.mxu0 0
        %2377 = vmatpush1.bf16.msra.mxu0 0
        %2378 = vmatprep.subr.bf16.mxu0 0
        %2379 = vmatpush1.bf16.msra.mxu0 0
        %2380 = vmatprep.subr.bf16.mxu0 0
        %2381 = vmatpush1.bf16.msra.mxu0 0
        %2382 = vmatprep.subr.bf16.mxu0 0
        %2383 = vmatpush1.bf16.msra.mxu0 0
        %2384 = vmatprep.subr.bf16.mxu0 0
        %2385 = vmatpush1.bf16.msra.mxu0 0
        %2386 = vmatprep.subr.bf16.mxu0 0
        %2387 = vmatpush1.bf16.msra.mxu0 0
        %2388 = vmatprep.subr.bf16.mxu0 0
        %2389 = vmatpush1.bf16.msra.mxu0 0
        %2390 = vmatprep.subr.bf16.mxu0 0
        %2391 = vmatpush1.bf16.msra.mxu0 0
        %2392 = vmatprep.subr.bf16.mxu0 0
        %2393 = vmatpush1.bf16.msra.mxu0 0
        %2394 = vmatprep.subr.bf16.mxu0 0
        %2395 = vmatpush1.bf16.msra.mxu0 0
        %2396 = vmatprep.subr.bf16.mxu0 0
        %2397 = vmatpush1.bf16.msra.mxu0 0
        %2398 = vmatprep.subr.bf16.mxu0 0
        %2399 = vmatpush1.bf16.msra.mxu0 0
        %2400 = vmatprep.subr.bf16.mxu0 0
        %2401 = vmatpush1.bf16.msra.mxu0 0
        %2402 = vmatprep.subr.bf16.mxu0 0
        %2403 = vmatpush1.bf16.msra.mxu0 0
        %2404 = vmatprep.mubr.bf16.mxu0 0
        %2405 = vmatmul.mubr.bf16.gmra.mrb[0].mxu0 %v2370
        %v2406 = vpop.f32.mrb[0].mxu0
        %v2407 = vadd.f32 %v2352, %v2406
        %v2408 = vpop.f32.mrb[0].mxu0
        %v2409 = vpop.f32.mrb[0].mxu0
        %v2410 = vpop.f32.mrb[0].mxu0
        %2411 = vdwg.mxu0
        %v2412 = vld [vmem:[%s20] sm:$0x1]
        %v2414 = vlaneseq
        %v2415 = vshrl.u32 %v2414, 7
        %v2416 = vsub.s32 0, %v2415
        %v2417 = vrot.slane %v2412, %v2416
        %v2419 = vadd.f32 %v2407, %v2417
        %v2420 = vxor.u32 %v2419, 2147483648
        %v2421 = vmul.f32 %v2420, 1.442695
        %v2422 = vpow.pop %v2421
        %v2423 = vadd.f32 %v2422, 1.0
        %v2424 = vrcp.pop %v2423
        %v2425 = vmul.f32 1.0, %v2424
        %v2426 = vmul.f32 %v2419, %v2425
        %v2427 = vld [vmem:[%s21] sm:$0x1]
        %v2429 = vlaneseq
        %v2430 = vshrl.u32 %v2429, 7
        %v2431 = vsub.s32 0, %v2430
        %v2432 = vrot.slane %v2427, %v2431
        %v2434 = vmul.f32 %v2426, %v2432
        %v2435 = vsel %vm993, %v2434, 0.0
        %2436 = vadd.xlane.f32.xlu0 %v2435
        %v2437 = vpop.xlane.xlu0 %2436
        %s2438 = sld [smem:[#allocation3]]
        %v2439 = vstv %s2438
        %v2440 = vadd.f32 %v2437, %v2439
        %v2441 = vxor.u32 %v2440, 2147483648
        %v2442 = vmul.f32 %v2441, 1.442695
        %v2443 = vpow.pop %v2442
        %v2444 = vadd.f32 %v2443, 1.0
        %v2445 = vrcp.pop %v2444
        %v2446 = vmul.f32 1.0, %v2445
        %v2447 = vmul.f32 %v2446, %v1793
        %v2448 = vsub.f32 1.0, %v2446
        %v2449 = vmul.f32 %v2448, %v1986
        %v2450 = vadd.f32 %v2447, %v2449
        %v2451 = vpack.c.bf16 %v2450, %v2450
        %v2452 = vpack.c.bf16 %v2291, %v2291
        %v2454 = vsel %vm993, %v2452, 0
        %2456 = vmatprep.subr.bf16.mxu0 0
        %2457 = vmatpush1.bf16.msra.mxu0 %v2310
        %2458 = vmatprep.subr.bf16.mxu0 0
        %2459 = vmatpush1.bf16.msra.mxu0 %v2311
        %2460 = vmatprep.subr.bf16.mxu0 0
        %2461 = vmatpush1.bf16.msra.mxu0 0
        %2462 = vmatprep.subr.bf16.mxu0 0
        %2463 = vmatpush1.bf16.msra.mxu0 0
        %2464 = vmatprep.subr.bf16.mxu0 0
        %2465 = vmatpush1.bf16.msra.mxu0 0
        %2466 = vmatprep.subr.bf16.mxu0 0
        %2467 = vmatpush1.bf16.msra.mxu0 0
        %2468 = vmatprep.subr.bf16.mxu0 0
        %2469 = vmatpush1.bf16.msra.mxu0 0
        %2470 = vmatprep.subr.bf16.mxu0 0
        %2471 = vmatpush1.bf16.msra.mxu0 0
        %2472 = vmatprep.subr.bf16.mxu0 0
        %2473 = vmatpush1.bf16.msra.mxu0 0
        %2474 = vmatprep.subr.bf16.mxu0 0
        %2475 = vmatpush1.bf16.msra.mxu0 0
        %2476 = vmatprep.subr.bf16.mxu0 0
        %2477 = vmatpush1.bf16.msra.mxu0 0
        %2478 = vmatprep.subr.bf16.mxu0 0
        %2479 = vmatpush1.bf16.msra.mxu0 0
        %2480 = vmatprep.subr.bf16.mxu0 0
        %2481 = vmatpush1.bf16.msra.mxu0 0
        %2482 = vmatprep.subr.bf16.mxu0 0
        %2483 = vmatpush1.bf16.msra.mxu0 0
        %2484 = vmatprep.subr.bf16.mxu0 0
        %2485 = vmatpush1.bf16.msra.mxu0 0
        %2486 = vmatprep.subr.bf16.mxu0 0
        %2487 = vmatpush1.bf16.msra.mxu0 0
        %2488 = vmatprep.mubr.bf16.mxu0 0
        %2489 = vmatmul.mubr.bf16.gmra.mrb[0].mxu0 %v2454
        %v2490 = vpop.f32.mrb[0].mxu0
        %v2491 = vadd.f32 0.0, %v2490
        %v2492 = vpop.f32.mrb[0].mxu0
        %v2493 = vpop.f32.mrb[0].mxu0
        %v2494 = vpop.f32.mrb[0].mxu0
        %2495 = vdwg.mxu0
        %v2497 = vsel %vm993, %v2451, 0
        %2499 = vmatprep.subr.bf16.mxu0 0
        %2500 = vmatpush1.bf16.msra.mxu0 %v2365
        %2501 = vmatprep.subr.bf16.mxu0 0
        %2502 = vmatpush1.bf16.msra.mxu0 %v2366
        %2503 = vmatprep.subr.bf16.mxu0 0
        %2504 = vmatpush1.bf16.msra.mxu0 0
        %2505 = vmatprep.subr.bf16.mxu0 0
        %2506 = vmatpush1.bf16.msra.mxu0 0
        %2507 = vmatprep.subr.bf16.mxu0 0
        %2508 = vmatpush1.bf16.msra.mxu0 0
        %2509 = vmatprep.subr.bf16.mxu0 0
        %2510 = vmatpush1.bf16.msra.mxu0 0
        %2511 = vmatprep.subr.bf16.mxu0 0
        %2512 = vmatpush1.bf16.msra.mxu0 0
        %2513 = vmatprep.subr.bf16.mxu0 0
        %2514 = vmatpush1.bf16.msra.mxu0 0
        %2515 = vmatprep.subr.bf16.mxu0 0
        %2516 = vmatpush1.bf16.msra.mxu0 0
        %2517 = vmatprep.subr.bf16.mxu0 0
        %2518 = vmatpush1.bf16.msra.mxu0 0
        %2519 = vmatprep.subr.bf16.mxu0 0
        %2520 = vmatpush1.bf16.msra.mxu0 0
        %2521 = vmatprep.subr.bf16.mxu0 0
        %2522 = vmatpush1.bf16.msra.mxu0 0
        %2523 = vmatprep.subr.bf16.mxu0 0
        %2524 = vmatpush1.bf16.msra.mxu0 0
        %2525 = vmatprep.subr.bf16.mxu0 0
        %2526 = vmatpush1.bf16.msra.mxu0 0
        %2527 = vmatprep.subr.bf16.mxu0 0
        %2528 = vmatpush1.bf16.msra.mxu0 0
        %2529 = vmatprep.subr.bf16.mxu0 0
        %2530 = vmatpush1.bf16.msra.mxu0 0
        %2531 = vmatprep.mubr.bf16.mxu0 0
        %2532 = vmatmul.mubr.bf16.gmra.mrb[0].mxu0 %v2497
        %v2533 = vpop.f32.mrb[0].mxu0
        %v2534 = vadd.f32 %v2491, %v2533
        %v2535 = vpop.f32.mrb[0].mxu0
        %v2536 = vpop.f32.mrb[0].mxu0
        %v2537 = vpop.f32.mrb[0].mxu0
        %2538 = vdwg.mxu0
        %v2539 = vadd.f32 %v2534, %v2417
        %v2540 = vxor.u32 %v2539, 2147483648
        %v2541 = vmul.f32 %v2540, 1.442695
        %v2542 = vpow.pop %v2541
        %v2543 = vadd.f32 %v2542, 1.0
        %v2544 = vrcp.pop %v2543
        %v2545 = vmul.f32 1.0, %v2544
        %v2546 = vmul.f32 %v2539, %v2545
        %v2547 = vmul.f32 %v2546, %v2432
        %v2548 = vsel %vm993, %v2547, 0.0
        %2549 = vadd.xlane.f32.xlu0 %v2548
        %v2550 = vpop.xlane.xlu0 %2549
        %v2551 = vadd.f32 %v2550, %v2439
        %v2552 = vxor.u32 %v2551, 2147483648
        %v2553 = vmul.f32 %v2552, 1.442695
        %v2554 = vpow.pop %v2553
        %v2555 = vadd.f32 %v2554, 1.0
        %v2556 = vrcp.pop %v2555
        %v2557 = vmul.f32 1.0, %v2556
        %v2558 = vmul.f32 %v2557, %v2450
        %v2559 = vsub.f32 1.0, %v2557
        %v2560 = vmul.f32 %v2559, %v2291
        %v2561 = vadd.f32 %v2558, %v2560
        %v2562 = vmax.f32 %v2561, 0.0
        %v2563 = vld [vmem:[#allocation21] sm:$0x1]
        %v2564 = vld [vmem:[#allocation22] sm:$0x1]
        %v2565 = vsel %vm993, %v2562, 0.0
        %2566 = vadd.xlane.f32.xlu0 %v2565
        %v2567 = vpop.xlane.xlu0 %2566
        %v2568 = vmul.f32 %v2567, %v1702
        %v2569 = vsub.f32 %v2562, %v2568
        %v2570 = vmul.f32 %v2569, %v2569
        %v2571 = vsel %vm993, %v2570, 0.0
        %2572 = vadd.xlane.f32.xlu0 %v2571
        %v2573 = vpop.xlane.xlu0 %2572
        %v2574 = vmul.f32 %v2573, %v1702
        %v2575 = vadd.f32 %v2574, 1e-05
        %v2576 = vrsqrt.pop %v2575
        %v2577 = vmul.f32 %v2569, %v2576
        %v2579 = vlaneseq
        %v2580 = vshrl.u32 %v2579, 7
        %v2581 = vsub.s32 0, %v2580
        %v2582 = vrot.slane %v2563, %v2581
        %v2584 = vmul.f32 %v2577, %v2582
        %v2586 = vlaneseq
        %v2587 = vshrl.u32 %v2586, 7
        %v2588 = vsub.s32 0, %v2587
        %v2589 = vrot.slane %v2564, %v2588
        %v2591 = vadd.f32 %v2584, %v2589
        %2592 = vst.msk [vmem:[%s964] sm:$0xff] %vm993, %v2591
        %s2593 = sand.u32 %s552, 1
        %s2594 = scalar_lea.sflag [#allocation6], %s2593
        %s2595 = sand.u32 %s552, 1
        %s2596 = smul.addr %s2595, 8
        %s2597 = scalar_lea.vmem [#allocation31], %s2596
        // Predicated region
        $region181: #{tpu_custom_call.1} parent=111 // pred_check
          %p2598 = pneg %p562
        $region182: #{tpu_custom_call.1} parent=111 // pred_check_branch
          %2600 = sbr.rel (%p2598) target = $region184
        $region183: #{tpu_custom_call.1} parent=111 // pred_region
          %s2602 = ssub.s32 128, 128
          %2603 = vsyncadd %s2594, %s2602
          %s2604 = smul.addr %s51, 128
          %s2605 = scalar_lea.hbm %s23, %s2604
          %s2607 = sshll.u32 %s2597, 4
          %s2608 = int_to_ptr.vmem [resolvable:$true] %s2607
          %2610 = dma.vmem_to_hbm [thread:$0]  %s2608, 128, %s2605, %s2594
        $region184: #{tpu_custom_call.1} parent=111 // pred_fallthru
          _
      $region112: #{tpu_custom_call.1} parent=5 // pred_fallthru
        _
      %p2611 = scmp.le.s32.totalorder 2, %s46
      // Predicated region
      $region185: #{tpu_custom_call.1} parent=5 // pred_check
        %p2612 = pneg %p2611
      $region186: #{tpu_custom_call.1} parent=5 // pred_check_branch
        %2614 = sbr.rel (%p2612) target = $region188
      $region187: #{tpu_custom_call.1} parent=5 // pred_region
        %s2615 = ssub.s32 %s46, 2
        // Predicated region
        $region189: #{tpu_custom_call.1} parent=187 // pred_check
          %p2616 = pneg %p568
        $region190: #{tpu_custom_call.1} parent=187 // pred_check_branch
          %2618 = sbr.rel (%p2616) target = $region192
        $region191: #{tpu_custom_call.1} parent=187 // pred_region
          %s2619 = sand.u32 %s553, 1
          %s2620 = scalar_lea.sflag [#allocation6], %s2619
          %s2621 = sand.u32 %s553, 1
          %s2622 = smul.addr %s2621, 8
          %s2623 = scalar_lea.vmem [#allocation31], %s2622
          %2624 = dma.done %s2620, 128
        $region192: #{tpu_custom_call.1} parent=187 // pred_fallthru
          _
      $region188: #{tpu_custom_call.1} parent=5 // pred_fallthru
        _
    $region6: #{tpu_custom_call.1} parent=1 // loop_footer
      %s50 = sadd.s32 1, %s46
    $region7: #{tpu_custom_call.1} parent=1 // loop_footer_branch
      %45 = sbr.rel target = $region3
    $region8: #{tpu_custom_call.1} parent=1 // loop_exit
      _
    %2625 = vsyncpa [#allocation5], 1
    %s2626 = scalar_lea.sflag [#allocation5], 1
    %2627 = vsyncpa %s2626, 1
    %2628 = vsyncpa [#allocation8], 1
    %s2629 = scalar_lea.sflag [#allocation8], 1
    %2630 = vsyncpa %s2629, 1
    %2631 = vsyncpa [#allocation11], 1
    %2632 = vsyncpa [#allocation14], 1
    %2633 = vsyncpa [#allocation17], 1
    %2634 = vsyncpa [#allocation20], 1
    %2635 = vsyncpa [#allocation23], 1
    %2636 = vsyncpa [#allocation26], 1
    %2637 = vsyncpa [#allocation29], 1
    %2638 = vsyncpa [#allocation6], 1
    %s2639 = scalar_lea.sflag [#allocation6], 1
    %2640 = vsyncpa %s2639, 1

</llo_original>
